<compile_context>
chip_gen: v5e
topology: v5e:2x2
jax: 0.10.0
libtpu: 0.0.40
codegen_flags: <defaults>
</compile_context>

<pallas_src>
import jax
import jax.numpy as jnp
from jax.experimental import pallas as pl
from jax.experimental.pallas import tpu as pltpu


def _round_up(x, m):
    return ((x + m - 1) // m) * m


def _vmem_limit_bytes():
    # Generation-aware scoped-VMEM limit: ~75% of physical VMEM
    # (96 MiB on v5e/v6e's 128 MiB, 48 MiB on v7x's 64 MiB).
    try:
        cap = getattr(pltpu.get_tpu_info(), "vmem_capacity_bytes", None)
        if cap:
            return int(cap) * 3 // 4
    except Exception:
        pass
    return 64 * 1024 * 1024


def _pad_gate_cols(w, h, h_pad):
    """(rows, 4*h) with PyTorch gate order i|f|g|o -> (rows, 4*h_pad),
    each gate block starting on an h_pad (128-lane) boundary."""
    rows = w.shape[0]
    w4 = w.reshape(rows, 4, h)
    w4 = jnp.pad(w4, ((0, 0), (0, 0), (0, h_pad - h)))
    return w4.reshape(rows, 4 * h_pad)


# ----------------------------------------------------------------------------
# Fused Pallas kernel: one (batch_tile, layer) grid step = one LSTM layer on
# one batch tile; last layer also runs the FC + ReLU epilogue.
# ----------------------------------------------------------------------------
def _make_kernel(num_layers, seq, tb, h_pad, unroll, compute_dtype):
    HP = h_pad

    def kernel(x_ref, wih_ref, whh_ref, b_ref, fcw_ref, fcb_ref,
               out_ref, gx_sc, act_sc):
        layer = pl.program_id(1)

        # Layer 0's input uses the same padded feature layout as the hidden
        # activations, so every layer reads its input from act_sc (VMEM).
        @pl.when(layer == 0)
        def _():
            act_sc[...] = x_ref[0]

        # ---- hoisted input projection: one MXU GEMM over the whole sequence
        # (off the serial critical path).  Gate k occupies lane-aligned
        # columns [k*HP, (k+1)*HP).
        gx_sc[...] = (
            jnp.dot(act_sc[...].astype(compute_dtype), wih_ref[0],
                    preferred_element_type=jnp.float32)
            + b_ref[0]
        )

        # ---- serial recurrence: only h @ W_hh per timestep.
        # TODO(synk): pltpu.matmul_push_rhs once per layer + matmul_acc_lhs /
        # matmul_pop per step to keep W_hh latched in the MXU.
        def step(t, carry):
            h, c = carry
            row = pl.multiple_of(t * tb, tb)          # sublane-aligned
            gh = jnp.dot(h.astype(compute_dtype), whh_ref[0],
                         preferred_element_type=jnp.float32)
            gates = gx_sc[pl.ds(row, tb), :] + gh     # (tb, 4*HP)
            # PyTorch gate order i, f, g, o; all slices lane-aligned.
            i = jax.nn.sigmoid(gates[:, 0 * HP:1 * HP])
            f = jax.nn.sigmoid(gates[:, 1 * HP:2 * HP])
            g = jnp.tanh(gates[:, 2 * HP:3 * HP])
            o = jax.nn.sigmoid(gates[:, 3 * HP:4 * HP])
            c = f * c + i * g
            h = o * jnp.tanh(c)
            act_sc[pl.ds(row, tb), :] = h             # lane-dense store
            return (h, c)

        init = (jnp.zeros((tb, HP), jnp.float32),
                jnp.zeros((tb, HP), jnp.float32))
        jax.lax.fori_loop(0, seq, step, init, unroll=unroll)

        # ---- fused FC + ReLU epilogue on the last layer only.
        # TODO(synk): for large seq*batch, pack rows into the lane dim instead
        # of padding out_size to 128 (HBM writeback inflation).
        @pl.when(layer == num_layers - 1)
        def _():
            y = jnp.dot(act_sc[...].astype(compute_dtype), fcw_ref[...],
                        preferred_element_type=jnp.float32)
            y = jnp.maximum(y + fcb_ref[...], 0.0)
            out_ref[0] = y.astype(out_ref.dtype)

    return kernel


# ----------------------------------------------------------------------------
# Wrapper
# ----------------------------------------------------------------------------
def lstm_predict_forward(x, params, *, use_bf16_weights=False):
    """x: (seq, batch, input_size) -> (seq, batch, output_size)."""
    seq, batch, input_size = x.shape
    num_layers = len(params["lstm_layers"])
    hidden = params["lstm_layers"][0][1].shape[0]
    out_size = params["fc_w_t"].shape[1]

    h_pad = _round_up(hidden, 128)       # lane-aligned gates / hidden slab
    out_pad = _round_up(out_size, 128)   # lane-dense final store
    assert input_size <= h_pad, \
        "TODO(synk): support input_size > padded hidden width"

    # Batch tiling: pad to the f32 sublane tile; split into two tiles when
    # there is enough batch so the "parallel" grid axis feeds both v7x TCs.
    b8 = _round_up(batch, 8)
    if b8 >= 16:
        tb = _round_up(-(-b8 // 2), 8)
        n_btiles = 2
    else:
        tb = b8
        n_btiles = 1
    b_total = n_btiles * tb
    rows = seq * tb

    w_dtype = jnp.bfloat16 if use_bf16_weights else jnp.float32
    compute_dtype = w_dtype

    # --- padded, stacked weights (gate blocks start on 128-lane boundaries).
    wih_l, whh_l, b_l = [], [], []
    for (wih_t, whh_t, bias) in params["lstm_layers"]:
        in_dim = wih_t.shape[0]
        wih = _pad_gate_cols(wih_t.astype(jnp.float32), hidden, h_pad)
        wih = jnp.pad(wih, ((0, h_pad - in_dim), (0, 0)))
        whh = _pad_gate_cols(whh_t.astype(jnp.float32), hidden, h_pad)
        whh = jnp.pad(whh, ((0, h_pad - hidden), (0, 0)))
        wih_l.append(wih)
        whh_l.append(whh)
        b_l.append(_pad_gate_cols(bias.astype(jnp.float32), hidden, h_pad))
    wih_stack = jnp.stack(wih_l).astype(w_dtype)       # (L, Hp, 4Hp)
    whh_stack = jnp.stack(whh_l).astype(w_dtype)       # (L, Hp, 4Hp)
    bias_stack = jnp.stack(b_l)                        # (L, 1, 4Hp) f32
    fc_w = jnp.pad(params["fc_w_t"].astype(jnp.float32),
                   ((0, h_pad - hidden), (0, out_pad - out_size))
                   ).astype(w_dtype)                   # (Hp, out_pad)
    fc_b = jnp.pad(params["fc_b"].astype(jnp.float32),
                   ((0, 0), (0, out_pad - out_size)))  # (1, out_pad)

    # --- input: pad batch + features; batch tile becomes the outermost dim so
    # each grid step sees one contiguous (seq*tb, Hp) slab (no in-kernel
    # reshapes).
    xp = jnp.pad(x.astype(jnp.float32),
                 ((0, 0), (0, b_total - batch), (0, h_pad - input_size)))
    x_arr = (xp.reshape(seq, n_btiles, tb, h_pad)
               .transpose(1, 0, 2, 3)
               .reshape(n_btiles, rows, h_pad))

    # Unroll cap by vreg budget: full unroll only while the live h/c state is
    # a handful of vregs; otherwise keep the loop rolled (avoid spills).
    vregs_per_state = max(1, (tb // 8) * (h_pad // 128))
    unroll = seq if (seq <= 32 and vregs_per_state <= 4) else min(seq, 4)

    kernel = _make_kernel(num_layers, seq, tb, h_pad, unroll, compute_dtype)

    out3 = pl.pallas_call(
        kernel,
        out_shape=jax.ShapeDtypeStruct((n_btiles, rows, out_pad), jnp.float32),
        grid_spec=pltpu.PrefetchScalarGridSpec(
            num_scalar_prefetch=0,
            grid=(n_btiles, num_layers),
            in_specs=[
                pl.BlockSpec((1, rows, h_pad), lambda b, l: (b, 0, 0)),
                pl.BlockSpec((1, h_pad, 4 * h_pad), lambda b, l: (l, 0, 0)),
                pl.BlockSpec((1, h_pad, 4 * h_pad), lambda b, l: (l, 0, 0)),
                pl.BlockSpec((1, 1, 4 * h_pad), lambda b, l: (l, 0, 0)),
                pl.BlockSpec((h_pad, out_pad), lambda b, l: (0, 0)),
                pl.BlockSpec((1, out_pad), lambda b, l: (0, 0)),
            ],
            out_specs=pl.BlockSpec((1, rows, out_pad), lambda b, l: (b, 0, 0)),
            scratch_shapes=[
                pltpu.VMEM((rows, 4 * h_pad), jnp.float32),  # hoisted gates
                pltpu.VMEM((rows, h_pad), jnp.float32),      # layer activations
            ],
        ),
        compiler_params=pltpu.CompilerParams(
            dimension_semantics=("parallel", "arbitrary"),
            vmem_limit_bytes=_vmem_limit_bytes(),
        ),
    )(x_arr, wih_stack, whh_stack, bias_stack, fc_w, fc_b)

    out = (out3.reshape(n_btiles, seq, tb, out_pad)
               .transpose(1, 0, 2, 3)
               .reshape(seq, b_total, out_pad)[:, :batch, :out_size])
    return out.astype(x.dtype)


# ----------------------------------------------------------------------------
# Deterministic parameter init (matches PyTorch shapes; uniform(-k, k))
# ----------------------------------------------------------------------------
def init_params(key, input_size, hidden_dim, num_layers, output_size):
    k = 1.0 / jnp.sqrt(hidden_dim)
    layers = []
    for layer in range(num_layers):
        in_dim = input_size if layer == 0 else hidden_dim
        key, k1, k2, k3, k4 = jax.random.split(key, 5)
        w_ih = jax.random.uniform(k1, (4 * hidden_dim, in_dim),
                                  jnp.float32, -k, k)
        w_hh = jax.random.uniform(k2, (4 * hidden_dim, hidden_dim),
                                  jnp.float32, -k, k)
        b_ih = jax.random.uniform(k3, (4 * hidden_dim,), jnp.float32, -k, k)
        b_hh = jax.random.uniform(k4, (4 * hidden_dim,), jnp.float32, -k, k)
        layers.append((w_ih.T, w_hh.T, (b_ih + b_hh)[None, :]))
    key, k5, k6 = jax.random.split(key, 3)
    kf = 1.0 / jnp.sqrt(hidden_dim)
    fc_w = jax.random.uniform(k5, (output_size, hidden_dim),
                              jnp.float32, -kf, kf)
    fc_b = jax.random.uniform(k6, (output_size,), jnp.float32, -kf, kf)
    return {"lstm_layers": layers, "fc_w_t": fc_w.T, "fc_b": fc_b[None, :]}


# ----------------------------------------------------------------------------
# Pure-JAX reference (for sanity check)
# ----------------------------------------------------------------------------
def reference_forward(x, params):
    h = x
    for (wih_t, whh_t, bias) in params["lstm_layers"]:
        hidden = whh_t.shape[0]
        batch = h.shape[1]

        def step(carry, x_t):
            hp, cp = carry
            gates = x_t @ wih_t + hp @ whh_t + bias
            i = jax.nn.sigmoid(gates[:, 0 * hidden:1 * hidden])
            f = jax.nn.sigmoid(gates[:, 1 * hidden:2 * hidden])
            g = jnp.tanh(gates[:, 2 * hidden:3 * hidden])
            o = jax.nn.sigmoid(gates[:, 3 * hidden:4 * hidden])
            c = f * cp + i * g
            hn = o * jnp.tanh(c)
            return (hn, c), hn

        init = (jnp.zeros((batch, hidden), jnp.float32),
                jnp.zeros((batch, hidden), jnp.float32))
        _, h = jax.lax.scan(step, init, h)
    seq, batch, hidden = h.shape
    out = h.reshape(seq * batch, hidden) @ params["fc_w_t"] + params["fc_b"]
    return jnp.maximum(out, 0.0).reshape(seq, batch, -1)


if __name__ == "__main__":
    input_size, hidden_dim, num_layers, output_size = 4, 32, 2, 4
    seq, batch = 8, 2

    key = jax.random.PRNGKey(0)
    key, xkey = jax.random.split(key)
    x = jax.random.normal(xkey, (seq, batch, input_size), jnp.float32)

    params = init_params(key, input_size, hidden_dim, num_layers, output_size)

    out = lstm_predict_forward(x, params)
    out = jax.block_until_ready(out)

    ref = jax.block_until_ready(reference_forward(x, params))
    assert out.shape == (seq, batch, output_size)
    assert jnp.allclose(out, ref, atol=1e-4, rtol=1e-4)

    print("KERNEL_OK")
</pallas_src>

<mosaic_0001>
module attributes {stable_mosaic.version = 11 : i64} {
  func.func @kernel(%arg0: i32, %arg1: i32, %arg2: memref<1x64x128xf32, #tpu.memory_space<vmem>>, %arg3: memref<1x128x512xf32, #tpu.memory_space<vmem>>, %arg4: memref<1x128x512xf32, #tpu.memory_space<vmem>>, %arg5: memref<1x1x512xf32, #tpu.memory_space<vmem>>, %arg6: memref<128x128xf32, #tpu.memory_space<vmem>>, %arg7: memref<1x128xf32, #tpu.memory_space<vmem>>, %arg8: memref<1x64x128xf32, #tpu.memory_space<vmem>>, %arg9: memref<64x512xf32, #tpu.memory_space<vmem>>, %arg10: memref<64x128xf32, #tpu.memory_space<vmem>>) attributes {dimension_semantics = [#tpu.dimension_semantics<parallel>, #tpu.dimension_semantics<arbitrary>], iteration_bounds = array<i64: 1, 2>, scalar_prefetch = 0 : i64, scratch_operands = 2 : i64, tpu.core_type = #tpu.core_type<tc>, window_params = [{transform_indices = @transform_0, window_bounds = array<i64: 1, 64, 128>}, {transform_indices = @transform_1, window_bounds = array<i64: 1, 128, 512>}, {transform_indices = @transform_2, window_bounds = array<i64: 1, 128, 512>}, {transform_indices = @transform_3, window_bounds = array<i64: 1, 1, 512>}, {pipeline_mode = #tpu.pipeline_mode<synchronous>, transform_indices = @transform_4, window_bounds = array<i64: 128, 128>}, {pipeline_mode = #tpu.pipeline_mode<synchronous>, transform_indices = @transform_5, window_bounds = array<i64: 1, 128>}, {transform_indices = @transform_6, window_bounds = array<i64: 1, 64, 128>}]} {
    %c0_i32 = arith.constant 0 : i32
    %0 = arith.cmpi eq, %arg1, %c0_i32 : i32
    %1 = arith.extui %0 : i1 to i32
    %c0_i32_0 = arith.constant 0 : i32
    %2 = arith.cmpi ne, %1, %c0_i32_0 : i32
    scf.if %2 {
      %c0_95 = arith.constant 0 : index
      %c0_96 = arith.constant 0 : index
      %c0_97 = arith.constant 0 : index
      %297 = vector.load %arg2[%c0_95, %c0_96, %c0_97] : memref<1x64x128xf32, #tpu.memory_space<vmem>>, vector<1x64x128xf32>
      %298 = vector.shape_cast %297 : vector<1x64x128xf32> to vector<64x128xf32>
      %c0_98 = arith.constant 0 : index
      %c0_99 = arith.constant 0 : index
      %299 = vector.load %arg10[%c0_98, %c0_99] : memref<64x128xf32, #tpu.memory_space<vmem>>, vector<64x128xf32>
      tpu.vector_store %arg10[%c0_98, %c0_99], %298 {strides = array<i32>} : memref<64x128xf32, #tpu.memory_space<vmem>>, vector<64x128xf32>,
    } else {
    }
    %c0 = arith.constant 0 : index
    %c0_1 = arith.constant 0 : index
    %3 = vector.load %arg10[%c0, %c0_1] : memref<64x128xf32, #tpu.memory_space<vmem>>, vector<64x128xf32>
    %c0_2 = arith.constant 0 : index
    %c0_3 = arith.constant 0 : index
    %c0_4 = arith.constant 0 : index
    %4 = vector.load %arg3[%c0_2, %c0_3, %c0_4] : memref<1x128x512xf32, #tpu.memory_space<vmem>>, vector<1x128x512xf32>
    %5 = vector.shape_cast %4 : vector<1x128x512xf32> to vector<128x512xf32>
    %cst = arith.constant dense<0.000000e+00> : vector<64x512xf32>
    %6 = tpu.matmul %3, %5, %cst {dimension_numbers = #tpu.dot_dimension_numbers<[1], [0], [0], [1], [0, 0, 1, 1], [], []>} : vector<64x128xf32>, vector<128x512xf32>, vector<64x512xf32> -> vector<64x512xf32>
    %c0_5 = arith.constant 0 : index
    %c0_6 = arith.constant 0 : index
    %c0_7 = arith.constant 0 : index
    %7 = vector.load %arg5[%c0_5, %c0_6, %c0_7] : memref<1x1x512xf32, #tpu.memory_space<vmem>>, vector<1x1x512xf32>
    %8 = vector.shape_cast %7 : vector<1x1x512xf32> to vector<1x512xf32>
    %9 = vector.broadcast %8 : vector<1x512xf32> to vector<64x512xf32>
    %10 = arith.addf %6, %9 : vector<64x512xf32>
    %c0_8 = arith.constant 0 : index
    %c0_9 = arith.constant 0 : index
    %11 = vector.load %arg9[%c0_8, %c0_9] : memref<64x512xf32, #tpu.memory_space<vmem>>, vector<64x512xf32>
    tpu.vector_store %arg9[%c0_8, %c0_9], %10 {strides = array<i32>} : memref<64x512xf32, #tpu.memory_space<vmem>>, vector<64x512xf32>,
    %cst_10 = arith.constant 0.000000e+00 : f32
    %12 = vector.broadcast %cst_10 : f32 to vector<8x128xf32>
    %cst_11 = arith.constant 0.000000e+00 : f32
    %13 = vector.broadcast %cst_11 : f32 to vector<8x128xf32>
    %c0_i32_12 = arith.constant 0 : i32
    %c8_i32 = arith.constant 8 : i32
    %14 = arith.muli %c0_i32_12, %c8_i32 : i32
    %15 = tpu.assume_multiple %14, 8 : i32
    %c0_13 = arith.constant 0 : index
    %c0_14 = arith.constant 0 : index
    %c0_15 = arith.constant 0 : index
    %16 = vector.load %arg4[%c0_13, %c0_14, %c0_15] : memref<1x128x512xf32, #tpu.memory_space<vmem>>, vector<1x128x512xf32>
    %17 = vector.shape_cast %16 : vector<1x128x512xf32> to vector<128x512xf32>
    %cst_16 = arith.constant dense<0.000000e+00> : vector<8x512xf32>
    %18 = tpu.matmul %12, %17, %cst_16 {dimension_numbers = #tpu.dot_dimension_numbers<[1], [0], [0], [1], [0, 0, 1, 1], [], []>} : vector<8x128xf32>, vector<128x512xf32>, vector<8x512xf32> -> vector<8x512xf32>
    %19 = arith.index_cast %15 : i32 to index
    %c0_17 = arith.constant 0 : index
    %20 = vector.load %arg9[%19, %c0_17] : memref<64x512xf32, #tpu.memory_space<vmem>>, vector<8x512xf32>
    %21 = arith.addf %20, %18 : vector<8x512xf32>
    %22 = vector.extract_strided_slice %21 {offsets = [0, 0], sizes = [8, 128], strides = [1, 1]} : vector<8x512xf32> to vector<8x128xf32>
    %23 = arith.negf %22 : vector<8x128xf32>
    %24 = math.exp %23 : vector<8x128xf32>
    %cst_18 = arith.constant 1.000000e+00 : f32
    %25 = vector.broadcast %cst_18 : f32 to vector<8x128xf32>
    %26 = arith.addf %25, %24 : vector<8x128xf32>
    %27 = arith.divf %25, %26 : vector<8x128xf32>
    %28 = vector.extract_strided_slice %21 {offsets = [0, 128], sizes = [8, 128], strides = [1, 1]} : vector<8x512xf32> to vector<8x128xf32>
    %29 = arith.negf %28 : vector<8x128xf32>
    %30 = math.exp %29 : vector<8x128xf32>
    %cst_19 = arith.constant 1.000000e+00 : f32
    %31 = vector.broadcast %cst_19 : f32 to vector<8x128xf32>
    %32 = arith.addf %31, %30 : vector<8x128xf32>
    %33 = arith.divf %31, %32 : vector<8x128xf32>
    %34 = vector.extract_strided_slice %21 {offsets = [0, 256], sizes = [8, 128], strides = [1, 1]} : vector<8x512xf32> to vector<8x128xf32>
    %35 = math.tanh %34 : vector<8x128xf32>
    %36 = vector.extract_strided_slice %21 {offsets = [0, 384], sizes = [8, 128], strides = [1, 1]} : vector<8x512xf32> to vector<8x128xf32>
    %37 = arith.negf %36 : vector<8x128xf32>
    %38 = math.exp %37 : vector<8x128xf32>
    %cst_20 = arith.constant 1.000000e+00 : f32
    %39 = vector.broadcast %cst_20 : f32 to vector<8x128xf32>
    %40 = arith.addf %39, %38 : vector<8x128xf32>
    %41 = arith.divf %39, %40 : vector<8x128xf32>
    %42 = arith.mulf %33, %13 : vector<8x128xf32>
    %43 = arith.mulf %27, %35 : vector<8x128xf32>
    %44 = arith.addf %42, %43 : vector<8x128xf32>
    %45 = math.tanh %44 : vector<8x128xf32>
    %46 = arith.mulf %41, %45 : vector<8x128xf32>
    %47 = arith.index_cast %15 : i32 to index
    %c0_21 = arith.constant 0 : index
    %48 = vector.load %arg10[%47, %c0_21] : memref<64x128xf32, #tpu.memory_space<vmem>>, vector<8x128xf32>
    tpu.vector_store %arg10[%47, %c0_21], %46 {strides = array<i32>} : memref<64x128xf32, #tpu.memory_space<vmem>>, vector<8x128xf32>,
    %c1_i32 = arith.constant 1 : i32
    %c8_i32_22 = arith.constant 8 : i32
    %49 = arith.muli %c1_i32, %c8_i32_22 : i32
    %50 = tpu.assume_multiple %49, 8 : i32
    %c0_23 = arith.constant 0 : index
    %c0_24 = arith.constant 0 : index
    %c0_25 = arith.constant 0 : index
    %51 = vector.load %arg4[%c0_23, %c0_24, %c0_25] : memref<1x128x512xf32, #tpu.memory_space<vmem>>, vector<1x128x512xf32>
    %52 = vector.shape_cast %51 : vector<1x128x512xf32> to vector<128x512xf32>
    %cst_26 = arith.constant dense<0.000000e+00> : vector<8x512xf32>
    %53 = tpu.matmul %46, %52, %cst_26 {dimension_numbers = #tpu.dot_dimension_numbers<[1], [0], [0], [1], [0, 0, 1, 1], [], []>} : vector<8x128xf32>, vector<128x512xf32>, vector<8x512xf32> -> vector<8x512xf32>
    %54 = arith.index_cast %50 : i32 to index
    %c0_27 = arith.constant 0 : index
    %55 = vector.load %arg9[%54, %c0_27] : memref<64x512xf32, #tpu.memory_space<vmem>>, vector<8x512xf32>
    %56 = arith.addf %55, %53 : vector<8x512xf32>
    %57 = vector.extract_strided_slice %56 {offsets = [0, 0], sizes = [8, 128], strides = [1, 1]} : vector<8x512xf32> to vector<8x128xf32>
    %58 = arith.negf %57 : vector<8x128xf32>
    %59 = math.exp %58 : vector<8x128xf32>
    %cst_28 = arith.constant 1.000000e+00 : f32
    %60 = vector.broadcast %cst_28 : f32 to vector<8x128xf32>
    %61 = arith.addf %60, %59 : vector<8x128xf32>
    %62 = arith.divf %60, %61 : vector<8x128xf32>
    %63 = vector.extract_strided_slice %56 {offsets = [0, 128], sizes = [8, 128], strides = [1, 1]} : vector<8x512xf32> to vector<8x128xf32>
    %64 = arith.negf %63 : vector<8x128xf32>
    %65 = math.exp %64 : vector<8x128xf32>
    %cst_29 = arith.constant 1.000000e+00 : f32
    %66 = vector.broadcast %cst_29 : f32 to vector<8x128xf32>
    %67 = arith.addf %66, %65 : vector<8x128xf32>
    %68 = arith.divf %66, %67 : vector<8x128xf32>
    %69 = vector.extract_strided_slice %56 {offsets = [0, 256], sizes = [8, 128], strides = [1, 1]} : vector<8x512xf32> to vector<8x128xf32>
    %70 = math.tanh %69 : vector<8x128xf32>
    %71 = vector.extract_strided_slice %56 {offsets = [0, 384], sizes = [8, 128], strides = [1, 1]} : vector<8x512xf32> to vector<8x128xf32>
    %72 = arith.negf %71 : vector<8x128xf32>
    %73 = math.exp %72 : vector<8x128xf32>
    %cst_30 = arith.constant 1.000000e+00 : f32
    %74 = vector.broadcast %cst_30 : f32 to vector<8x128xf32>
    %75 = arith.addf %74, %73 : vector<8x128xf32>
    %76 = arith.divf %74, %75 : vector<8x128xf32>
    %77 = arith.mulf %68, %44 : vector<8x128xf32>
    %78 = arith.mulf %62, %70 : vector<8x128xf32>
    %79 = arith.addf %77, %78 : vector<8x128xf32>
    %80 = math.tanh %79 : vector<8x128xf32>
    %81 = arith.mulf %76, %80 : vector<8x128xf32>
    %82 = arith.index_cast %50 : i32 to index
    %c0_31 = arith.constant 0 : index
    %83 = vector.load %arg10[%82, %c0_31] : memref<64x128xf32, #tpu.memory_space<vmem>>, vector<8x128xf32>
    tpu.vector_store %arg10[%82, %c0_31], %81 {strides = array<i32>} : memref<64x128xf32, #tpu.memory_space<vmem>>, vector<8x128xf32>,
    %c2_i32 = arith.constant 2 : i32
    %c8_i32_32 = arith.constant 8 : i32
    %84 = arith.muli %c2_i32, %c8_i32_32 : i32
    %85 = tpu.assume_multiple %84, 8 : i32
    %c0_33 = arith.constant 0 : index
    %c0_34 = arith.constant 0 : index
    %c0_35 = arith.constant 0 : index
    %86 = vector.load %arg4[%c0_33, %c0_34, %c0_35] : memref<1x128x512xf32, #tpu.memory_space<vmem>>, vector<1x128x512xf32>
    %87 = vector.shape_cast %86 : vector<1x128x512xf32> to vector<128x512xf32>
    %cst_36 = arith.constant dense<0.000000e+00> : vector<8x512xf32>
    %88 = tpu.matmul %81, %87, %cst_36 {dimension_numbers = #tpu.dot_dimension_numbers<[1], [0], [0], [1], [0, 0, 1, 1], [], []>} : vector<8x128xf32>, vector<128x512xf32>, vector<8x512xf32> -> vector<8x512xf32>
    %89 = arith.index_cast %85 : i32 to index
    %c0_37 = arith.constant 0 : index
    %90 = vector.load %arg9[%89, %c0_37] : memref<64x512xf32, #tpu.memory_space<vmem>>, vector<8x512xf32>
    %91 = arith.addf %90, %88 : vector<8x512xf32>
    %92 = vector.extract_strided_slice %91 {offsets = [0, 0], sizes = [8, 128], strides = [1, 1]} : vector<8x512xf32> to vector<8x128xf32>
    %93 = arith.negf %92 : vector<8x128xf32>
    %94 = math.exp %93 : vector<8x128xf32>
    %cst_38 = arith.constant 1.000000e+00 : f32
    %95 = vector.broadcast %cst_38 : f32 to vector<8x128xf32>
    %96 = arith.addf %95, %94 : vector<8x128xf32>
    %97 = arith.divf %95, %96 : vector<8x128xf32>
    %98 = vector.extract_strided_slice %91 {offsets = [0, 128], sizes = [8, 128], strides = [1, 1]} : vector<8x512xf32> to vector<8x128xf32>
    %99 = arith.negf %98 : vector<8x128xf32>
    %100 = math.exp %99 : vector<8x128xf32>
    %cst_39 = arith.constant 1.000000e+00 : f32
    %101 = vector.broadcast %cst_39 : f32 to vector<8x128xf32>
    %102 = arith.addf %101, %100 : vector<8x128xf32>
    %103 = arith.divf %101, %102 : vector<8x128xf32>
    %104 = vector.extract_strided_slice %91 {offsets = [0, 256], sizes = [8, 128], strides = [1, 1]} : vector<8x512xf32> to vector<8x128xf32>
    %105 = math.tanh %104 : vector<8x128xf32>
    %106 = vector.extract_strided_slice %91 {offsets = [0, 384], sizes = [8, 128], strides = [1, 1]} : vector<8x512xf32> to vector<8x128xf32>
    %107 = arith.negf %106 : vector<8x128xf32>
    %108 = math.exp %107 : vector<8x128xf32>
    %cst_40 = arith.constant 1.000000e+00 : f32
    %109 = vector.broadcast %cst_40 : f32 to vector<8x128xf32>
    %110 = arith.addf %109, %108 : vector<8x128xf32>
    %111 = arith.divf %109, %110 : vector<8x128xf32>
    %112 = arith.mulf %103, %79 : vector<8x128xf32>
    %113 = arith.mulf %97, %105 : vector<8x128xf32>
    %114 = arith.addf %112, %113 : vector<8x128xf32>
    %115 = math.tanh %114 : vector<8x128xf32>
    %116 = arith.mulf %111, %115 : vector<8x128xf32>
    %117 = arith.index_cast %85 : i32 to index
    %c0_41 = arith.constant 0 : index
    %118 = vector.load %arg10[%117, %c0_41] : memref<64x128xf32, #tpu.memory_space<vmem>>, vector<8x128xf32>
    tpu.vector_store %arg10[%117, %c0_41], %116 {strides = array<i32>} : memref<64x128xf32, #tpu.memory_space<vmem>>, vector<8x128xf32>,
    %c3_i32 = arith.constant 3 : i32
    %c8_i32_42 = arith.constant 8 : i32
    %119 = arith.muli %c3_i32, %c8_i32_42 : i32
    %120 = tpu.assume_multiple %119, 8 : i32
    %c0_43 = arith.constant 0 : index
    %c0_44 = arith.constant 0 : index
    %c0_45 = arith.constant 0 : index
    %121 = vector.load %arg4[%c0_43, %c0_44, %c0_45] : memref<1x128x512xf32, #tpu.memory_space<vmem>>, vector<1x128x512xf32>
    %122 = vector.shape_cast %121 : vector<1x128x512xf32> to vector<128x512xf32>
    %cst_46 = arith.constant dense<0.000000e+00> : vector<8x512xf32>
    %123 = tpu.matmul %116, %122, %cst_46 {dimension_numbers = #tpu.dot_dimension_numbers<[1], [0], [0], [1], [0, 0, 1, 1], [], []>} : vector<8x128xf32>, vector<128x512xf32>, vector<8x512xf32> -> vector<8x512xf32>
    %124 = arith.index_cast %120 : i32 to index
    %c0_47 = arith.constant 0 : index
    %125 = vector.load %arg9[%124, %c0_47] : memref<64x512xf32, #tpu.memory_space<vmem>>, vector<8x512xf32>
    %126 = arith.addf %125, %123 : vector<8x512xf32>
    %127 = vector.extract_strided_slice %126 {offsets = [0, 0], sizes = [8, 128], strides = [1, 1]} : vector<8x512xf32> to vector<8x128xf32>
    %128 = arith.negf %127 : vector<8x128xf32>
    %129 = math.exp %128 : vector<8x128xf32>
    %cst_48 = arith.constant 1.000000e+00 : f32
    %130 = vector.broadcast %cst_48 : f32 to vector<8x128xf32>
    %131 = arith.addf %130, %129 : vector<8x128xf32>
    %132 = arith.divf %130, %131 : vector<8x128xf32>
    %133 = vector.extract_strided_slice %126 {offsets = [0, 128], sizes = [8, 128], strides = [1, 1]} : vector<8x512xf32> to vector<8x128xf32>
    %134 = arith.negf %133 : vector<8x128xf32>
    %135 = math.exp %134 : vector<8x128xf32>
    %cst_49 = arith.constant 1.000000e+00 : f32
    %136 = vector.broadcast %cst_49 : f32 to vector<8x128xf32>
    %137 = arith.addf %136, %135 : vector<8x128xf32>
    %138 = arith.divf %136, %137 : vector<8x128xf32>
    %139 = vector.extract_strided_slice %126 {offsets = [0, 256], sizes = [8, 128], strides = [1, 1]} : vector<8x512xf32> to vector<8x128xf32>
    %140 = math.tanh %139 : vector<8x128xf32>
    %141 = vector.extract_strided_slice %126 {offsets = [0, 384], sizes = [8, 128], strides = [1, 1]} : vector<8x512xf32> to vector<8x128xf32>
    %142 = arith.negf %141 : vector<8x128xf32>
    %143 = math.exp %142 : vector<8x128xf32>
    %cst_50 = arith.constant 1.000000e+00 : f32
    %144 = vector.broadcast %cst_50 : f32 to vector<8x128xf32>
    %145 = arith.addf %144, %143 : vector<8x128xf32>
    %146 = arith.divf %144, %145 : vector<8x128xf32>
    %147 = arith.mulf %138, %114 : vector<8x128xf32>
    %148 = arith.mulf %132, %140 : vector<8x128xf32>
    %149 = arith.addf %147, %148 : vector<8x128xf32>
    %150 = math.tanh %149 : vector<8x128xf32>
    %151 = arith.mulf %146, %150 : vector<8x128xf32>
    %152 = arith.index_cast %120 : i32 to index
    %c0_51 = arith.constant 0 : index
    %153 = vector.load %arg10[%152, %c0_51] : memref<64x128xf32, #tpu.memory_space<vmem>>, vector<8x128xf32>
    tpu.vector_store %arg10[%152, %c0_51], %151 {strides = array<i32>} : memref<64x128xf32, #tpu.memory_space<vmem>>, vector<8x128xf32>,
    %c4_i32 = arith.constant 4 : i32
    %c8_i32_52 = arith.constant 8 : i32
    %154 = arith.muli %c4_i32, %c8_i32_52 : i32
    %155 = tpu.assume_multiple %154, 8 : i32
    %c0_53 = arith.constant 0 : index
    %c0_54 = arith.constant 0 : index
    %c0_55 = arith.constant 0 : index
    %156 = vector.load %arg4[%c0_53, %c0_54, %c0_55] : memref<1x128x512xf32, #tpu.memory_space<vmem>>, vector<1x128x512xf32>
    %157 = vector.shape_cast %156 : vector<1x128x512xf32> to vector<128x512xf32>
    %cst_56 = arith.constant dense<0.000000e+00> : vector<8x512xf32>
    %158 = tpu.matmul %151, %157, %cst_56 {dimension_numbers = #tpu.dot_dimension_numbers<[1], [0], [0], [1], [0, 0, 1, 1], [], []>} : vector<8x128xf32>, vector<128x512xf32>, vector<8x512xf32> -> vector<8x512xf32>
    %159 = arith.index_cast %155 : i32 to index
    %c0_57 = arith.constant 0 : index
    %160 = vector.load %arg9[%159, %c0_57] : memref<64x512xf32, #tpu.memory_space<vmem>>, vector<8x512xf32>
    %161 = arith.addf %160, %158 : vector<8x512xf32>
    %162 = vector.extract_strided_slice %161 {offsets = [0, 0], sizes = [8, 128], strides = [1, 1]} : vector<8x512xf32> to vector<8x128xf32>
    %163 = arith.negf %162 : vector<8x128xf32>
    %164 = math.exp %163 : vector<8x128xf32>
    %cst_58 = arith.constant 1.000000e+00 : f32
    %165 = vector.broadcast %cst_58 : f32 to vector<8x128xf32>
    %166 = arith.addf %165, %164 : vector<8x128xf32>
    %167 = arith.divf %165, %166 : vector<8x128xf32>
    %168 = vector.extract_strided_slice %161 {offsets = [0, 128], sizes = [8, 128], strides = [1, 1]} : vector<8x512xf32> to vector<8x128xf32>
    %169 = arith.negf %168 : vector<8x128xf32>
    %170 = math.exp %169 : vector<8x128xf32>
    %cst_59 = arith.constant 1.000000e+00 : f32
    %171 = vector.broadcast %cst_59 : f32 to vector<8x128xf32>
    %172 = arith.addf %171, %170 : vector<8x128xf32>
    %173 = arith.divf %171, %172 : vector<8x128xf32>
    %174 = vector.extract_strided_slice %161 {offsets = [0, 256], sizes = [8, 128], strides = [1, 1]} : vector<8x512xf32> to vector<8x128xf32>
    %175 = math.tanh %174 : vector<8x128xf32>
    %176 = vector.extract_strided_slice %161 {offsets = [0, 384], sizes = [8, 128], strides = [1, 1]} : vector<8x512xf32> to vector<8x128xf32>
    %177 = arith.negf %176 : vector<8x128xf32>
    %178 = math.exp %177 : vector<8x128xf32>
    %cst_60 = arith.constant 1.000000e+00 : f32
    %179 = vector.broadcast %cst_60 : f32 to vector<8x128xf32>
    %180 = arith.addf %179, %178 : vector<8x128xf32>
    %181 = arith.divf %179, %180 : vector<8x128xf32>
    %182 = arith.mulf %173, %149 : vector<8x128xf32>
    %183 = arith.mulf %167, %175 : vector<8x128xf32>
    %184 = arith.addf %182, %183 : vector<8x128xf32>
    %185 = math.tanh %184 : vector<8x128xf32>
    %186 = arith.mulf %181, %185 : vector<8x128xf32>
    %187 = arith.index_cast %155 : i32 to index
    %c0_61 = arith.constant 0 : index
    %188 = vector.load %arg10[%187, %c0_61] : memref<64x128xf32, #tpu.memory_space<vmem>>, vector<8x128xf32>
    tpu.vector_store %arg10[%187, %c0_61], %186 {strides = array<i32>} : memref<64x128xf32, #tpu.memory_space<vmem>>, vector<8x128xf32>,
    %c5_i32 = arith.constant 5 : i32
    %c8_i32_62 = arith.constant 8 : i32
    %189 = arith.muli %c5_i32, %c8_i32_62 : i32
    %190 = tpu.assume_multiple %189, 8 : i32
    %c0_63 = arith.constant 0 : index
    %c0_64 = arith.constant 0 : index
    %c0_65 = arith.constant 0 : index
    %191 = vector.load %arg4[%c0_63, %c0_64, %c0_65] : memref<1x128x512xf32, #tpu.memory_space<vmem>>, vector<1x128x512xf32>
    %192 = vector.shape_cast %191 : vector<1x128x512xf32> to vector<128x512xf32>
    %cst_66 = arith.constant dense<0.000000e+00> : vector<8x512xf32>
    %193 = tpu.matmul %186, %192, %cst_66 {dimension_numbers = #tpu.dot_dimension_numbers<[1], [0], [0], [1], [0, 0, 1, 1], [], []>} : vector<8x128xf32>, vector<128x512xf32>, vector<8x512xf32> -> vector<8x512xf32>
    %194 = arith.index_cast %190 : i32 to index
    %c0_67 = arith.constant 0 : index
    %195 = vector.load %arg9[%194, %c0_67] : memref<64x512xf32, #tpu.memory_space<vmem>>, vector<8x512xf32>
    %196 = arith.addf %195, %193 : vector<8x512xf32>
    %197 = vector.extract_strided_slice %196 {offsets = [0, 0], sizes = [8, 128], strides = [1, 1]} : vector<8x512xf32> to vector<8x128xf32>
    %198 = arith.negf %197 : vector<8x128xf32>
    %199 = math.exp %198 : vector<8x128xf32>
    %cst_68 = arith.constant 1.000000e+00 : f32
    %200 = vector.broadcast %cst_68 : f32 to vector<8x128xf32>
    %201 = arith.addf %200, %199 : vector<8x128xf32>
    %202 = arith.divf %200, %201 : vector<8x128xf32>
    %203 = vector.extract_strided_slice %196 {offsets = [0, 128], sizes = [8, 128], strides = [1, 1]} : vector<8x512xf32> to vector<8x128xf32>
    %204 = arith.negf %203 : vector<8x128xf32>
    %205 = math.exp %204 : vector<8x128xf32>
    %cst_69 = arith.constant 1.000000e+00 : f32
    %206 = vector.broadcast %cst_69 : f32 to vector<8x128xf32>
    %207 = arith.addf %206, %205 : vector<8x128xf32>
    %208 = arith.divf %206, %207 : vector<8x128xf32>
    %209 = vector.extract_strided_slice %196 {offsets = [0, 256], sizes = [8, 128], strides = [1, 1]} : vector<8x512xf32> to vector<8x128xf32>
    %210 = math.tanh %209 : vector<8x128xf32>
    %211 = vector.extract_strided_slice %196 {offsets = [0, 384], sizes = [8, 128], strides = [1, 1]} : vector<8x512xf32> to vector<8x128xf32>
    %212 = arith.negf %211 : vector<8x128xf32>
    %213 = math.exp %212 : vector<8x128xf32>
    %cst_70 = arith.constant 1.000000e+00 : f32
    %214 = vector.broadcast %cst_70 : f32 to vector<8x128xf32>
    %215 = arith.addf %214, %213 : vector<8x128xf32>
    %216 = arith.divf %214, %215 : vector<8x128xf32>
    %217 = arith.mulf %208, %184 : vector<8x128xf32>
    %218 = arith.mulf %202, %210 : vector<8x128xf32>
    %219 = arith.addf %217, %218 : vector<8x128xf32>
    %220 = math.tanh %219 : vector<8x128xf32>
    %221 = arith.mulf %216, %220 : vector<8x128xf32>
    %222 = arith.index_cast %190 : i32 to index
    %c0_71 = arith.constant 0 : index
    %223 = vector.load %arg10[%222, %c0_71] : memref<64x128xf32, #tpu.memory_space<vmem>>, vector<8x128xf32>
    tpu.vector_store %arg10[%222, %c0_71], %221 {strides = array<i32>} : memref<64x128xf32, #tpu.memory_space<vmem>>, vector<8x128xf32>,
    %c6_i32 = arith.constant 6 : i32
    %c8_i32_72 = arith.constant 8 : i32
    %224 = arith.muli %c6_i32, %c8_i32_72 : i32
    %225 = tpu.assume_multiple %224, 8 : i32
    %c0_73 = arith.constant 0 : index
    %c0_74 = arith.constant 0 : index
    %c0_75 = arith.constant 0 : index
    %226 = vector.load %arg4[%c0_73, %c0_74, %c0_75] : memref<1x128x512xf32, #tpu.memory_space<vmem>>, vector<1x128x512xf32>
    %227 = vector.shape_cast %226 : vector<1x128x512xf32> to vector<128x512xf32>
    %cst_76 = arith.constant dense<0.000000e+00> : vector<8x512xf32>
    %228 = tpu.matmul %221, %227, %cst_76 {dimension_numbers = #tpu.dot_dimension_numbers<[1], [0], [0], [1], [0, 0, 1, 1], [], []>} : vector<8x128xf32>, vector<128x512xf32>, vector<8x512xf32> -> vector<8x512xf32>
    %229 = arith.index_cast %225 : i32 to index
    %c0_77 = arith.constant 0 : index
    %230 = vector.load %arg9[%229, %c0_77] : memref<64x512xf32, #tpu.memory_space<vmem>>, vector<8x512xf32>
    %231 = arith.addf %230, %228 : vector<8x512xf32>
    %232 = vector.extract_strided_slice %231 {offsets = [0, 0], sizes = [8, 128], strides = [1, 1]} : vector<8x512xf32> to vector<8x128xf32>
    %233 = arith.negf %232 : vector<8x128xf32>
    %234 = math.exp %233 : vector<8x128xf32>
    %cst_78 = arith.constant 1.000000e+00 : f32
    %235 = vector.broadcast %cst_78 : f32 to vector<8x128xf32>
    %236 = arith.addf %235, %234 : vector<8x128xf32>
    %237 = arith.divf %235, %236 : vector<8x128xf32>
    %238 = vector.extract_strided_slice %231 {offsets = [0, 128], sizes = [8, 128], strides = [1, 1]} : vector<8x512xf32> to vector<8x128xf32>
    %239 = arith.negf %238 : vector<8x128xf32>
    %240 = math.exp %239 : vector<8x128xf32>
    %cst_79 = arith.constant 1.000000e+00 : f32
    %241 = vector.broadcast %cst_79 : f32 to vector<8x128xf32>
    %242 = arith.addf %241, %240 : vector<8x128xf32>
    %243 = arith.divf %241, %242 : vector<8x128xf32>
    %244 = vector.extract_strided_slice %231 {offsets = [0, 256], sizes = [8, 128], strides = [1, 1]} : vector<8x512xf32> to vector<8x128xf32>
    %245 = math.tanh %244 : vector<8x128xf32>
    %246 = vector.extract_strided_slice %231 {offsets = [0, 384], sizes = [8, 128], strides = [1, 1]} : vector<8x512xf32> to vector<8x128xf32>
    %247 = arith.negf %246 : vector<8x128xf32>
    %248 = math.exp %247 : vector<8x128xf32>
    %cst_80 = arith.constant 1.000000e+00 : f32
    %249 = vector.broadcast %cst_80 : f32 to vector<8x128xf32>
    %250 = arith.addf %249, %248 : vector<8x128xf32>
    %251 = arith.divf %249, %250 : vector<8x128xf32>
    %252 = arith.mulf %243, %219 : vector<8x128xf32>
    %253 = arith.mulf %237, %245 : vector<8x128xf32>
    %254 = arith.addf %252, %253 : vector<8x128xf32>
    %255 = math.tanh %254 : vector<8x128xf32>
    %256 = arith.mulf %251, %255 : vector<8x128xf32>
    %257 = arith.index_cast %225 : i32 to index
    %c0_81 = arith.constant 0 : index
    %258 = vector.load %arg10[%257, %c0_81] : memref<64x128xf32, #tpu.memory_space<vmem>>, vector<8x128xf32>
    tpu.vector_store %arg10[%257, %c0_81], %256 {strides = array<i32>} : memref<64x128xf32, #tpu.memory_space<vmem>>, vector<8x128xf32>,
    %c7_i32 = arith.constant 7 : i32
    %c8_i32_82 = arith.constant 8 : i32
    %259 = arith.muli %c7_i32, %c8_i32_82 : i32
    %260 = tpu.assume_multiple %259, 8 : i32
    %c0_83 = arith.constant 0 : index
    %c0_84 = arith.constant 0 : index
    %c0_85 = arith.constant 0 : index
    %261 = vector.load %arg4[%c0_83, %c0_84, %c0_85] : memref<1x128x512xf32, #tpu.memory_space<vmem>>, vector<1x128x512xf32>
    %262 = vector.shape_cast %261 : vector<1x128x512xf32> to vector<128x512xf32>
    %cst_86 = arith.constant dense<0.000000e+00> : vector<8x512xf32>
    %263 = tpu.matmul %256, %262, %cst_86 {dimension_numbers = #tpu.dot_dimension_numbers<[1], [0], [0], [1], [0, 0, 1, 1], [], []>} : vector<8x128xf32>, vector<128x512xf32>, vector<8x512xf32> -> vector<8x512xf32>
    %264 = arith.index_cast %260 : i32 to index
    %c0_87 = arith.constant 0 : index
    %265 = vector.load %arg9[%264, %c0_87] : memref<64x512xf32, #tpu.memory_space<vmem>>, vector<8x512xf32>
    %266 = arith.addf %265, %263 : vector<8x512xf32>
    %267 = vector.extract_strided_slice %266 {offsets = [0, 0], sizes = [8, 128], strides = [1, 1]} : vector<8x512xf32> to vector<8x128xf32>
    %268 = arith.negf %267 : vector<8x128xf32>
    %269 = math.exp %268 : vector<8x128xf32>
    %cst_88 = arith.constant 1.000000e+00 : f32
    %270 = vector.broadcast %cst_88 : f32 to vector<8x128xf32>
    %271 = arith.addf %270, %269 : vector<8x128xf32>
    %272 = arith.divf %270, %271 : vector<8x128xf32>
    %273 = vector.extract_strided_slice %266 {offsets = [0, 128], sizes = [8, 128], strides = [1, 1]} : vector<8x512xf32> to vector<8x128xf32>
    %274 = arith.negf %273 : vector<8x128xf32>
    %275 = math.exp %274 : vector<8x128xf32>
    %cst_89 = arith.constant 1.000000e+00 : f32
    %276 = vector.broadcast %cst_89 : f32 to vector<8x128xf32>
    %277 = arith.addf %276, %275 : vector<8x128xf32>
    %278 = arith.divf %276, %277 : vector<8x128xf32>
    %279 = vector.extract_strided_slice %266 {offsets = [0, 256], sizes = [8, 128], strides = [1, 1]} : vector<8x512xf32> to vector<8x128xf32>
    %280 = math.tanh %279 : vector<8x128xf32>
    %281 = vector.extract_strided_slice %266 {offsets = [0, 384], sizes = [8, 128], strides = [1, 1]} : vector<8x512xf32> to vector<8x128xf32>
    %282 = arith.negf %281 : vector<8x128xf32>
    %283 = math.exp %282 : vector<8x128xf32>
    %cst_90 = arith.constant 1.000000e+00 : f32
    %284 = vector.broadcast %cst_90 : f32 to vector<8x128xf32>
    %285 = arith.addf %284, %283 : vector<8x128xf32>
    %286 = arith.divf %284, %285 : vector<8x128xf32>
    %287 = arith.mulf %278, %254 : vector<8x128xf32>
    %288 = arith.mulf %272, %280 : vector<8x128xf32>
    %289 = arith.addf %287, %288 : vector<8x128xf32>
    %290 = math.tanh %289 : vector<8x128xf32>
    %291 = arith.mulf %286, %290 : vector<8x128xf32>
    %292 = arith.index_cast %260 : i32 to index
    %c0_91 = arith.constant 0 : index
    %293 = vector.load %arg10[%292, %c0_91] : memref<64x128xf32, #tpu.memory_space<vmem>>, vector<8x128xf32>
    tpu.vector_store %arg10[%292, %c0_91], %291 {strides = array<i32>} : memref<64x128xf32, #tpu.memory_space<vmem>>, vector<8x128xf32>,
    %c8_i32_92 = arith.constant 8 : i32
    %c1_i32_93 = arith.constant 1 : i32
    %294 = arith.cmpi eq, %arg1, %c1_i32_93 : i32
    %295 = arith.extui %294 : i1 to i32
    %c0_i32_94 = arith.constant 0 : i32
    %296 = arith.cmpi ne, %295, %c0_i32_94 : i32
    scf.if %296 {
      %c0_95 = arith.constant 0 : index
      %c0_96 = arith.constant 0 : index
      %297 = vector.load %arg10[%c0_95, %c0_96] : memref<64x128xf32, #tpu.memory_space<vmem>>, vector<64x128xf32>
      %c0_97 = arith.constant 0 : index
      %c0_98 = arith.constant 0 : index
      %298 = vector.load %arg6[%c0_97, %c0_98] : memref<128x128xf32, #tpu.memory_space<vmem>>, vector<128x128xf32>
      %cst_99 = arith.constant dense<0.000000e+00> : vector<64x128xf32>
      %299 = tpu.matmul %297, %298, %cst_99 {dimension_numbers = #tpu.dot_dimension_numbers<[1], [0], [0], [1], [0, 0, 1, 1], [], []>} : vector<64x128xf32>, vector<128x128xf32>, vector<64x128xf32> -> vector<64x128xf32>
      %c0_100 = arith.constant 0 : index
      %c0_101 = arith.constant 0 : index
      %300 = vector.load %arg7[%c0_100, %c0_101] : memref<1x128xf32, #tpu.memory_space<vmem>>, vector<1x128xf32>
      %301 = vector.broadcast %300 : vector<1x128xf32> to vector<64x128xf32>
      %302 = arith.addf %299, %301 : vector<64x128xf32>
      %cst_102 = arith.constant 0.000000e+00 : f32
      %303 = vector.broadcast %cst_102 : f32 to vector<64x128xf32>
      %304 = arith.maximumf %302, %303 : vector<64x128xf32>
      %c0_103 = arith.constant 0 : index
      %c0_104 = arith.constant 0 : index
      %c0_105 = arith.constant 0 : index
      %305 = vector.load %arg8[%c0_103, %c0_104, %c0_105] : memref<1x64x128xf32, #tpu.memory_space<vmem>>, vector<1x64x128xf32>
      %306 = vector.shape_cast %305 : vector<1x64x128xf32> to vector<64x128xf32>
      %307 = vector.shape_cast %304 : vector<64x128xf32> to vector<1x64x128xf32>
      tpu.vector_store %arg8[%c0_103, %c0_104, %c0_105], %307 {strides = array<i32>} : memref<1x64x128xf32, #tpu.memory_space<vmem>>, vector<1x64x128xf32>,
    } else {
    }
    return
  }
  func.func @transform_0(%arg0: i32, %arg1: i32) -> (i32, i32, i32) {
    %c0_i32 = arith.constant 0 : i32
    %c0_i32_0 = arith.constant 0 : i32
    %c0_i32_1 = arith.constant 0 : i32
    return %arg0, %c0_i32, %c0_i32_0 : i32, i32, i32
  }
  func.func @transform_1(%arg0: i32, %arg1: i32) -> (i32, i32, i32) {
    %c0_i32 = arith.constant 0 : i32
    %c0_i32_0 = arith.constant 0 : i32
    %c0_i32_1 = arith.constant 0 : i32
    return %arg1, %c0_i32, %c0_i32_0 : i32, i32, i32
  }
  func.func @transform_2(%arg0: i32, %arg1: i32) -> (i32, i32, i32) {
    %c0_i32 = arith.constant 0 : i32
    %c0_i32_0 = arith.constant 0 : i32
    %c0_i32_1 = arith.constant 0 : i32
    return %arg1, %c0_i32, %c0_i32_0 : i32, i32, i32
  }
  func.func @transform_3(%arg0: i32, %arg1: i32) -> (i32, i32, i32) {
    %c0_i32 = arith.constant 0 : i32
    %c0_i32_0 = arith.constant 0 : i32
    %c0_i32_1 = arith.constant 0 : i32
    return %arg1, %c0_i32, %c0_i32_0 : i32, i32, i32
  }
  func.func @transform_4(%arg0: i32, %arg1: i32) -> (i32, i32) {
    %c0_i32 = arith.constant 0 : i32
    %c0_i32_0 = arith.constant 0 : i32
    %c0_i32_1 = arith.constant 0 : i32
    return %c0_i32, %c0_i32_0 : i32, i32
  }
  func.func @transform_5(%arg0: i32, %arg1: i32) -> (i32, i32) {
    %c0_i32 = arith.constant 0 : i32
    %c0_i32_0 = arith.constant 0 : i32
    %c0_i32_1 = arith.constant 0 : i32
    return %c0_i32, %c0_i32_0 : i32, i32
  }
  func.func @transform_6(%arg0: i32, %arg1: i32) -> (i32, i32, i32) {
    %c0_i32 = arith.constant 0 : i32
    %c0_i32_0 = arith.constant 0 : i32
    %c0_i32_1 = arith.constant 0 : i32
    return %arg0, %c0_i32, %c0_i32_0 : i32, i32, i32
  }
}

</mosaic_0001>

<llo_original>
// kernel: tpu_custom_call.1
$region0: #{tpu_custom_call.1}
  #allocation0 [shape = 'u32[]', space=smem, size = 0x4, offset = 0x4, fixed_abs, tag = 'smem constant byte address 0x4 - core index']
  #allocation1 [shape = 'u32[72,128]{1,0:T(1,128)}', space=vmem, size = 0x9000, scoped, tag = 'internal scratch']
  #allocation2 [shape = 'f32[64,512]{1,0:T(8,128)}', space=vmem, size = 0x20000, scoped, tag = 'scratch operand']
  #allocation3 [shape = 'f32[64,128]{1,0:T(8,128)}', space=vmem, size = 0x8000, scoped, tag = 'scratch operand']
  %s0 = inlined_call_operand.hbm [shape: f32[1,64,128], index: 0, kind: input, shape index: {}]
  %s1 = inlined_call_operand.hbm [shape: f32[2,128,512], index: 1, kind: input, shape index: {}]
  %s2 = inlined_call_operand.hbm [shape: f32[2,128,512], index: 2, kind: input, shape index: {}]
  %s3 = inlined_call_operand.hbm [shape: f32[2,1,512], index: 3, kind: input, shape index: {}]
  %s4 = inlined_call_operand.hbm [shape: f32[128,128], index: 4, kind: input, shape index: {}]
  %s5 = inlined_call_operand.vmem [shape: f32[1,128], index: 5, kind: input, shape index: {}]
  %s6 = inlined_call_operand.hbm [shape: f32[1,64,128], index: 6, kind: output, shape index: {}]
  %s7 = sld [smem:[#allocation0]]
  $region85: #{tpu_custom_call.1} parent=0
    _
  %s9 = ssub.s32 1, %s7
  %s10 = scalar_select 0, %s9, %s7
  $region1: #{tpu_custom_call.1} parent=0
    #allocation4 [shape = 'u8[32768]{0}', space=vmem, size = 0x8000, scoped, tag = 'input window, operand 0, single buffered']
    #allocation5 [shape = 's32[2]{0}', space=sflag, size = 0x8, scoped, tag = 'scoped memory for tpu_custom_call.1']
    #allocation6 [shape = 's32[2]{0}', space=sflag, size = 0x8, scoped, tag = 'scoped memory for tpu_custom_call.1']
    #allocation7 [shape = 'u8[524288]{0}', space=vmem, size = 0x80000, scoped, tag = 'input window, operand 1']
    #allocation8 [shape = 's32[2]{0}', space=sflag, size = 0x8, scoped, tag = 'scoped memory for tpu_custom_call.1']
    #allocation9 [shape = 'u8[524288]{0}', space=vmem, size = 0x80000, scoped, tag = 'input window, operand 2']
    #allocation10 [shape = 'u8[4096]{0}', space=vmem, size = 0x1000, scoped, tag = 'input window, operand 3']
    #allocation11 [shape = 's32[2]{0}', space=sflag, size = 0x8, scoped, tag = 'scoped memory for tpu_custom_call.1']
    #allocation12 [shape = 'u8[65536]{0}', space=vmem, size = 0x10000, scoped, tag = 'input window, operand 4, single buffered']
    #allocation13 [shape = 'u8[32768]{0}', space=vmem, size = 0x8000, scoped, tag = 'output window, operand 0, single buffered']
    %11 = vsyncpa [#allocation5], 0
    %12 = vsyncpa [#allocation8], 0
    %s13 = scalar_lea.sflag [#allocation8], 1
    %14 = vsyncpa %s13, 0
    %15 = vsyncpa [#allocation11], 0
    %s16 = scalar_lea.sflag [#allocation11], 1
    %17 = vsyncpa %s16, 0
    %18 = vsyncpa [#allocation6], 0
    loop: start=0, step=1, limit=4
    $region2: #{tpu_custom_call.1} parent=1 // loop_pre_header
      _
    $region3: #{tpu_custom_call.1} parent=1 // loop_header
      %s20 = sphi 0, %s24
      %p21 = scmp.ge.s32.totalorder %s20, 4
      %s27 = sphi 0, %s39
      %s28 = sphi 0, %s35
      %s29 = sphi 0, %s27
      %s30 = sphi 0, %s28
      %s31 = sphi 0, %s29
      %s32 = sphi 0, %s30
      %s42 = sphi 0, %s44
      %s45 = sphi 0, %s42
      %s46 = sphi 0, %s45
      %s62 = sphi 0, %s46
      %s68 = sphi 0, %s70
      %s71 = sphi 0, %s68
      %s72 = sphi 0, %s71
      %s88 = sphi 0, %s72
      %s94 = sphi 0, %s96
      %s97 = sphi 0, %s94
      %s98 = sphi 0, %s97
      %s114 = sphi 0, %s98
      %s120 = sphi 0, %s122
      %s123 = sphi 0, %s120
      %s124 = sphi 0, %s123
      %s140 = sphi 0, %s124
      %s144 = sphi 0, %s144
      %s146 = sphi 0, %s144
      %s147 = sphi 0, %s146
      %s161 = sphi 0, %s147
      %s165 = sphi 0, %s165
      %s167 = sphi 0, %s165
      %s168 = sphi 0, %s167
      %s182 = sphi 0, %s168
      %s188 = sphi 0, %s190
      %s191 = sphi 0, %s188
      %s192 = sphi 0, %s191
      %s208 = sphi 0, %s192
    $region4: #{tpu_custom_call.1} parent=1 // loop_header_branch
      %23 = sbr.rel (%p21) target = $region8
    $region5: #{tpu_custom_call.1} parent=1 // loop_body
      %s25 = ssub.s32 %s20, 1
      %s26 = ssub.s32 %s20, 2
      %s33 = sadd.s32 1, %s28
      %p34 = scmp.ge.s32.totalorder %s33, 2
      %s35 = scalar_select %p34, 0, %s33
      %s36 = sadd.s32 1, %s27
      %s37 = scalar_select %p34, %s36, %s27
      %p38 = scmp.ge.s32.totalorder %s37, 1
      %s39 = scalar_select %p38, 0, %s37
      %s40 = ssub.s32 %s27, %s39
      %p41 = scmp.eq.s32.totalorder %s40, 0
      %s43 = sadd.s32 %s42, 1
      %s44 = scalar_select %p41, %s42, %s43
      %p47 = pneg %p41
      %p48 = scmp.eq.s32.totalorder %s20, 1
      %p49 = por %p47, %p48
      %p50 = scmp.ne.s32.totalorder %s42, %s45
      %p51 = scmp.eq.s32.totalorder %s20, 0
      %p52 = por %p50, %p51
      %p53 = scmp.ne.s32.totalorder %s42, %s45
      %p54 = scmp.eq.s32.totalorder %s25, 1
      %p55 = por %p53, %p54
      %p56 = scmp.ne.s32.totalorder %s45, %s46
      %p57 = scmp.eq.s32.totalorder %s25, 0
      %p58 = por %p56, %p57
      %p59 = scmp.ne.s32.totalorder %s45, %s46
      %p60 = scmp.eq.s32.totalorder %s26, 1
      %p61 = por %p59, %p60
      %p63 = scmp.ne.s32.totalorder %s46, %s62
      %p64 = scmp.eq.s32.totalorder %s26, 0
      %p65 = por %p63, %p64
      %s66 = ssub.s32 %s28, %s35
      %p67 = scmp.eq.s32.totalorder %s66, 0
      %s69 = sadd.s32 %s68, 1
      %s70 = scalar_select %p67, %s68, %s69
      %p73 = pneg %p67
      %p74 = scmp.eq.s32.totalorder %s20, 1
      %p75 = por %p73, %p74
      %p76 = scmp.ne.s32.totalorder %s68, %s71
      %p77 = scmp.eq.s32.totalorder %s20, 0
      %p78 = por %p76, %p77
      %p79 = scmp.ne.s32.totalorder %s68, %s71
      %p80 = scmp.eq.s32.totalorder %s25, 1
      %p81 = por %p79, %p80
      %p82 = scmp.ne.s32.totalorder %s71, %s72
      %p83 = scmp.eq.s32.totalorder %s25, 0
      %p84 = por %p82, %p83
      %p85 = scmp.ne.s32.totalorder %s71, %s72
      %p86 = scmp.eq.s32.totalorder %s26, 1
      %p87 = por %p85, %p86
      %p89 = scmp.ne.s32.totalorder %s72, %s88
      %p90 = scmp.eq.s32.totalorder %s26, 0
      %p91 = por %p89, %p90
      %s92 = ssub.s32 %s28, %s35
      %p93 = scmp.eq.s32.totalorder %s92, 0
      %s95 = sadd.s32 %s94, 1
      %s96 = scalar_select %p93, %s94, %s95
      %p99 = pneg %p93
      %p100 = scmp.eq.s32.totalorder %s20, 1
      %p101 = por %p99, %p100
      %p102 = scmp.ne.s32.totalorder %s94, %s97
      %p103 = scmp.eq.s32.totalorder %s20, 0
      %p104 = por %p102, %p103
      %p105 = scmp.ne.s32.totalorder %s94, %s97
      %p106 = scmp.eq.s32.totalorder %s25, 1
      %p107 = por %p105, %p106
      %p108 = scmp.ne.s32.totalorder %s97, %s98
      %p109 = scmp.eq.s32.totalorder %s25, 0
      %p110 = por %p108, %p109
      %p111 = scmp.ne.s32.totalorder %s97, %s98
      %p112 = scmp.eq.s32.totalorder %s26, 1
      %p113 = por %p111, %p112
      %p115 = scmp.ne.s32.totalorder %s98, %s114
      %p116 = scmp.eq.s32.totalorder %s26, 0
      %p117 = por %p115, %p116
      %s118 = ssub.s32 %s28, %s35
      %p119 = scmp.eq.s32.totalorder %s118, 0
      %s121 = sadd.s32 %s120, 1
      %s122 = scalar_select %p119, %s120, %s121
      %p125 = pneg %p119
      %p126 = scmp.eq.s32.totalorder %s20, 1
      %p127 = por %p125, %p126
      %p128 = scmp.ne.s32.totalorder %s120, %s123
      %p129 = scmp.eq.s32.totalorder %s20, 0
      %p130 = por %p128, %p129
      %p131 = scmp.ne.s32.totalorder %s120, %s123
      %p132 = scmp.eq.s32.totalorder %s25, 1
      %p133 = por %p131, %p132
      %p134 = scmp.ne.s32.totalorder %s123, %s124
      %p135 = scmp.eq.s32.totalorder %s25, 0
      %p136 = por %p134, %p135
      %p137 = scmp.ne.s32.totalorder %s123, %s124
      %p138 = scmp.eq.s32.totalorder %s26, 1
      %p139 = por %p137, %p138
      %p141 = scmp.ne.s32.totalorder %s124, %s140
      %p142 = scmp.eq.s32.totalorder %s26, 0
      %p143 = por %p141, %p142
      %s145 = sadd.s32 %s144, 1
      %p148 = scmp.eq.s32.totalorder %s20, 1
      %p149 = scmp.ne.s32.totalorder %s144, %s146
      %p150 = scmp.eq.s32.totalorder %s20, 0
      %p151 = por %p149, %p150
      %p152 = scmp.ne.s32.totalorder %s144, %s146
      %p153 = scmp.eq.s32.totalorder %s25, 1
      %p154 = por %p152, %p153
      %p155 = scmp.ne.s32.totalorder %s146, %s147
      %p156 = scmp.eq.s32.totalorder %s25, 0
      %p157 = por %p155, %p156
      %p158 = scmp.ne.s32.totalorder %s146, %s147
      %p159 = scmp.eq.s32.totalorder %s26, 1
      %p160 = por %p158, %p159
      %p162 = scmp.ne.s32.totalorder %s147, %s161
      %p163 = scmp.eq.s32.totalorder %s26, 0
      %p164 = por %p162, %p163
      %s166 = sadd.s32 %s165, 1
      %p169 = scmp.eq.s32.totalorder %s20, 1
      %p170 = scmp.ne.s32.totalorder %s165, %s167
      %p171 = scmp.eq.s32.totalorder %s20, 0
      %p172 = por %p170, %p171
      %p173 = scmp.ne.s32.totalorder %s165, %s167
      %p174 = scmp.eq.s32.totalorder %s25, 1
      %p175 = por %p173, %p174
      %p176 = scmp.ne.s32.totalorder %s167, %s168
      %p177 = scmp.eq.s32.totalorder %s25, 0
      %p178 = por %p176, %p177
      %p179 = scmp.ne.s32.totalorder %s167, %s168
      %p180 = scmp.eq.s32.totalorder %s26, 1
      %p181 = por %p179, %p180
      %p183 = scmp.ne.s32.totalorder %s168, %s182
      %p184 = scmp.eq.s32.totalorder %s26, 0
      %p185 = por %p183, %p184
      %s186 = ssub.s32 %s27, %s39
      %p187 = scmp.eq.s32.totalorder %s186, 0
      %s189 = sadd.s32 %s188, 1
      %s190 = scalar_select %p187, %s188, %s189
      %p193 = pneg %p187
      %p194 = scmp.eq.s32.totalorder %s20, 1
      %p195 = por %p193, %p194
      %p196 = scmp.ne.s32.totalorder %s188, %s191
      %p197 = scmp.eq.s32.totalorder %s20, 0
      %p198 = por %p196, %p197
      %p199 = scmp.ne.s32.totalorder %s188, %s191
      %p200 = scmp.eq.s32.totalorder %s25, 1
      %p201 = por %p199, %p200
      %p202 = scmp.ne.s32.totalorder %s191, %s192
      %p203 = scmp.eq.s32.totalorder %s25, 0
      %p204 = por %p202, %p203
      %p205 = scmp.ne.s32.totalorder %s191, %s192
      %p206 = scmp.eq.s32.totalorder %s26, 1
      %p207 = por %p205, %p206
      %p209 = scmp.ne.s32.totalorder %s192, %s208
      %p210 = scmp.eq.s32.totalorder %s26, 0
      %p211 = por %p209, %p210
      %p212 = scmp.le.s32.totalorder 1, %s20
      %p213 = scmp.lt.s32.totalorder %s20, 3
      %p214 = pnand %p212, %p213
      %p215 = pneg %p214
      // Predicated region
      $region9: #{tpu_custom_call.1} parent=5 // pred_check
        _
      $region10: #{tpu_custom_call.1} parent=5 // pred_check_branch
        %217 = sbr.rel (%p214) target = $region12
      $region11: #{tpu_custom_call.1} parent=5 // pred_region
        %s218 = ssub.s32 %s20, 1
        // Predicated region
        $region13: #{tpu_custom_call.1} parent=11 // pred_check
          %p219 = pneg %p58
        $region14: #{tpu_custom_call.1} parent=11 // pred_check_branch
          %221 = sbr.rel (%p219) target = $region16
        $region15: #{tpu_custom_call.1} parent=11 // pred_region
          %223 = vsyncadd [#allocation5], 0
          %s224 = smul.addr %s29, 8
          %s225 = smul.addr %s224, 8
          %s226 = scalar_lea.hbm %s0, %s225
          %s227 = sshll.u32 %s226, 4
          %s228 = int_to_ptr.hbm [resolvable:$true] %s227
          %s229 = sshll.u32 [#allocation4], 4
          %s230 = int_to_ptr.vmem [resolvable:$true] %s229
          %235 = dma.hbm_to_vmem [thread:$0]  %s228, 1024, %s230, [#allocation5], 128, 128, 8
        $region16: #{tpu_custom_call.1} parent=11 // pred_fallthru
          _
        // Predicated region
        $region17: #{tpu_custom_call.1} parent=11 // pred_check
          %p236 = pneg %p157
        $region18: #{tpu_custom_call.1} parent=11 // pred_check_branch
          %238 = sbr.rel (%p236) target = $region20
        $region19: #{tpu_custom_call.1} parent=11 // pred_region
          %240 = vsyncadd [#allocation11], 0
          %s241 = sshll.u32 %s4, 4
          %s242 = int_to_ptr.hbm [resolvable:$true] %s241
          %s243 = sshll.u32 [#allocation12], 4
          %s244 = int_to_ptr.vmem [resolvable:$true] %s243
          %249 = dma.hbm_to_vmem [thread:$0]  %s242, 2048, %s244, [#allocation11], 128, 128, 8
        $region20: #{tpu_custom_call.1} parent=11 // pred_fallthru
          _
        // Predicated region
        $region21: #{tpu_custom_call.1} parent=11 // pred_check
          %p250 = pneg %p178
        $region22: #{tpu_custom_call.1} parent=11 // pred_check_branch
          %252 = sbr.rel (%p250) target = $region24
        $region23: #{tpu_custom_call.1} parent=11 // pred_region
          _
        $region24: #{tpu_custom_call.1} parent=11 // pred_fallthru
          _
      $region12: #{tpu_custom_call.1} parent=5 // pred_fallthru
        _
      %p253 = scmp.lt.s32.totalorder %s20, 2
      // Predicated region
      $region25: #{tpu_custom_call.1} parent=5 // pred_check
        %p254 = pneg %p253
      $region26: #{tpu_custom_call.1} parent=5 // pred_check_branch
        %256 = sbr.rel (%p254) target = $region28
      $region27: #{tpu_custom_call.1} parent=5 // pred_region
        // Predicated region
        $region29: #{tpu_custom_call.1} parent=27 // pred_check
          %p257 = pneg %p78
        $region30: #{tpu_custom_call.1} parent=27 // pred_check_branch
          %259 = sbr.rel (%p257) target = $region32
        $region31: #{tpu_custom_call.1} parent=27 // pred_region
          %s260 = sand.u32 %s20, 1
          %s261 = scalar_lea.sflag [#allocation8], %s260
          %s262 = sand.u32 %s68, 1
          %s263 = smul.addr %s262, 512
          %s264 = scalar_lea.vmem [#allocation7], %s263
          %266 = vsyncadd %s261, 0
          %s267 = smul.addr %s28, 64
          %s268 = smul.addr %s267, 8
          %s269 = scalar_lea.hbm %s1, %s268
          %s270 = sshll.u32 %s269, 4
          %s271 = int_to_ptr.hbm [resolvable:$true] %s270
          %s272 = sshll.u32 %s264, 4
          %s273 = int_to_ptr.vmem [resolvable:$true] %s272
          %278 = dma.hbm_to_vmem [thread:$0]  %s271, 8192, %s273, %s261, 512, 512, 32
        $region32: #{tpu_custom_call.1} parent=27 // pred_fallthru
          _
        // Predicated region
        $region33: #{tpu_custom_call.1} parent=27 // pred_check
          %p279 = pneg %p104
        $region34: #{tpu_custom_call.1} parent=27 // pred_check_branch
          %281 = sbr.rel (%p279) target = $region36
        $region35: #{tpu_custom_call.1} parent=27 // pred_region
          %s282 = sand.u32 %s20, 1
          %s283 = scalar_lea.sflag [#allocation8], %s282
          %s284 = sand.u32 %s94, 1
          %s285 = smul.addr %s284, 512
          %s286 = scalar_lea.vmem [#allocation9], %s285
          %288 = vsyncadd %s283, 0
          %s289 = smul.addr %s28, 64
          %s290 = smul.addr %s289, 8
          %s291 = scalar_lea.hbm %s2, %s290
          %s292 = sshll.u32 %s291, 4
          %s293 = int_to_ptr.hbm [resolvable:$true] %s292
          %s294 = sshll.u32 %s286, 4
          %s295 = int_to_ptr.vmem [resolvable:$true] %s294
          %300 = dma.hbm_to_vmem [thread:$0]  %s293, 8192, %s295, %s283, 512, 512, 32
        $region36: #{tpu_custom_call.1} parent=27 // pred_fallthru
          _
        // Predicated region
        $region37: #{tpu_custom_call.1} parent=27 // pred_check
          %p301 = pneg %p130
        $region38: #{tpu_custom_call.1} parent=27 // pred_check_branch
          %303 = sbr.rel (%p301) target = $region40
        $region39: #{tpu_custom_call.1} parent=27 // pred_region
          %s304 = sand.u32 %s20, 1
          %s305 = scalar_lea.sflag [#allocation11], %s304
          %s306 = sand.u32 %s120, 1
          %s307 = smul.addr %s306, 4
          %s308 = scalar_lea.vmem [#allocation10], %s307
          %310 = vsyncadd %s305, 0
          %s311 = smul.addr %s28, 4
          %s312 = scalar_lea.hbm %s3, %s311
          %s314 = sshll.u32 %s312, 4
          %s315 = int_to_ptr.hbm [resolvable:$true] %s314
          %s316 = sshll.u32 %s308, 4
          %s317 = int_to_ptr.vmem [resolvable:$true] %s316
          %319 = dma.hbm_to_vmem [thread:$0]  %s315, 64, %s317, %s305
        $region40: #{tpu_custom_call.1} parent=27 // pred_fallthru
          _
      $region28: #{tpu_custom_call.1} parent=5 // pred_fallthru
        _
      %p320 = scmp.le.s32.totalorder 1, %s20
      %p321 = scmp.lt.s32.totalorder %s20, 3
      %p322 = pnand %p320, %p321
      %p323 = pneg %p322
      // Predicated region
      $region41: #{tpu_custom_call.1} parent=5 // pred_check
        _
      $region42: #{tpu_custom_call.1} parent=5 // pred_check_branch
        %325 = sbr.rel (%p322) target = $region44
      $region43: #{tpu_custom_call.1} parent=5 // pred_region
        %s326 = ssub.s32 %s20, 1
        // Predicated region
        $region45: #{tpu_custom_call.1} parent=43 // pred_check
          %p327 = pneg %p58
        $region46: #{tpu_custom_call.1} parent=43 // pred_check_branch
          %329 = sbr.rel (%p327) target = $region48
        $region47: #{tpu_custom_call.1} parent=43 // pred_region
          %331 = dma.done [#allocation5], 1024
        $region48: #{tpu_custom_call.1} parent=43 // pred_fallthru
          _
        %s332 = sand.u32 %s25, 1
        %s333 = scalar_lea.sflag [#allocation8], %s332
        %s334 = sand.u32 %s71, 1
        %s335 = smul.addr %s334, 512
        %s336 = scalar_lea.vmem [#allocation7], %s335
        // Predicated region
        $region49: #{tpu_custom_call.1} parent=43 // pred_check
          %p337 = pneg %p84
        $region50: #{tpu_custom_call.1} parent=43 // pred_check_branch
          %339 = sbr.rel (%p337) target = $region52
        $region51: #{tpu_custom_call.1} parent=43 // pred_region
          %341 = dma.done %s333, 8192
        $region52: #{tpu_custom_call.1} parent=43 // pred_fallthru
          _
        %s342 = sand.u32 %s25, 1
        %s343 = scalar_lea.sflag [#allocation8], %s342
        %s344 = sand.u32 %s97, 1
        %s345 = smul.addr %s344, 512
        %s346 = scalar_lea.vmem [#allocation9], %s345
        // Predicated region
        $region53: #{tpu_custom_call.1} parent=43 // pred_check
          %p347 = pneg %p110
        $region54: #{tpu_custom_call.1} parent=43 // pred_check_branch
          %349 = sbr.rel (%p347) target = $region56
        $region55: #{tpu_custom_call.1} parent=43 // pred_region
          %351 = dma.done %s343, 8192
        $region56: #{tpu_custom_call.1} parent=43 // pred_fallthru
          _
        %s352 = sand.u32 %s25, 1
        %s353 = scalar_lea.sflag [#allocation11], %s352
        %s354 = sand.u32 %s123, 1
        %s355 = smul.addr %s354, 4
        %s356 = scalar_lea.vmem [#allocation10], %s355
        // Predicated region
        $region57: #{tpu_custom_call.1} parent=43 // pred_check
          %p357 = pneg %p136
        $region58: #{tpu_custom_call.1} parent=43 // pred_check_branch
          %359 = sbr.rel (%p357) target = $region60
        $region59: #{tpu_custom_call.1} parent=43 // pred_region
          %361 = dma.done %s353, 64
        $region60: #{tpu_custom_call.1} parent=43 // pred_fallthru
          _
        // Predicated region
        $region61: #{tpu_custom_call.1} parent=43 // pred_check
          %p362 = pneg %p157
        $region62: #{tpu_custom_call.1} parent=43 // pred_check_branch
          %364 = sbr.rel (%p362) target = $region64
        $region63: #{tpu_custom_call.1} parent=43 // pred_region
          %366 = dma.done [#allocation11], 2048
        $region64: #{tpu_custom_call.1} parent=43 // pred_fallthru
          _
        %p367 = pneg %p58
        %p368 = pneg %p55
        %s369 = sand.u32 %s25, 1
        %s370 = scalar_lea.sflag [#allocation8], %s369
        %s371 = sand.u32 %s71, 1
        %s372 = smul.addr %s371, 512
        %s373 = scalar_lea.vmem [#allocation7], %s372
        %p374 = pneg %p84
        %p375 = pneg %p81
        %s376 = sand.u32 %s25, 1
        %s377 = scalar_lea.sflag [#allocation8], %s376
        %s378 = sand.u32 %s97, 1
        %s379 = smul.addr %s378, 512
        %s380 = scalar_lea.vmem [#allocation9], %s379
        %p381 = pneg %p110
        %p382 = pneg %p107
        %s383 = sand.u32 %s25, 1
        %s384 = scalar_lea.sflag [#allocation11], %s383
        %s385 = sand.u32 %s123, 1
        %s386 = smul.addr %s385, 4
        %s387 = scalar_lea.vmem [#allocation10], %s386
        %p388 = pneg %p136
        %p389 = pneg %p133
        %p390 = pneg %p157
        %p391 = pneg %p154
        %p392 = pneg %p178
        %p393 = pneg %p175
        %p394 = pneg %p204
        %p395 = pneg %p201
        %p396 = scmp.eq.s32.totalorder %s30, 0
        // Predicated region
        $region65: #{tpu_custom_call.1} parent=43 // pred_check
          %p397 = pneg %p396
        $region66: #{tpu_custom_call.1} parent=43 // pred_check_branch
          %399 = sbr.rel (%p397) target = $region68
        $region67: #{tpu_custom_call.1} parent=43 // pred_region
          %v400 = vld [vmem:[#allocation4] sm:$0xff]
          %v401 = vld [vmem:[#allocation4 + $0x8] sm:$0xff]
          %v402 = vld [vmem:[#allocation4 + $0x10] sm:$0xff]
          %v403 = vld [vmem:[#allocation4 + $0x18] sm:$0xff]
          %v404 = vld [vmem:[#allocation4 + $0x20] sm:$0xff]
          %v405 = vld [vmem:[#allocation4 + $0x28] sm:$0xff]
          %v406 = vld [vmem:[#allocation4 + $0x30] sm:$0xff]
          %v407 = vld [vmem:[#allocation4 + $0x38] sm:$0xff]
          %408 = vst [vmem:[#allocation3] sm:$0xff] %v400
          %409 = vst [vmem:[#allocation3 + $0x8] sm:$0xff] %v401
          %410 = vst [vmem:[#allocation3 + $0x10] sm:$0xff] %v402
          %411 = vst [vmem:[#allocation3 + $0x18] sm:$0xff] %v403
          %412 = vst [vmem:[#allocation3 + $0x20] sm:$0xff] %v404
          %413 = vst [vmem:[#allocation3 + $0x28] sm:$0xff] %v405
          %414 = vst [vmem:[#allocation3 + $0x30] sm:$0xff] %v406
          %415 = vst [vmem:[#allocation3 + $0x38] sm:$0xff] %v407
        $region68: #{tpu_custom_call.1} parent=43 // pred_fallthru
          _
        %v416 = vld [vmem:[#allocation3] sm:$0xff]
        %v417 = vld [vmem:[#allocation3 + $0x8] sm:$0xff]
        %v418 = vld [vmem:[#allocation3 + $0x10] sm:$0xff]
        %v419 = vld [vmem:[#allocation3 + $0x18] sm:$0xff]
        %v420 = vld [vmem:[#allocation3 + $0x20] sm:$0xff]
        %v421 = vld [vmem:[#allocation3 + $0x28] sm:$0xff]
        %v422 = vld [vmem:[#allocation3 + $0x30] sm:$0xff]
        %v423 = vld [vmem:[#allocation3 + $0x38] sm:$0xff]
        %v424 = vld [vmem:[%s336] sm:$0xff]
        %v425 = vld [vmem:[%s336 + $0x8] sm:$0xff]
        %v426 = vld [vmem:[%s336 + $0x10] sm:$0xff]
        %v427 = vld [vmem:[%s336 + $0x18] sm:$0xff]
        %v428 = vld [vmem:[%s336 + $0x20] sm:$0xff]
        %v429 = vld [vmem:[%s336 + $0x28] sm:$0xff]
        %v430 = vld [vmem:[%s336 + $0x30] sm:$0xff]
        %v431 = vld [vmem:[%s336 + $0x38] sm:$0xff]
        %v432 = vld [vmem:[%s336 + $0x40] sm:$0xff]
        %v433 = vld [vmem:[%s336 + $0x48] sm:$0xff]
        %v434 = vld [vmem:[%s336 + $0x50] sm:$0xff]
        %v435 = vld [vmem:[%s336 + $0x58] sm:$0xff]
        %v436 = vld [vmem:[%s336 + $0x60] sm:$0xff]
        %v437 = vld [vmem:[%s336 + $0x68] sm:$0xff]
        %v438 = vld [vmem:[%s336 + $0x70] sm:$0xff]
        %v439 = vld [vmem:[%s336 + $0x78] sm:$0xff]
        %v440 = vld [vmem:[%s336 + $0x80] sm:$0xff]
        %v441 = vld [vmem:[%s336 + $0x88] sm:$0xff]
        %v442 = vld [vmem:[%s336 + $0x90] sm:$0xff]
        %v443 = vld [vmem:[%s336 + $0x98] sm:$0xff]
        %v444 = vld [vmem:[%s336 + $0xa0] sm:$0xff]
        %v445 = vld [vmem:[%s336 + $0xa8] sm:$0xff]
        %v446 = vld [vmem:[%s336 + $0xb0] sm:$0xff]
        %v447 = vld [vmem:[%s336 + $0xb8] sm:$0xff]
        %v448 = vld [vmem:[%s336 + $0xc0] sm:$0xff]
        %v449 = vld [vmem:[%s336 + $0xc8] sm:$0xff]
        %v450 = vld [vmem:[%s336 + $0xd0] sm:$0xff]
        %v451 = vld [vmem:[%s336 + $0xd8] sm:$0xff]
        %v452 = vld [vmem:[%s336 + $0xe0] sm:$0xff]
        %v453 = vld [vmem:[%s336 + $0xe8] sm:$0xff]
        %v454 = vld [vmem:[%s336 + $0xf0] sm:$0xff]
        %v455 = vld [vmem:[%s336 + $0xf8] sm:$0xff]
        %v456 = vld [vmem:[%s336 + $0x100] sm:$0xff]
        %v457 = vld [vmem:[%s336 + $0x108] sm:$0xff]
        %v458 = vld [vmem:[%s336 + $0x110] sm:$0xff]
        %v459 = vld [vmem:[%s336 + $0x118] sm:$0xff]
        %v460 = vld [vmem:[%s336 + $0x120] sm:$0xff]
        %v461 = vld [vmem:[%s336 + $0x128] sm:$0xff]
        %v462 = vld [vmem:[%s336 + $0x130] sm:$0xff]
        %v463 = vld [vmem:[%s336 + $0x138] sm:$0xff]
        %v464 = vld [vmem:[%s336 + $0x140] sm:$0xff]
        %v465 = vld [vmem:[%s336 + $0x148] sm:$0xff]
        %v466 = vld [vmem:[%s336 + $0x150] sm:$0xff]
        %v467 = vld [vmem:[%s336 + $0x158] sm:$0xff]
        %v468 = vld [vmem:[%s336 + $0x160] sm:$0xff]
        %v469 = vld [vmem:[%s336 + $0x168] sm:$0xff]
        %v470 = vld [vmem:[%s336 + $0x170] sm:$0xff]
        %v471 = vld [vmem:[%s336 + $0x178] sm:$0xff]
        %v472 = vld [vmem:[%s336 + $0x180] sm:$0xff]
        %v473 = vld [vmem:[%s336 + $0x188] sm:$0xff]
        %v474 = vld [vmem:[%s336 + $0x190] sm:$0xff]
        %v475 = vld [vmem:[%s336 + $0x198] sm:$0xff]
        %v476 = vld [vmem:[%s336 + $0x1a0] sm:$0xff]
        %v477 = vld [vmem:[%s336 + $0x1a8] sm:$0xff]
        %v478 = vld [vmem:[%s336 + $0x1b0] sm:$0xff]
        %v479 = vld [vmem:[%s336 + $0x1b8] sm:$0xff]
        %v480 = vld [vmem:[%s336 + $0x1c0] sm:$0xff]
        %v481 = vld [vmem:[%s336 + $0x1c8] sm:$0xff]
        %v482 = vld [vmem:[%s336 + $0x1d0] sm:$0xff]
        %v483 = vld [vmem:[%s336 + $0x1d8] sm:$0xff]
        %v484 = vld [vmem:[%s336 + $0x1e0] sm:$0xff]
        %v485 = vld [vmem:[%s336 + $0x1e8] sm:$0xff]
        %v486 = vld [vmem:[%s336 + $0x1f0] sm:$0xff]
        %v487 = vld [vmem:[%s336 + $0x1f8] sm:$0xff]
        %v488 = vld [vmem:[%s356] sm:$0xf]
        %v490 = vperm.slane %v488, 0
        %v491 = vperm.slane %v488, 1
        %v492 = vperm.slane %v488, 2
        %v493 = vperm.slane %v488, 3
        %498 = vmatpush.msra.mxu0 %v484
        %499 = vmatpush.msra.mxu0 %v480
        %500 = vmatpush.msra.mxu0 %v476
        %501 = vmatpush.msra.mxu0 %v472
        %502 = vmatpush.msra.mxu0 %v468
        %503 = vmatpush.msra.mxu0 %v464
        %504 = vmatpush.msra.mxu0 %v460
        %505 = vmatpush.msra.mxu0 %v456
        %506 = vmatpush.msra.mxu0 %v452
        %507 = vmatpush.msra.mxu0 %v448
        %508 = vmatpush.msra.mxu0 %v444
        %509 = vmatpush.msra.mxu0 %v440
        %510 = vmatpush.msra.mxu0 %v436
        %511 = vmatpush.msra.mxu0 %v432
        %512 = vmatpush.msra.mxu0 %v428
        %513 = vmatpush.msra.mxu0 %v424
        %514 = vmatmul.f32.gmra.mxu0 %v416
        %v515 = vpop.f32.mrf.mxu0
        %v516 = vadd.f32 %v490, %v515
        %517 = vmatmul.f32.gmra.mxu0 %v417
        %v518 = vpop.f32.mrf.mxu0
        %v519 = vadd.f32 %v490, %v518
        %520 = vmatmul.f32.gmra.mxu0 %v418
        %v521 = vpop.f32.mrf.mxu0
        %v522 = vadd.f32 %v490, %v521
        %523 = vmatmul.f32.gmra.mxu0 %v419
        %v524 = vpop.f32.mrf.mxu0
        %v525 = vadd.f32 %v490, %v524
        %526 = vmatmul.f32.gmra.mxu0 %v420
        %v527 = vpop.f32.mrf.mxu0
        %v528 = vadd.f32 %v490, %v527
        %529 = vmatmul.f32.gmra.mxu0 %v421
        %v530 = vpop.f32.mrf.mxu0
        %v531 = vadd.f32 %v490, %v530
        %532 = vmatmul.f32.gmra.mxu0 %v422
        %v533 = vpop.f32.mrf.mxu0
        %v534 = vadd.f32 %v490, %v533
        %535 = vmatmul.f32.gmra.mxu0 %v423
        %v536 = vpop.f32.mrf.mxu0
        %v537 = vadd.f32 %v490, %v536
        %538 = vdwg.mxu0
        %539 = vmatpush.msra.mxu0 %v485
        %540 = vmatpush.msra.mxu0 %v481
        %541 = vmatpush.msra.mxu0 %v477
        %542 = vmatpush.msra.mxu0 %v473
        %543 = vmatpush.msra.mxu0 %v469
        %544 = vmatpush.msra.mxu0 %v465
        %545 = vmatpush.msra.mxu0 %v461
        %546 = vmatpush.msra.mxu0 %v457
        %547 = vmatpush.msra.mxu0 %v453
        %548 = vmatpush.msra.mxu0 %v449
        %549 = vmatpush.msra.mxu0 %v445
        %550 = vmatpush.msra.mxu0 %v441
        %551 = vmatpush.msra.mxu0 %v437
        %552 = vmatpush.msra.mxu0 %v433
        %553 = vmatpush.msra.mxu0 %v429
        %554 = vmatpush.msra.mxu0 %v425
        %555 = vmatmul.f32.gmra.mxu0 %v416
        %v556 = vpop.f32.mrf.mxu0
        %v557 = vadd.f32 %v491, %v556
        %558 = vmatmul.f32.gmra.mxu0 %v417
        %v559 = vpop.f32.mrf.mxu0
        %v560 = vadd.f32 %v491, %v559
        %561 = vmatmul.f32.gmra.mxu0 %v418
        %v562 = vpop.f32.mrf.mxu0
        %v563 = vadd.f32 %v491, %v562
        %564 = vmatmul.f32.gmra.mxu0 %v419
        %v565 = vpop.f32.mrf.mxu0
        %v566 = vadd.f32 %v491, %v565
        %567 = vmatmul.f32.gmra.mxu0 %v420
        %v568 = vpop.f32.mrf.mxu0
        %v569 = vadd.f32 %v491, %v568
        %570 = vmatmul.f32.gmra.mxu0 %v421
        %v571 = vpop.f32.mrf.mxu0
        %v572 = vadd.f32 %v491, %v571
        %573 = vmatmul.f32.gmra.mxu0 %v422
        %v574 = vpop.f32.mrf.mxu0
        %v575 = vadd.f32 %v491, %v574
        %576 = vmatmul.f32.gmra.mxu0 %v423
        %v577 = vpop.f32.mrf.mxu0
        %v578 = vadd.f32 %v491, %v577
        %579 = vdwg.mxu0
        %580 = vmatpush.msra.mxu0 %v486
        %581 = vmatpush.msra.mxu0 %v482
        %582 = vmatpush.msra.mxu0 %v478
        %583 = vmatpush.msra.mxu0 %v474
        %584 = vmatpush.msra.mxu0 %v470
        %585 = vmatpush.msra.mxu0 %v466
        %586 = vmatpush.msra.mxu0 %v462
        %587 = vmatpush.msra.mxu0 %v458
        %588 = vmatpush.msra.mxu0 %v454
        %589 = vmatpush.msra.mxu0 %v450
        %590 = vmatpush.msra.mxu0 %v446
        %591 = vmatpush.msra.mxu0 %v442
        %592 = vmatpush.msra.mxu0 %v438
        %593 = vmatpush.msra.mxu0 %v434
        %594 = vmatpush.msra.mxu0 %v430
        %595 = vmatpush.msra.mxu0 %v426
        %596 = vmatmul.f32.gmra.mxu0 %v416
        %v597 = vpop.f32.mrf.mxu0
        %v598 = vadd.f32 %v492, %v597
        %599 = vmatmul.f32.gmra.mxu0 %v417
        %v600 = vpop.f32.mrf.mxu0
        %v601 = vadd.f32 %v492, %v600
        %602 = vmatmul.f32.gmra.mxu0 %v418
        %v603 = vpop.f32.mrf.mxu0
        %v604 = vadd.f32 %v492, %v603
        %605 = vmatmul.f32.gmra.mxu0 %v419
        %v606 = vpop.f32.mrf.mxu0
        %v607 = vadd.f32 %v492, %v606
        %608 = vmatmul.f32.gmra.mxu0 %v420
        %v609 = vpop.f32.mrf.mxu0
        %v610 = vadd.f32 %v492, %v609
        %611 = vmatmul.f32.gmra.mxu0 %v421
        %v612 = vpop.f32.mrf.mxu0
        %v613 = vadd.f32 %v492, %v612
        %614 = vmatmul.f32.gmra.mxu0 %v422
        %v615 = vpop.f32.mrf.mxu0
        %v616 = vadd.f32 %v492, %v615
        %617 = vmatmul.f32.gmra.mxu0 %v423
        %v618 = vpop.f32.mrf.mxu0
        %v619 = vadd.f32 %v492, %v618
        %620 = vdwg.mxu0
        %621 = vmatpush.msra.mxu0 %v487
        %622 = vmatpush.msra.mxu0 %v483
        %623 = vmatpush.msra.mxu0 %v479
        %624 = vmatpush.msra.mxu0 %v475
        %625 = vmatpush.msra.mxu0 %v471
        %626 = vmatpush.msra.mxu0 %v467
        %627 = vmatpush.msra.mxu0 %v463
        %628 = vmatpush.msra.mxu0 %v459
        %629 = vmatpush.msra.mxu0 %v455
        %630 = vmatpush.msra.mxu0 %v451
        %631 = vmatpush.msra.mxu0 %v447
        %632 = vmatpush.msra.mxu0 %v443
        %633 = vmatpush.msra.mxu0 %v439
        %634 = vmatpush.msra.mxu0 %v435
        %635 = vmatpush.msra.mxu0 %v431
        %636 = vmatpush.msra.mxu0 %v427
        %637 = vmatmul.f32.gmra.mxu0 %v416
        %v638 = vpop.f32.mrf.mxu0
        %v639 = vadd.f32 %v493, %v638
        %640 = vmatmul.f32.gmra.mxu0 %v417
        %v641 = vpop.f32.mrf.mxu0
        %v642 = vadd.f32 %v493, %v641
        %643 = vmatmul.f32.gmra.mxu0 %v418
        %v644 = vpop.f32.mrf.mxu0
        %v645 = vadd.f32 %v493, %v644
        %646 = vmatmul.f32.gmra.mxu0 %v419
        %v647 = vpop.f32.mrf.mxu0
        %v648 = vadd.f32 %v493, %v647
        %649 = vmatmul.f32.gmra.mxu0 %v420
        %v650 = vpop.f32.mrf.mxu0
        %v651 = vadd.f32 %v493, %v650
        %652 = vmatmul.f32.gmra.mxu0 %v421
        %v653 = vpop.f32.mrf.mxu0
        %v654 = vadd.f32 %v493, %v653
        %655 = vmatmul.f32.gmra.mxu0 %v422
        %v656 = vpop.f32.mrf.mxu0
        %v657 = vadd.f32 %v493, %v656
        %658 = vmatmul.f32.gmra.mxu0 %v423
        %v659 = vpop.f32.mrf.mxu0
        %v660 = vadd.f32 %v493, %v659
        %661 = vdwg.mxu0
        %662 = vst [vmem:[#allocation2] sm:$0xff] %v516
        %663 = vst [vmem:[#allocation2 + $0x8] sm:$0xff] %v557
        %664 = vst [vmem:[#allocation2 + $0x10] sm:$0xff] %v598
        %665 = vst [vmem:[#allocation2 + $0x18] sm:$0xff] %v639
        %666 = vst [vmem:[#allocation2 + $0x20] sm:$0xff] %v519
        %667 = vst [vmem:[#allocation2 + $0x28] sm:$0xff] %v560
        %668 = vst [vmem:[#allocation2 + $0x30] sm:$0xff] %v601
        %669 = vst [vmem:[#allocation2 + $0x38] sm:$0xff] %v642
        %670 = vst [vmem:[#allocation2 + $0x40] sm:$0xff] %v522
        %671 = vst [vmem:[#allocation2 + $0x48] sm:$0xff] %v563
        %672 = vst [vmem:[#allocation2 + $0x50] sm:$0xff] %v604
        %673 = vst [vmem:[#allocation2 + $0x58] sm:$0xff] %v645
        %674 = vst [vmem:[#allocation2 + $0x60] sm:$0xff] %v525
        %675 = vst [vmem:[#allocation2 + $0x68] sm:$0xff] %v566
        %676 = vst [vmem:[#allocation2 + $0x70] sm:$0xff] %v607
        %677 = vst [vmem:[#allocation2 + $0x78] sm:$0xff] %v648
        %678 = vst [vmem:[#allocation2 + $0x80] sm:$0xff] %v528
        %679 = vst [vmem:[#allocation2 + $0x88] sm:$0xff] %v569
        %680 = vst [vmem:[#allocation2 + $0x90] sm:$0xff] %v610
        %681 = vst [vmem:[#allocation2 + $0x98] sm:$0xff] %v651
        %682 = vst [vmem:[#allocation2 + $0xa0] sm:$0xff] %v531
        %683 = vst [vmem:[#allocation2 + $0xa8] sm:$0xff] %v572
        %684 = vst [vmem:[#allocation2 + $0xb0] sm:$0xff] %v613
        %685 = vst [vmem:[#allocation2 + $0xb8] sm:$0xff] %v654
        %686 = vst [vmem:[#allocation2 + $0xc0] sm:$0xff] %v534
        %687 = vst [vmem:[#allocation2 + $0xc8] sm:$0xff] %v575
        %688 = vst [vmem:[#allocation2 + $0xd0] sm:$0xff] %v616
        %689 = vst [vmem:[#allocation2 + $0xd8] sm:$0xff] %v657
        %690 = vst [vmem:[#allocation2 + $0xe0] sm:$0xff] %v537
        %691 = vst [vmem:[#allocation2 + $0xe8] sm:$0xff] %v578
        %692 = vst [vmem:[#allocation2 + $0xf0] sm:$0xff] %v619
        %693 = vst [vmem:[#allocation2 + $0xf8] sm:$0xff] %v660
        %v694 = vld [vmem:[%s346] sm:$0xff]
        %v695 = vld [vmem:[%s346 + $0x8] sm:$0xff]
        %v696 = vld [vmem:[%s346 + $0x10] sm:$0xff]
        %v697 = vld [vmem:[%s346 + $0x18] sm:$0xff]
        %v698 = vld [vmem:[%s346 + $0x20] sm:$0xff]
        %v699 = vld [vmem:[%s346 + $0x28] sm:$0xff]
        %v700 = vld [vmem:[%s346 + $0x30] sm:$0xff]
        %v701 = vld [vmem:[%s346 + $0x38] sm:$0xff]
        %v702 = vld [vmem:[%s346 + $0x40] sm:$0xff]
        %v703 = vld [vmem:[%s346 + $0x48] sm:$0xff]
        %v704 = vld [vmem:[%s346 + $0x50] sm:$0xff]
        %v705 = vld [vmem:[%s346 + $0x58] sm:$0xff]
        %v706 = vld [vmem:[%s346 + $0x60] sm:$0xff]
        %v707 = vld [vmem:[%s346 + $0x68] sm:$0xff]
        %v708 = vld [vmem:[%s346 + $0x70] sm:$0xff]
        %v709 = vld [vmem:[%s346 + $0x78] sm:$0xff]
        %v710 = vld [vmem:[%s346 + $0x80] sm:$0xff]
        %v711 = vld [vmem:[%s346 + $0x88] sm:$0xff]
        %v712 = vld [vmem:[%s346 + $0x90] sm:$0xff]
        %v713 = vld [vmem:[%s346 + $0x98] sm:$0xff]
        %v714 = vld [vmem:[%s346 + $0xa0] sm:$0xff]
        %v715 = vld [vmem:[%s346 + $0xa8] sm:$0xff]
        %v716 = vld [vmem:[%s346 + $0xb0] sm:$0xff]
        %v717 = vld [vmem:[%s346 + $0xb8] sm:$0xff]
        %v718 = vld [vmem:[%s346 + $0xc0] sm:$0xff]
        %v719 = vld [vmem:[%s346 + $0xc8] sm:$0xff]
        %v720 = vld [vmem:[%s346 + $0xd0] sm:$0xff]
        %v721 = vld [vmem:[%s346 + $0xd8] sm:$0xff]
        %v722 = vld [vmem:[%s346 + $0xe0] sm:$0xff]
        %v723 = vld [vmem:[%s346 + $0xe8] sm:$0xff]
        %v724 = vld [vmem:[%s346 + $0xf0] sm:$0xff]
        %v725 = vld [vmem:[%s346 + $0xf8] sm:$0xff]
        %v726 = vld [vmem:[%s346 + $0x100] sm:$0xff]
        %v727 = vld [vmem:[%s346 + $0x108] sm:$0xff]
        %v728 = vld [vmem:[%s346 + $0x110] sm:$0xff]
        %v729 = vld [vmem:[%s346 + $0x118] sm:$0xff]
        %v730 = vld [vmem:[%s346 + $0x120] sm:$0xff]
        %v731 = vld [vmem:[%s346 + $0x128] sm:$0xff]
        %v732 = vld [vmem:[%s346 + $0x130] sm:$0xff]
        %v733 = vld [vmem:[%s346 + $0x138] sm:$0xff]
        %v734 = vld [vmem:[%s346 + $0x140] sm:$0xff]
        %v735 = vld [vmem:[%s346 + $0x148] sm:$0xff]
        %v736 = vld [vmem:[%s346 + $0x150] sm:$0xff]
        %v737 = vld [vmem:[%s346 + $0x158] sm:$0xff]
        %v738 = vld [vmem:[%s346 + $0x160] sm:$0xff]
        %v739 = vld [vmem:[%s346 + $0x168] sm:$0xff]
        %v740 = vld [vmem:[%s346 + $0x170] sm:$0xff]
        %v741 = vld [vmem:[%s346 + $0x178] sm:$0xff]
        %v742 = vld [vmem:[%s346 + $0x180] sm:$0xff]
        %v743 = vld [vmem:[%s346 + $0x188] sm:$0xff]
        %v744 = vld [vmem:[%s346 + $0x190] sm:$0xff]
        %v745 = vld [vmem:[%s346 + $0x198] sm:$0xff]
        %v746 = vld [vmem:[%s346 + $0x1a0] sm:$0xff]
        %v747 = vld [vmem:[%s346 + $0x1a8] sm:$0xff]
        %v748 = vld [vmem:[%s346 + $0x1b0] sm:$0xff]
        %v749 = vld [vmem:[%s346 + $0x1b8] sm:$0xff]
        %v750 = vld [vmem:[%s346 + $0x1c0] sm:$0xff]
        %v751 = vld [vmem:[%s346 + $0x1c8] sm:$0xff]
        %v752 = vld [vmem:[%s346 + $0x1d0] sm:$0xff]
        %v753 = vld [vmem:[%s346 + $0x1d8] sm:$0xff]
        %v754 = vld [vmem:[%s346 + $0x1e0] sm:$0xff]
        %v755 = vld [vmem:[%s346 + $0x1e8] sm:$0xff]
        %v756 = vld [vmem:[%s346 + $0x1f0] sm:$0xff]
        %v757 = vld [vmem:[%s346 + $0x1f8] sm:$0xff]
        %758 = vmatpush.msra.mxu0 %v754
        %759 = vmatpush.msra.mxu0 %v750
        %760 = vmatpush.msra.mxu0 %v746
        %761 = vmatpush.msra.mxu0 %v742
        %762 = vmatpush.msra.mxu0 %v738
        %763 = vmatpush.msra.mxu0 %v734
        %764 = vmatpush.msra.mxu0 %v730
        %765 = vmatpush.msra.mxu0 %v726
        %766 = vmatpush.msra.mxu0 %v722
        %767 = vmatpush.msra.mxu0 %v718
        %768 = vmatpush.msra.mxu0 %v714
        %769 = vmatpush.msra.mxu0 %v710
        %770 = vmatpush.msra.mxu0 %v706
        %771 = vmatpush.msra.mxu0 %v702
        %772 = vmatpush.msra.mxu0 %v698
        %773 = vmatpush.msra.mxu0 %v694
        %774 = vmatmul.f32.gmra.mxu0 0.0
        %v775 = vpop.f32.mrf.mxu0
        %v776 = vadd.f32 0.0, %v775
        %777 = vdwg.mxu0
        %778 = vmatpush.msra.mxu0 %v755
        %779 = vmatpush.msra.mxu0 %v751
        %780 = vmatpush.msra.mxu0 %v747
        %781 = vmatpush.msra.mxu0 %v743
        %782 = vmatpush.msra.mxu0 %v739
        %783 = vmatpush.msra.mxu0 %v735
        %784 = vmatpush.msra.mxu0 %v731
        %785 = vmatpush.msra.mxu0 %v727
        %786 = vmatpush.msra.mxu0 %v723
        %787 = vmatpush.msra.mxu0 %v719
        %788 = vmatpush.msra.mxu0 %v715
        %789 = vmatpush.msra.mxu0 %v711
        %790 = vmatpush.msra.mxu0 %v707
        %791 = vmatpush.msra.mxu0 %v703
        %792 = vmatpush.msra.mxu0 %v699
        %793 = vmatpush.msra.mxu0 %v695
        %794 = vmatmul.f32.gmra.mxu0 0.0
        %v795 = vpop.f32.mrf.mxu0
        %v796 = vadd.f32 0.0, %v795
        %797 = vdwg.mxu0
        %798 = vmatpush.msra.mxu0 %v756
        %799 = vmatpush.msra.mxu0 %v752
        %800 = vmatpush.msra.mxu0 %v748
        %801 = vmatpush.msra.mxu0 %v744
        %802 = vmatpush.msra.mxu0 %v740
        %803 = vmatpush.msra.mxu0 %v736
        %804 = vmatpush.msra.mxu0 %v732
        %805 = vmatpush.msra.mxu0 %v728
        %806 = vmatpush.msra.mxu0 %v724
        %807 = vmatpush.msra.mxu0 %v720
        %808 = vmatpush.msra.mxu0 %v716
        %809 = vmatpush.msra.mxu0 %v712
        %810 = vmatpush.msra.mxu0 %v708
        %811 = vmatpush.msra.mxu0 %v704
        %812 = vmatpush.msra.mxu0 %v700
        %813 = vmatpush.msra.mxu0 %v696
        %814 = vmatmul.f32.gmra.mxu0 0.0
        %v815 = vpop.f32.mrf.mxu0
        %v816 = vadd.f32 0.0, %v815
        %817 = vdwg.mxu0
        %818 = vmatpush.msra.mxu0 %v757
        %819 = vmatpush.msra.mxu0 %v753
        %820 = vmatpush.msra.mxu0 %v749
        %821 = vmatpush.msra.mxu0 %v745
        %822 = vmatpush.msra.mxu0 %v741
        %823 = vmatpush.msra.mxu0 %v737
        %824 = vmatpush.msra.mxu0 %v733
        %825 = vmatpush.msra.mxu0 %v729
        %826 = vmatpush.msra.mxu0 %v725
        %827 = vmatpush.msra.mxu0 %v721
        %828 = vmatpush.msra.mxu0 %v717
        %829 = vmatpush.msra.mxu0 %v713
        %830 = vmatpush.msra.mxu0 %v709
        %831 = vmatpush.msra.mxu0 %v705
        %832 = vmatpush.msra.mxu0 %v701
        %833 = vmatpush.msra.mxu0 %v697
        %834 = vmatmul.f32.gmra.mxu0 0.0
        %v835 = vpop.f32.mrf.mxu0
        %v836 = vadd.f32 0.0, %v835
        %837 = vdwg.mxu0
        %s838 = smul.u32 0, 4
        %s839 = smul.addr %s838, 8
        %s840 = scalar_lea.vmem [#allocation2], %s839
        %v841 = vld [vmem:[%s840] sm:$0xff]
        %v842 = vld [vmem:[%s840 + $0x8] sm:$0xff]
        %v843 = vld [vmem:[%s840 + $0x10] sm:$0xff]
        %v844 = vld [vmem:[%s840 + $0x18] sm:$0xff]
        %v845 = vadd.f32 %v841, %v776
        %v846 = vadd.f32 %v842, %v796
        %v847 = vadd.f32 %v843, %v816
        %v848 = vadd.f32 %v844, %v836
        %v849 = vxor.u32 %v845, 2147483648
        %v850 = vmul.f32 %v849, 1.442695
        %v851 = vpow.pop %v850
        %v852 = vadd.f32 %v851, 1.0
        %v853 = vrcp.pop %v852
        %v854 = vmul.f32 %v852, %v853
        %v855 = vsub.f32 1.0, %v854
        %v856 = vmul.f32 %v853, %v855
        %v857 = vadd.f32 %v853, %v856
        %vm858 = vweird.f32 %v852
        %vm859 = vweird.f32 %v853
        %vm860 = vmor %vm858, %vm859
        %v861 = vsel %vm860, %v853, %v857
        %v862 = vand.u32 2147483647, %v852
        %vm863 = vcmp.eq.f32.partialorder %v862, 8.507059e+37
        %v864 = vand.u32 %v852, 2147483648
        %v865 = vor.u32 1.1754944e-38, %v864
        %v866 = vsel %vm863, %v865, %v861
        %v867 = vmul.f32 1.0, %v866
        %v868 = vxor.u32 %v846, 2147483648
        %v869 = vmul.f32 %v868, 1.442695
        %v870 = vpow.pop %v869
        %v871 = vadd.f32 %v870, 1.0
        %v872 = vrcp.pop %v871
        %v873 = vmul.f32 %v871, %v872
        %v874 = vsub.f32 1.0, %v873
        %v875 = vmul.f32 %v872, %v874
        %v876 = vadd.f32 %v872, %v875
        %vm877 = vweird.f32 %v871
        %vm878 = vweird.f32 %v872
        %vm879 = vmor %vm877, %vm878
        %v880 = vsel %vm879, %v872, %v876
        %v881 = vand.u32 2147483647, %v871
        %vm882 = vcmp.eq.f32.partialorder %v881, 8.507059e+37
        %v883 = vand.u32 %v871, 2147483648
        %v884 = vor.u32 1.1754944e-38, %v883
        %v885 = vsel %vm882, %v884, %v880
        %v886 = vmul.f32 1.0, %v885
        %v887 = vtanh.pop %v847
        %v888 = vxor.u32 %v848, 2147483648
        %v889 = vmul.f32 %v888, 1.442695
        %v890 = vpow.pop %v889
        %v891 = vadd.f32 %v890, 1.0
        %v892 = vrcp.pop %v891
        %v893 = vmul.f32 %v891, %v892
        %v894 = vsub.f32 1.0, %v893
        %v895 = vmul.f32 %v892, %v894
        %v896 = vadd.f32 %v892, %v895
        %vm897 = vweird.f32 %v891
        %vm898 = vweird.f32 %v892
        %vm899 = vmor %vm897, %vm898
        %v900 = vsel %vm899, %v892, %v896
        %v901 = vand.u32 2147483647, %v891
        %vm902 = vcmp.eq.f32.partialorder %v901, 8.507059e+37
        %v903 = vand.u32 %v891, 2147483648
        %v904 = vor.u32 1.1754944e-38, %v903
        %v905 = vsel %vm902, %v904, %v900
        %v906 = vmul.f32 1.0, %v905
        %v907 = vmul.f32 %v886, 0.0
        %v908 = vmul.f32 %v867, %v887
        %v909 = vadd.f32 %v907, %v908
        %v910 = vtanh.pop %v909
        %v911 = vmul.f32 %v906, %v910
        %912 = vst [vmem:[#allocation3] sm:$0xff] %v911
        %v913 = vld [vmem:[%s346] sm:$0xff]
        %v914 = vld [vmem:[%s346 + $0x8] sm:$0xff]
        %v915 = vld [vmem:[%s346 + $0x10] sm:$0xff]
        %v916 = vld [vmem:[%s346 + $0x18] sm:$0xff]
        %v917 = vld [vmem:[%s346 + $0x20] sm:$0xff]
        %v918 = vld [vmem:[%s346 + $0x28] sm:$0xff]
        %v919 = vld [vmem:[%s346 + $0x30] sm:$0xff]
        %v920 = vld [vmem:[%s346 + $0x38] sm:$0xff]
        %v921 = vld [vmem:[%s346 + $0x40] sm:$0xff]
        %v922 = vld [vmem:[%s346 + $0x48] sm:$0xff]
        %v923 = vld [vmem:[%s346 + $0x50] sm:$0xff]
        %v924 = vld [vmem:[%s346 + $0x58] sm:$0xff]
        %v925 = vld [vmem:[%s346 + $0x60] sm:$0xff]
        %v926 = vld [vmem:[%s346 + $0x68] sm:$0xff]
        %v927 = vld [vmem:[%s346 + $0x70] sm:$0xff]
        %v928 = vld [vmem:[%s346 + $0x78] sm:$0xff]
        %v929 = vld [vmem:[%s346 + $0x80] sm:$0xff]
        %v930 = vld [vmem:[%s346 + $0x88] sm:$0xff]
        %v931 = vld [vmem:[%s346 + $0x90] sm:$0xff]
        %v932 = vld [vmem:[%s346 + $0x98] sm:$0xff]
        %v933 = vld [vmem:[%s346 + $0xa0] sm:$0xff]
        %v934 = vld [vmem:[%s346 + $0xa8] sm:$0xff]
        %v935 = vld [vmem:[%s346 + $0xb0] sm:$0xff]
        %v936 = vld [vmem:[%s346 + $0xb8] sm:$0xff]
        %v937 = vld [vmem:[%s346 + $0xc0] sm:$0xff]
        %v938 = vld [vmem:[%s346 + $0xc8] sm:$0xff]
        %v939 = vld [vmem:[%s346 + $0xd0] sm:$0xff]
        %v940 = vld [vmem:[%s346 + $0xd8] sm:$0xff]
        %v941 = vld [vmem:[%s346 + $0xe0] sm:$0xff]
        %v942 = vld [vmem:[%s346 + $0xe8] sm:$0xff]
        %v943 = vld [vmem:[%s346 + $0xf0] sm:$0xff]
        %v944 = vld [vmem:[%s346 + $0xf8] sm:$0xff]
        %v945 = vld [vmem:[%s346 + $0x100] sm:$0xff]
        %v946 = vld [vmem:[%s346 + $0x108] sm:$0xff]
        %v947 = vld [vmem:[%s346 + $0x110] sm:$0xff]
        %v948 = vld [vmem:[%s346 + $0x118] sm:$0xff]
        %v949 = vld [vmem:[%s346 + $0x120] sm:$0xff]
        %v950 = vld [vmem:[%s346 + $0x128] sm:$0xff]
        %v951 = vld [vmem:[%s346 + $0x130] sm:$0xff]
        %v952 = vld [vmem:[%s346 + $0x138] sm:$0xff]
        %v953 = vld [vmem:[%s346 + $0x140] sm:$0xff]
        %v954 = vld [vmem:[%s346 + $0x148] sm:$0xff]
        %v955 = vld [vmem:[%s346 + $0x150] sm:$0xff]
        %v956 = vld [vmem:[%s346 + $0x158] sm:$0xff]
        %v957 = vld [vmem:[%s346 + $0x160] sm:$0xff]
        %v958 = vld [vmem:[%s346 + $0x168] sm:$0xff]
        %v959 = vld [vmem:[%s346 + $0x170] sm:$0xff]
        %v960 = vld [vmem:[%s346 + $0x178] sm:$0xff]
        %v961 = vld [vmem:[%s346 + $0x180] sm:$0xff]
        %v962 = vld [vmem:[%s346 + $0x188] sm:$0xff]
        %v963 = vld [vmem:[%s346 + $0x190] sm:$0xff]
        %v964 = vld [vmem:[%s346 + $0x198] sm:$0xff]
        %v965 = vld [vmem:[%s346 + $0x1a0] sm:$0xff]
        %v966 = vld [vmem:[%s346 + $0x1a8] sm:$0xff]
        %v967 = vld [vmem:[%s346 + $0x1b0] sm:$0xff]
        %v968 = vld [vmem:[%s346 + $0x1b8] sm:$0xff]
        %v969 = vld [vmem:[%s346 + $0x1c0] sm:$0xff]
        %v970 = vld [vmem:[%s346 + $0x1c8] sm:$0xff]
        %v971 = vld [vmem:[%s346 + $0x1d0] sm:$0xff]
        %v972 = vld [vmem:[%s346 + $0x1d8] sm:$0xff]
        %v973 = vld [vmem:[%s346 + $0x1e0] sm:$0xff]
        %v974 = vld [vmem:[%s346 + $0x1e8] sm:$0xff]
        %v975 = vld [vmem:[%s346 + $0x1f0] sm:$0xff]
        %v976 = vld [vmem:[%s346 + $0x1f8] sm:$0xff]
        %977 = vmatpush.msra.mxu0 %v973
        %978 = vmatpush.msra.mxu0 %v969
        %979 = vmatpush.msra.mxu0 %v965
        %980 = vmatpush.msra.mxu0 %v961
        %981 = vmatpush.msra.mxu0 %v957
        %982 = vmatpush.msra.mxu0 %v953
        %983 = vmatpush.msra.mxu0 %v949
        %984 = vmatpush.msra.mxu0 %v945
        %985 = vmatpush.msra.mxu0 %v941
        %986 = vmatpush.msra.mxu0 %v937
        %987 = vmatpush.msra.mxu0 %v933
        %988 = vmatpush.msra.mxu0 %v929
        %989 = vmatpush.msra.mxu0 %v925
        %990 = vmatpush.msra.mxu0 %v921
        %991 = vmatpush.msra.mxu0 %v917
        %992 = vmatpush.msra.mxu0 %v913
        %993 = vmatmul.f32.gmra.mxu0 %v911
        %v994 = vpop.f32.mrf.mxu0
        %v995 = vadd.f32 0.0, %v994
        %996 = vdwg.mxu0
        %997 = vmatpush.msra.mxu0 %v974
        %998 = vmatpush.msra.mxu0 %v970
        %999 = vmatpush.msra.mxu0 %v966
        %1000 = vmatpush.msra.mxu0 %v962
        %1001 = vmatpush.msra.mxu0 %v958
        %1002 = vmatpush.msra.mxu0 %v954
        %1003 = vmatpush.msra.mxu0 %v950
        %1004 = vmatpush.msra.mxu0 %v946
        %1005 = vmatpush.msra.mxu0 %v942
        %1006 = vmatpush.msra.mxu0 %v938
        %1007 = vmatpush.msra.mxu0 %v934
        %1008 = vmatpush.msra.mxu0 %v930
        %1009 = vmatpush.msra.mxu0 %v926
        %1010 = vmatpush.msra.mxu0 %v922
        %1011 = vmatpush.msra.mxu0 %v918
        %1012 = vmatpush.msra.mxu0 %v914
        %1013 = vmatmul.f32.gmra.mxu0 %v911
        %v1014 = vpop.f32.mrf.mxu0
        %v1015 = vadd.f32 0.0, %v1014
        %1016 = vdwg.mxu0
        %1017 = vmatpush.msra.mxu0 %v975
        %1018 = vmatpush.msra.mxu0 %v971
        %1019 = vmatpush.msra.mxu0 %v967
        %1020 = vmatpush.msra.mxu0 %v963
        %1021 = vmatpush.msra.mxu0 %v959
        %1022 = vmatpush.msra.mxu0 %v955
        %1023 = vmatpush.msra.mxu0 %v951
        %1024 = vmatpush.msra.mxu0 %v947
        %1025 = vmatpush.msra.mxu0 %v943
        %1026 = vmatpush.msra.mxu0 %v939
        %1027 = vmatpush.msra.mxu0 %v935
        %1028 = vmatpush.msra.mxu0 %v931
        %1029 = vmatpush.msra.mxu0 %v927
        %1030 = vmatpush.msra.mxu0 %v923
        %1031 = vmatpush.msra.mxu0 %v919
        %1032 = vmatpush.msra.mxu0 %v915
        %1033 = vmatmul.f32.gmra.mxu0 %v911
        %v1034 = vpop.f32.mrf.mxu0
        %v1035 = vadd.f32 0.0, %v1034
        %1036 = vdwg.mxu0
        %1037 = vmatpush.msra.mxu0 %v976
        %1038 = vmatpush.msra.mxu0 %v972
        %1039 = vmatpush.msra.mxu0 %v968
        %1040 = vmatpush.msra.mxu0 %v964
        %1041 = vmatpush.msra.mxu0 %v960
        %1042 = vmatpush.msra.mxu0 %v956
        %1043 = vmatpush.msra.mxu0 %v952
        %1044 = vmatpush.msra.mxu0 %v948
        %1045 = vmatpush.msra.mxu0 %v944
        %1046 = vmatpush.msra.mxu0 %v940
        %1047 = vmatpush.msra.mxu0 %v936
        %1048 = vmatpush.msra.mxu0 %v932
        %1049 = vmatpush.msra.mxu0 %v928
        %1050 = vmatpush.msra.mxu0 %v924
        %1051 = vmatpush.msra.mxu0 %v920
        %1052 = vmatpush.msra.mxu0 %v916
        %1053 = vmatmul.f32.gmra.mxu0 %v911
        %v1054 = vpop.f32.mrf.mxu0
        %v1055 = vadd.f32 0.0, %v1054
        %1056 = vdwg.mxu0
        %s1057 = smul.u32 1, 4
        %s1058 = smul.addr %s1057, 8
        %s1059 = scalar_lea.vmem [#allocation2], %s1058
        %v1060 = vld [vmem:[%s1059] sm:$0xff]
        %v1061 = vld [vmem:[%s1059 + $0x8] sm:$0xff]
        %v1062 = vld [vmem:[%s1059 + $0x10] sm:$0xff]
        %v1063 = vld [vmem:[%s1059 + $0x18] sm:$0xff]
        %v1064 = vadd.f32 %v1060, %v995
        %v1065 = vadd.f32 %v1061, %v1015
        %v1066 = vadd.f32 %v1062, %v1035
        %v1067 = vadd.f32 %v1063, %v1055
        %v1068 = vxor.u32 %v1064, 2147483648
        %v1069 = vmul.f32 %v1068, 1.442695
        %v1070 = vpow.pop %v1069
        %v1071 = vadd.f32 %v1070, 1.0
        %v1072 = vrcp.pop %v1071
        %v1073 = vmul.f32 %v1071, %v1072
        %v1074 = vsub.f32 1.0, %v1073
        %v1075 = vmul.f32 %v1072, %v1074
        %v1076 = vadd.f32 %v1072, %v1075
        %vm1077 = vweird.f32 %v1071
        %vm1078 = vweird.f32 %v1072
        %vm1079 = vmor %vm1077, %vm1078
        %v1080 = vsel %vm1079, %v1072, %v1076
        %v1081 = vand.u32 2147483647, %v1071
        %vm1082 = vcmp.eq.f32.partialorder %v1081, 8.507059e+37
        %v1083 = vand.u32 %v1071, 2147483648
        %v1084 = vor.u32 1.1754944e-38, %v1083
        %v1085 = vsel %vm1082, %v1084, %v1080
        %v1086 = vmul.f32 1.0, %v1085
        %v1087 = vxor.u32 %v1065, 2147483648
        %v1088 = vmul.f32 %v1087, 1.442695
        %v1089 = vpow.pop %v1088
        %v1090 = vadd.f32 %v1089, 1.0
        %v1091 = vrcp.pop %v1090
        %v1092 = vmul.f32 %v1090, %v1091
        %v1093 = vsub.f32 1.0, %v1092
        %v1094 = vmul.f32 %v1091, %v1093
        %v1095 = vadd.f32 %v1091, %v1094
        %vm1096 = vweird.f32 %v1090
        %vm1097 = vweird.f32 %v1091
        %vm1098 = vmor %vm1096, %vm1097
        %v1099 = vsel %vm1098, %v1091, %v1095
        %v1100 = vand.u32 2147483647, %v1090
        %vm1101 = vcmp.eq.f32.partialorder %v1100, 8.507059e+37
        %v1102 = vand.u32 %v1090, 2147483648
        %v1103 = vor.u32 1.1754944e-38, %v1102
        %v1104 = vsel %vm1101, %v1103, %v1099
        %v1105 = vmul.f32 1.0, %v1104
        %v1106 = vtanh.pop %v1066
        %v1107 = vxor.u32 %v1067, 2147483648
        %v1108 = vmul.f32 %v1107, 1.442695
        %v1109 = vpow.pop %v1108
        %v1110 = vadd.f32 %v1109, 1.0
        %v1111 = vrcp.pop %v1110
        %v1112 = vmul.f32 %v1110, %v1111
        %v1113 = vsub.f32 1.0, %v1112
        %v1114 = vmul.f32 %v1111, %v1113
        %v1115 = vadd.f32 %v1111, %v1114
        %vm1116 = vweird.f32 %v1110
        %vm1117 = vweird.f32 %v1111
        %vm1118 = vmor %vm1116, %vm1117
        %v1119 = vsel %vm1118, %v1111, %v1115
        %v1120 = vand.u32 2147483647, %v1110
        %vm1121 = vcmp.eq.f32.partialorder %v1120, 8.507059e+37
        %v1122 = vand.u32 %v1110, 2147483648
        %v1123 = vor.u32 1.1754944e-38, %v1122
        %v1124 = vsel %vm1121, %v1123, %v1119
        %v1125 = vmul.f32 1.0, %v1124
        %v1126 = vmul.f32 %v1105, %v909
        %v1127 = vmul.f32 %v1086, %v1106
        %v1128 = vadd.f32 %v1126, %v1127
        %v1129 = vtanh.pop %v1128
        %v1130 = vmul.f32 %v1125, %v1129
        %s1131 = scalar_lea.vmem [#allocation3], 8
        %1132 = vst [vmem:[%s1131] sm:$0xff] %v1130
        %v1133 = vld [vmem:[%s346] sm:$0xff]
        %v1134 = vld [vmem:[%s346 + $0x8] sm:$0xff]
        %v1135 = vld [vmem:[%s346 + $0x10] sm:$0xff]
        %v1136 = vld [vmem:[%s346 + $0x18] sm:$0xff]
        %v1137 = vld [vmem:[%s346 + $0x20] sm:$0xff]
        %v1138 = vld [vmem:[%s346 + $0x28] sm:$0xff]
        %v1139 = vld [vmem:[%s346 + $0x30] sm:$0xff]
        %v1140 = vld [vmem:[%s346 + $0x38] sm:$0xff]
        %v1141 = vld [vmem:[%s346 + $0x40] sm:$0xff]
        %v1142 = vld [vmem:[%s346 + $0x48] sm:$0xff]
        %v1143 = vld [vmem:[%s346 + $0x50] sm:$0xff]
        %v1144 = vld [vmem:[%s346 + $0x58] sm:$0xff]
        %v1145 = vld [vmem:[%s346 + $0x60] sm:$0xff]
        %v1146 = vld [vmem:[%s346 + $0x68] sm:$0xff]
        %v1147 = vld [vmem:[%s346 + $0x70] sm:$0xff]
        %v1148 = vld [vmem:[%s346 + $0x78] sm:$0xff]
        %v1149 = vld [vmem:[%s346 + $0x80] sm:$0xff]
        %v1150 = vld [vmem:[%s346 + $0x88] sm:$0xff]
        %v1151 = vld [vmem:[%s346 + $0x90] sm:$0xff]
        %v1152 = vld [vmem:[%s346 + $0x98] sm:$0xff]
        %v1153 = vld [vmem:[%s346 + $0xa0] sm:$0xff]
        %v1154 = vld [vmem:[%s346 + $0xa8] sm:$0xff]
        %v1155 = vld [vmem:[%s346 + $0xb0] sm:$0xff]
        %v1156 = vld [vmem:[%s346 + $0xb8] sm:$0xff]
        %v1157 = vld [vmem:[%s346 + $0xc0] sm:$0xff]
        %v1158 = vld [vmem:[%s346 + $0xc8] sm:$0xff]
        %v1159 = vld [vmem:[%s346 + $0xd0] sm:$0xff]
        %v1160 = vld [vmem:[%s346 + $0xd8] sm:$0xff]
        %v1161 = vld [vmem:[%s346 + $0xe0] sm:$0xff]
        %v1162 = vld [vmem:[%s346 + $0xe8] sm:$0xff]
        %v1163 = vld [vmem:[%s346 + $0xf0] sm:$0xff]
        %v1164 = vld [vmem:[%s346 + $0xf8] sm:$0xff]
        %v1165 = vld [vmem:[%s346 + $0x100] sm:$0xff]
        %v1166 = vld [vmem:[%s346 + $0x108] sm:$0xff]
        %v1167 = vld [vmem:[%s346 + $0x110] sm:$0xff]
        %v1168 = vld [vmem:[%s346 + $0x118] sm:$0xff]
        %v1169 = vld [vmem:[%s346 + $0x120] sm:$0xff]
        %v1170 = vld [vmem:[%s346 + $0x128] sm:$0xff]
        %v1171 = vld [vmem:[%s346 + $0x130] sm:$0xff]
        %v1172 = vld [vmem:[%s346 + $0x138] sm:$0xff]
        %v1173 = vld [vmem:[%s346 + $0x140] sm:$0xff]
        %v1174 = vld [vmem:[%s346 + $0x148] sm:$0xff]
        %v1175 = vld [vmem:[%s346 + $0x150] sm:$0xff]
        %v1176 = vld [vmem:[%s346 + $0x158] sm:$0xff]
        %v1177 = vld [vmem:[%s346 + $0x160] sm:$0xff]
        %v1178 = vld [vmem:[%s346 + $0x168] sm:$0xff]
        %v1179 = vld [vmem:[%s346 + $0x170] sm:$0xff]
        %v1180 = vld [vmem:[%s346 + $0x178] sm:$0xff]
        %v1181 = vld [vmem:[%s346 + $0x180] sm:$0xff]
        %v1182 = vld [vmem:[%s346 + $0x188] sm:$0xff]
        %v1183 = vld [vmem:[%s346 + $0x190] sm:$0xff]
        %v1184 = vld [vmem:[%s346 + $0x198] sm:$0xff]
        %v1185 = vld [vmem:[%s346 + $0x1a0] sm:$0xff]
        %v1186 = vld [vmem:[%s346 + $0x1a8] sm:$0xff]
        %v1187 = vld [vmem:[%s346 + $0x1b0] sm:$0xff]
        %v1188 = vld [vmem:[%s346 + $0x1b8] sm:$0xff]
        %v1189 = vld [vmem:[%s346 + $0x1c0] sm:$0xff]
        %v1190 = vld [vmem:[%s346 + $0x1c8] sm:$0xff]
        %v1191 = vld [vmem:[%s346 + $0x1d0] sm:$0xff]
        %v1192 = vld [vmem:[%s346 + $0x1d8] sm:$0xff]
        %v1193 = vld [vmem:[%s346 + $0x1e0] sm:$0xff]
        %v1194 = vld [vmem:[%s346 + $0x1e8] sm:$0xff]
        %v1195 = vld [vmem:[%s346 + $0x1f0] sm:$0xff]
        %v1196 = vld [vmem:[%s346 + $0x1f8] sm:$0xff]
        %1197 = vmatpush.msra.mxu0 %v1193
        %1198 = vmatpush.msra.mxu0 %v1189
        %1199 = vmatpush.msra.mxu0 %v1185
        %1200 = vmatpush.msra.mxu0 %v1181
        %1201 = vmatpush.msra.mxu0 %v1177
        %1202 = vmatpush.msra.mxu0 %v1173
        %1203 = vmatpush.msra.mxu0 %v1169
        %1204 = vmatpush.msra.mxu0 %v1165
        %1205 = vmatpush.msra.mxu0 %v1161
        %1206 = vmatpush.msra.mxu0 %v1157
        %1207 = vmatpush.msra.mxu0 %v1153
        %1208 = vmatpush.msra.mxu0 %v1149
        %1209 = vmatpush.msra.mxu0 %v1145
        %1210 = vmatpush.msra.mxu0 %v1141
        %1211 = vmatpush.msra.mxu0 %v1137
        %1212 = vmatpush.msra.mxu0 %v1133
        %1213 = vmatmul.f32.gmra.mxu0 %v1130
        %v1214 = vpop.f32.mrf.mxu0
        %v1215 = vadd.f32 0.0, %v1214
        %1216 = vdwg.mxu0
        %1217 = vmatpush.msra.mxu0 %v1194
        %1218 = vmatpush.msra.mxu0 %v1190
        %1219 = vmatpush.msra.mxu0 %v1186
        %1220 = vmatpush.msra.mxu0 %v1182
        %1221 = vmatpush.msra.mxu0 %v1178
        %1222 = vmatpush.msra.mxu0 %v1174
        %1223 = vmatpush.msra.mxu0 %v1170
        %1224 = vmatpush.msra.mxu0 %v1166
        %1225 = vmatpush.msra.mxu0 %v1162
        %1226 = vmatpush.msra.mxu0 %v1158
        %1227 = vmatpush.msra.mxu0 %v1154
        %1228 = vmatpush.msra.mxu0 %v1150
        %1229 = vmatpush.msra.mxu0 %v1146
        %1230 = vmatpush.msra.mxu0 %v1142
        %1231 = vmatpush.msra.mxu0 %v1138
        %1232 = vmatpush.msra.mxu0 %v1134
        %1233 = vmatmul.f32.gmra.mxu0 %v1130
        %v1234 = vpop.f32.mrf.mxu0
        %v1235 = vadd.f32 0.0, %v1234
        %1236 = vdwg.mxu0
        %1237 = vmatpush.msra.mxu0 %v1195
        %1238 = vmatpush.msra.mxu0 %v1191
        %1239 = vmatpush.msra.mxu0 %v1187
        %1240 = vmatpush.msra.mxu0 %v1183
        %1241 = vmatpush.msra.mxu0 %v1179
        %1242 = vmatpush.msra.mxu0 %v1175
        %1243 = vmatpush.msra.mxu0 %v1171
        %1244 = vmatpush.msra.mxu0 %v1167
        %1245 = vmatpush.msra.mxu0 %v1163
        %1246 = vmatpush.msra.mxu0 %v1159
        %1247 = vmatpush.msra.mxu0 %v1155
        %1248 = vmatpush.msra.mxu0 %v1151
        %1249 = vmatpush.msra.mxu0 %v1147
        %1250 = vmatpush.msra.mxu0 %v1143
        %1251 = vmatpush.msra.mxu0 %v1139
        %1252 = vmatpush.msra.mxu0 %v1135
        %1253 = vmatmul.f32.gmra.mxu0 %v1130
        %v1254 = vpop.f32.mrf.mxu0
        %v1255 = vadd.f32 0.0, %v1254
        %1256 = vdwg.mxu0
        %1257 = vmatpush.msra.mxu0 %v1196
        %1258 = vmatpush.msra.mxu0 %v1192
        %1259 = vmatpush.msra.mxu0 %v1188
        %1260 = vmatpush.msra.mxu0 %v1184
        %1261 = vmatpush.msra.mxu0 %v1180
        %1262 = vmatpush.msra.mxu0 %v1176
        %1263 = vmatpush.msra.mxu0 %v1172
        %1264 = vmatpush.msra.mxu0 %v1168
        %1265 = vmatpush.msra.mxu0 %v1164
        %1266 = vmatpush.msra.mxu0 %v1160
        %1267 = vmatpush.msra.mxu0 %v1156
        %1268 = vmatpush.msra.mxu0 %v1152
        %1269 = vmatpush.msra.mxu0 %v1148
        %1270 = vmatpush.msra.mxu0 %v1144
        %1271 = vmatpush.msra.mxu0 %v1140
        %1272 = vmatpush.msra.mxu0 %v1136
        %1273 = vmatmul.f32.gmra.mxu0 %v1130
        %v1274 = vpop.f32.mrf.mxu0
        %v1275 = vadd.f32 0.0, %v1274
        %1276 = vdwg.mxu0
        %s1277 = smul.u32 2, 4
        %s1278 = smul.addr %s1277, 8
        %s1279 = scalar_lea.vmem [#allocation2], %s1278
        %v1280 = vld [vmem:[%s1279] sm:$0xff]
        %v1281 = vld [vmem:[%s1279 + $0x8] sm:$0xff]
        %v1282 = vld [vmem:[%s1279 + $0x10] sm:$0xff]
        %v1283 = vld [vmem:[%s1279 + $0x18] sm:$0xff]
        %v1284 = vadd.f32 %v1280, %v1215
        %v1285 = vadd.f32 %v1281, %v1235
        %v1286 = vadd.f32 %v1282, %v1255
        %v1287 = vadd.f32 %v1283, %v1275
        %v1288 = vxor.u32 %v1284, 2147483648
        %v1289 = vmul.f32 %v1288, 1.442695
        %v1290 = vpow.pop %v1289
        %v1291 = vadd.f32 %v1290, 1.0
        %v1292 = vrcp.pop %v1291
        %v1293 = vmul.f32 %v1291, %v1292
        %v1294 = vsub.f32 1.0, %v1293
        %v1295 = vmul.f32 %v1292, %v1294
        %v1296 = vadd.f32 %v1292, %v1295
        %vm1297 = vweird.f32 %v1291
        %vm1298 = vweird.f32 %v1292
        %vm1299 = vmor %vm1297, %vm1298
        %v1300 = vsel %vm1299, %v1292, %v1296
        %v1301 = vand.u32 2147483647, %v1291
        %vm1302 = vcmp.eq.f32.partialorder %v1301, 8.507059e+37
        %v1303 = vand.u32 %v1291, 2147483648
        %v1304 = vor.u32 1.1754944e-38, %v1303
        %v1305 = vsel %vm1302, %v1304, %v1300
        %v1306 = vmul.f32 1.0, %v1305
        %v1307 = vxor.u32 %v1285, 2147483648
        %v1308 = vmul.f32 %v1307, 1.442695
        %v1309 = vpow.pop %v1308
        %v1310 = vadd.f32 %v1309, 1.0
        %v1311 = vrcp.pop %v1310
        %v1312 = vmul.f32 %v1310, %v1311
        %v1313 = vsub.f32 1.0, %v1312
        %v1314 = vmul.f32 %v1311, %v1313
        %v1315 = vadd.f32 %v1311, %v1314
        %vm1316 = vweird.f32 %v1310
        %vm1317 = vweird.f32 %v1311
        %vm1318 = vmor %vm1316, %vm1317
        %v1319 = vsel %vm1318, %v1311, %v1315
        %v1320 = vand.u32 2147483647, %v1310
        %vm1321 = vcmp.eq.f32.partialorder %v1320, 8.507059e+37
        %v1322 = vand.u32 %v1310, 2147483648
        %v1323 = vor.u32 1.1754944e-38, %v1322
        %v1324 = vsel %vm1321, %v1323, %v1319
        %v1325 = vmul.f32 1.0, %v1324
        %v1326 = vtanh.pop %v1286
        %v1327 = vxor.u32 %v1287, 2147483648
        %v1328 = vmul.f32 %v1327, 1.442695
        %v1329 = vpow.pop %v1328
        %v1330 = vadd.f32 %v1329, 1.0
        %v1331 = vrcp.pop %v1330
        %v1332 = vmul.f32 %v1330, %v1331
        %v1333 = vsub.f32 1.0, %v1332
        %v1334 = vmul.f32 %v1331, %v1333
        %v1335 = vadd.f32 %v1331, %v1334
        %vm1336 = vweird.f32 %v1330
        %vm1337 = vweird.f32 %v1331
        %vm1338 = vmor %vm1336, %vm1337
        %v1339 = vsel %vm1338, %v1331, %v1335
        %v1340 = vand.u32 2147483647, %v1330
        %vm1341 = vcmp.eq.f32.partialorder %v1340, 8.507059e+37
        %v1342 = vand.u32 %v1330, 2147483648
        %v1343 = vor.u32 1.1754944e-38, %v1342
        %v1344 = vsel %vm1341, %v1343, %v1339
        %v1345 = vmul.f32 1.0, %v1344
        %v1346 = vmul.f32 %v1325, %v1128
        %v1347 = vmul.f32 %v1306, %v1326
        %v1348 = vadd.f32 %v1346, %v1347
        %v1349 = vtanh.pop %v1348
        %v1350 = vmul.f32 %v1345, %v1349
        %s1351 = scalar_lea.vmem [#allocation3], 16
        %1352 = vst [vmem:[%s1351] sm:$0xff] %v1350
        %v1353 = vld [vmem:[%s346] sm:$0xff]
        %v1354 = vld [vmem:[%s346 + $0x8] sm:$0xff]
        %v1355 = vld [vmem:[%s346 + $0x10] sm:$0xff]
        %v1356 = vld [vmem:[%s346 + $0x18] sm:$0xff]
        %v1357 = vld [vmem:[%s346 + $0x20] sm:$0xff]
        %v1358 = vld [vmem:[%s346 + $0x28] sm:$0xff]
        %v1359 = vld [vmem:[%s346 + $0x30] sm:$0xff]
        %v1360 = vld [vmem:[%s346 + $0x38] sm:$0xff]
        %v1361 = vld [vmem:[%s346 + $0x40] sm:$0xff]
        %v1362 = vld [vmem:[%s346 + $0x48] sm:$0xff]
        %v1363 = vld [vmem:[%s346 + $0x50] sm:$0xff]
        %v1364 = vld [vmem:[%s346 + $0x58] sm:$0xff]
        %v1365 = vld [vmem:[%s346 + $0x60] sm:$0xff]
        %v1366 = vld [vmem:[%s346 + $0x68] sm:$0xff]
        %v1367 = vld [vmem:[%s346 + $0x70] sm:$0xff]
        %v1368 = vld [vmem:[%s346 + $0x78] sm:$0xff]
        %v1369 = vld [vmem:[%s346 + $0x80] sm:$0xff]
        %v1370 = vld [vmem:[%s346 + $0x88] sm:$0xff]
        %v1371 = vld [vmem:[%s346 + $0x90] sm:$0xff]
        %v1372 = vld [vmem:[%s346 + $0x98] sm:$0xff]
        %v1373 = vld [vmem:[%s346 + $0xa0] sm:$0xff]
        %v1374 = vld [vmem:[%s346 + $0xa8] sm:$0xff]
        %v1375 = vld [vmem:[%s346 + $0xb0] sm:$0xff]
        %v1376 = vld [vmem:[%s346 + $0xb8] sm:$0xff]
        %v1377 = vld [vmem:[%s346 + $0xc0] sm:$0xff]
        %v1378 = vld [vmem:[%s346 + $0xc8] sm:$0xff]
        %v1379 = vld [vmem:[%s346 + $0xd0] sm:$0xff]
        %v1380 = vld [vmem:[%s346 + $0xd8] sm:$0xff]
        %v1381 = vld [vmem:[%s346 + $0xe0] sm:$0xff]
        %v1382 = vld [vmem:[%s346 + $0xe8] sm:$0xff]
        %v1383 = vld [vmem:[%s346 + $0xf0] sm:$0xff]
        %v1384 = vld [vmem:[%s346 + $0xf8] sm:$0xff]
        %v1385 = vld [vmem:[%s346 + $0x100] sm:$0xff]
        %v1386 = vld [vmem:[%s346 + $0x108] sm:$0xff]
        %v1387 = vld [vmem:[%s346 + $0x110] sm:$0xff]
        %v1388 = vld [vmem:[%s346 + $0x118] sm:$0xff]
        %v1389 = vld [vmem:[%s346 + $0x120] sm:$0xff]
        %v1390 = vld [vmem:[%s346 + $0x128] sm:$0xff]
        %v1391 = vld [vmem:[%s346 + $0x130] sm:$0xff]
        %v1392 = vld [vmem:[%s346 + $0x138] sm:$0xff]
        %v1393 = vld [vmem:[%s346 + $0x140] sm:$0xff]
        %v1394 = vld [vmem:[%s346 + $0x148] sm:$0xff]
        %v1395 = vld [vmem:[%s346 + $0x150] sm:$0xff]
        %v1396 = vld [vmem:[%s346 + $0x158] sm:$0xff]
        %v1397 = vld [vmem:[%s346 + $0x160] sm:$0xff]
        %v1398 = vld [vmem:[%s346 + $0x168] sm:$0xff]
        %v1399 = vld [vmem:[%s346 + $0x170] sm:$0xff]
        %v1400 = vld [vmem:[%s346 + $0x178] sm:$0xff]
        %v1401 = vld [vmem:[%s346 + $0x180] sm:$0xff]
        %v1402 = vld [vmem:[%s346 + $0x188] sm:$0xff]
        %v1403 = vld [vmem:[%s346 + $0x190] sm:$0xff]
        %v1404 = vld [vmem:[%s346 + $0x198] sm:$0xff]
        %v1405 = vld [vmem:[%s346 + $0x1a0] sm:$0xff]
        %v1406 = vld [vmem:[%s346 + $0x1a8] sm:$0xff]
        %v1407 = vld [vmem:[%s346 + $0x1b0] sm:$0xff]
        %v1408 = vld [vmem:[%s346 + $0x1b8] sm:$0xff]
        %v1409 = vld [vmem:[%s346 + $0x1c0] sm:$0xff]
        %v1410 = vld [vmem:[%s346 + $0x1c8] sm:$0xff]
        %v1411 = vld [vmem:[%s346 + $0x1d0] sm:$0xff]
        %v1412 = vld [vmem:[%s346 + $0x1d8] sm:$0xff]
        %v1413 = vld [vmem:[%s346 + $0x1e0] sm:$0xff]
        %v1414 = vld [vmem:[%s346 + $0x1e8] sm:$0xff]
        %v1415 = vld [vmem:[%s346 + $0x1f0] sm:$0xff]
        %v1416 = vld [vmem:[%s346 + $0x1f8] sm:$0xff]
        %1417 = vmatpush.msra.mxu0 %v1413
        %1418 = vmatpush.msra.mxu0 %v1409
        %1419 = vmatpush.msra.mxu0 %v1405
        %1420 = vmatpush.msra.mxu0 %v1401
        %1421 = vmatpush.msra.mxu0 %v1397
        %1422 = vmatpush.msra.mxu0 %v1393
        %1423 = vmatpush.msra.mxu0 %v1389
        %1424 = vmatpush.msra.mxu0 %v1385
        %1425 = vmatpush.msra.mxu0 %v1381
        %1426 = vmatpush.msra.mxu0 %v1377
        %1427 = vmatpush.msra.mxu0 %v1373
        %1428 = vmatpush.msra.mxu0 %v1369
        %1429 = vmatpush.msra.mxu0 %v1365
        %1430 = vmatpush.msra.mxu0 %v1361
        %1431 = vmatpush.msra.mxu0 %v1357
        %1432 = vmatpush.msra.mxu0 %v1353
        %1433 = vmatmul.f32.gmra.mxu0 %v1350
        %v1434 = vpop.f32.mrf.mxu0
        %v1435 = vadd.f32 0.0, %v1434
        %1436 = vdwg.mxu0
        %1437 = vmatpush.msra.mxu0 %v1414
        %1438 = vmatpush.msra.mxu0 %v1410
        %1439 = vmatpush.msra.mxu0 %v1406
        %1440 = vmatpush.msra.mxu0 %v1402
        %1441 = vmatpush.msra.mxu0 %v1398
        %1442 = vmatpush.msra.mxu0 %v1394
        %1443 = vmatpush.msra.mxu0 %v1390
        %1444 = vmatpush.msra.mxu0 %v1386
        %1445 = vmatpush.msra.mxu0 %v1382
        %1446 = vmatpush.msra.mxu0 %v1378
        %1447 = vmatpush.msra.mxu0 %v1374
        %1448 = vmatpush.msra.mxu0 %v1370
        %1449 = vmatpush.msra.mxu0 %v1366
        %1450 = vmatpush.msra.mxu0 %v1362
        %1451 = vmatpush.msra.mxu0 %v1358
        %1452 = vmatpush.msra.mxu0 %v1354
        %1453 = vmatmul.f32.gmra.mxu0 %v1350
        %v1454 = vpop.f32.mrf.mxu0
        %v1455 = vadd.f32 0.0, %v1454
        %1456 = vdwg.mxu0
        %1457 = vmatpush.msra.mxu0 %v1415
        %1458 = vmatpush.msra.mxu0 %v1411
        %1459 = vmatpush.msra.mxu0 %v1407
        %1460 = vmatpush.msra.mxu0 %v1403
        %1461 = vmatpush.msra.mxu0 %v1399
        %1462 = vmatpush.msra.mxu0 %v1395
        %1463 = vmatpush.msra.mxu0 %v1391
        %1464 = vmatpush.msra.mxu0 %v1387
        %1465 = vmatpush.msra.mxu0 %v1383
        %1466 = vmatpush.msra.mxu0 %v1379
        %1467 = vmatpush.msra.mxu0 %v1375
        %1468 = vmatpush.msra.mxu0 %v1371
        %1469 = vmatpush.msra.mxu0 %v1367
        %1470 = vmatpush.msra.mxu0 %v1363
        %1471 = vmatpush.msra.mxu0 %v1359
        %1472 = vmatpush.msra.mxu0 %v1355
        %1473 = vmatmul.f32.gmra.mxu0 %v1350
        %v1474 = vpop.f32.mrf.mxu0
        %v1475 = vadd.f32 0.0, %v1474
        %1476 = vdwg.mxu0
        %1477 = vmatpush.msra.mxu0 %v1416
        %1478 = vmatpush.msra.mxu0 %v1412
        %1479 = vmatpush.msra.mxu0 %v1408
        %1480 = vmatpush.msra.mxu0 %v1404
        %1481 = vmatpush.msra.mxu0 %v1400
        %1482 = vmatpush.msra.mxu0 %v1396
        %1483 = vmatpush.msra.mxu0 %v1392
        %1484 = vmatpush.msra.mxu0 %v1388
        %1485 = vmatpush.msra.mxu0 %v1384
        %1486 = vmatpush.msra.mxu0 %v1380
        %1487 = vmatpush.msra.mxu0 %v1376
        %1488 = vmatpush.msra.mxu0 %v1372
        %1489 = vmatpush.msra.mxu0 %v1368
        %1490 = vmatpush.msra.mxu0 %v1364
        %1491 = vmatpush.msra.mxu0 %v1360
        %1492 = vmatpush.msra.mxu0 %v1356
        %1493 = vmatmul.f32.gmra.mxu0 %v1350
        %v1494 = vpop.f32.mrf.mxu0
        %v1495 = vadd.f32 0.0, %v1494
        %1496 = vdwg.mxu0
        %s1497 = smul.u32 3, 4
        %s1498 = smul.addr %s1497, 8
        %s1499 = scalar_lea.vmem [#allocation2], %s1498
        %v1500 = vld [vmem:[%s1499] sm:$0xff]
        %v1501 = vld [vmem:[%s1499 + $0x8] sm:$0xff]
        %v1502 = vld [vmem:[%s1499 + $0x10] sm:$0xff]
        %v1503 = vld [vmem:[%s1499 + $0x18] sm:$0xff]
        %v1504 = vadd.f32 %v1500, %v1435
        %v1505 = vadd.f32 %v1501, %v1455
        %v1506 = vadd.f32 %v1502, %v1475
        %v1507 = vadd.f32 %v1503, %v1495
        %v1508 = vxor.u32 %v1504, 2147483648
        %v1509 = vmul.f32 %v1508, 1.442695
        %v1510 = vpow.pop %v1509
        %v1511 = vadd.f32 %v1510, 1.0
        %v1512 = vrcp.pop %v1511
        %v1513 = vmul.f32 %v1511, %v1512
        %v1514 = vsub.f32 1.0, %v1513
        %v1515 = vmul.f32 %v1512, %v1514
        %v1516 = vadd.f32 %v1512, %v1515
        %vm1517 = vweird.f32 %v1511
        %vm1518 = vweird.f32 %v1512
        %vm1519 = vmor %vm1517, %vm1518
        %v1520 = vsel %vm1519, %v1512, %v1516
        %v1521 = vand.u32 2147483647, %v1511
        %vm1522 = vcmp.eq.f32.partialorder %v1521, 8.507059e+37
        %v1523 = vand.u32 %v1511, 2147483648
        %v1524 = vor.u32 1.1754944e-38, %v1523
        %v1525 = vsel %vm1522, %v1524, %v1520
        %v1526 = vmul.f32 1.0, %v1525
        %v1527 = vxor.u32 %v1505, 2147483648
        %v1528 = vmul.f32 %v1527, 1.442695
        %v1529 = vpow.pop %v1528
        %v1530 = vadd.f32 %v1529, 1.0
        %v1531 = vrcp.pop %v1530
        %v1532 = vmul.f32 %v1530, %v1531
        %v1533 = vsub.f32 1.0, %v1532
        %v1534 = vmul.f32 %v1531, %v1533
        %v1535 = vadd.f32 %v1531, %v1534
        %vm1536 = vweird.f32 %v1530
        %vm1537 = vweird.f32 %v1531
        %vm1538 = vmor %vm1536, %vm1537
        %v1539 = vsel %vm1538, %v1531, %v1535
        %v1540 = vand.u32 2147483647, %v1530
        %vm1541 = vcmp.eq.f32.partialorder %v1540, 8.507059e+37
        %v1542 = vand.u32 %v1530, 2147483648
        %v1543 = vor.u32 1.1754944e-38, %v1542
        %v1544 = vsel %vm1541, %v1543, %v1539
        %v1545 = vmul.f32 1.0, %v1544
        %v1546 = vtanh.pop %v1506
        %v1547 = vxor.u32 %v1507, 2147483648
        %v1548 = vmul.f32 %v1547, 1.442695
        %v1549 = vpow.pop %v1548
        %v1550 = vadd.f32 %v1549, 1.0
        %v1551 = vrcp.pop %v1550
        %v1552 = vmul.f32 %v1550, %v1551
        %v1553 = vsub.f32 1.0, %v1552
        %v1554 = vmul.f32 %v1551, %v1553
        %v1555 = vadd.f32 %v1551, %v1554
        %vm1556 = vweird.f32 %v1550
        %vm1557 = vweird.f32 %v1551
        %vm1558 = vmor %vm1556, %vm1557
        %v1559 = vsel %vm1558, %v1551, %v1555
        %v1560 = vand.u32 2147483647, %v1550
        %vm1561 = vcmp.eq.f32.partialorder %v1560, 8.507059e+37
        %v1562 = vand.u32 %v1550, 2147483648
        %v1563 = vor.u32 1.1754944e-38, %v1562
        %v1564 = vsel %vm1561, %v1563, %v1559
        %v1565 = vmul.f32 1.0, %v1564
        %v1566 = vmul.f32 %v1545, %v1348
        %v1567 = vmul.f32 %v1526, %v1546
        %v1568 = vadd.f32 %v1566, %v1567
        %v1569 = vtanh.pop %v1568
        %v1570 = vmul.f32 %v1565, %v1569
        %s1571 = scalar_lea.vmem [#allocation3], 24
        %1572 = vst [vmem:[%s1571] sm:$0xff] %v1570
        %v1573 = vld [vmem:[%s346] sm:$0xff]
        %v1574 = vld [vmem:[%s346 + $0x8] sm:$0xff]
        %v1575 = vld [vmem:[%s346 + $0x10] sm:$0xff]
        %v1576 = vld [vmem:[%s346 + $0x18] sm:$0xff]
        %v1577 = vld [vmem:[%s346 + $0x20] sm:$0xff]
        %v1578 = vld [vmem:[%s346 + $0x28] sm:$0xff]
        %v1579 = vld [vmem:[%s346 + $0x30] sm:$0xff]
        %v1580 = vld [vmem:[%s346 + $0x38] sm:$0xff]
        %v1581 = vld [vmem:[%s346 + $0x40] sm:$0xff]
        %v1582 = vld [vmem:[%s346 + $0x48] sm:$0xff]
        %v1583 = vld [vmem:[%s346 + $0x50] sm:$0xff]
        %v1584 = vld [vmem:[%s346 + $0x58] sm:$0xff]
        %v1585 = vld [vmem:[%s346 + $0x60] sm:$0xff]
        %v1586 = vld [vmem:[%s346 + $0x68] sm:$0xff]
        %v1587 = vld [vmem:[%s346 + $0x70] sm:$0xff]
        %v1588 = vld [vmem:[%s346 + $0x78] sm:$0xff]
        %v1589 = vld [vmem:[%s346 + $0x80] sm:$0xff]
        %v1590 = vld [vmem:[%s346 + $0x88] sm:$0xff]
        %v1591 = vld [vmem:[%s346 + $0x90] sm:$0xff]
        %v1592 = vld [vmem:[%s346 + $0x98] sm:$0xff]
        %v1593 = vld [vmem:[%s346 + $0xa0] sm:$0xff]
        %v1594 = vld [vmem:[%s346 + $0xa8] sm:$0xff]
        %v1595 = vld [vmem:[%s346 + $0xb0] sm:$0xff]
        %v1596 = vld [vmem:[%s346 + $0xb8] sm:$0xff]
        %v1597 = vld [vmem:[%s346 + $0xc0] sm:$0xff]
        %v1598 = vld [vmem:[%s346 + $0xc8] sm:$0xff]
        %v1599 = vld [vmem:[%s346 + $0xd0] sm:$0xff]
        %v1600 = vld [vmem:[%s346 + $0xd8] sm:$0xff]
        %v1601 = vld [vmem:[%s346 + $0xe0] sm:$0xff]
        %v1602 = vld [vmem:[%s346 + $0xe8] sm:$0xff]
        %v1603 = vld [vmem:[%s346 + $0xf0] sm:$0xff]
        %v1604 = vld [vmem:[%s346 + $0xf8] sm:$0xff]
        %v1605 = vld [vmem:[%s346 + $0x100] sm:$0xff]
        %v1606 = vld [vmem:[%s346 + $0x108] sm:$0xff]
        %v1607 = vld [vmem:[%s346 + $0x110] sm:$0xff]
        %v1608 = vld [vmem:[%s346 + $0x118] sm:$0xff]
        %v1609 = vld [vmem:[%s346 + $0x120] sm:$0xff]
        %v1610 = vld [vmem:[%s346 + $0x128] sm:$0xff]
        %v1611 = vld [vmem:[%s346 + $0x130] sm:$0xff]
        %v1612 = vld [vmem:[%s346 + $0x138] sm:$0xff]
        %v1613 = vld [vmem:[%s346 + $0x140] sm:$0xff]
        %v1614 = vld [vmem:[%s346 + $0x148] sm:$0xff]
        %v1615 = vld [vmem:[%s346 + $0x150] sm:$0xff]
        %v1616 = vld [vmem:[%s346 + $0x158] sm:$0xff]
        %v1617 = vld [vmem:[%s346 + $0x160] sm:$0xff]
        %v1618 = vld [vmem:[%s346 + $0x168] sm:$0xff]
        %v1619 = vld [vmem:[%s346 + $0x170] sm:$0xff]
        %v1620 = vld [vmem:[%s346 + $0x178] sm:$0xff]
        %v1621 = vld [vmem:[%s346 + $0x180] sm:$0xff]
        %v1622 = vld [vmem:[%s346 + $0x188] sm:$0xff]
        %v1623 = vld [vmem:[%s346 + $0x190] sm:$0xff]
        %v1624 = vld [vmem:[%s346 + $0x198] sm:$0xff]
        %v1625 = vld [vmem:[%s346 + $0x1a0] sm:$0xff]
        %v1626 = vld [vmem:[%s346 + $0x1a8] sm:$0xff]
        %v1627 = vld [vmem:[%s346 + $0x1b0] sm:$0xff]
        %v1628 = vld [vmem:[%s346 + $0x1b8] sm:$0xff]
        %v1629 = vld [vmem:[%s346 + $0x1c0] sm:$0xff]
        %v1630 = vld [vmem:[%s346 + $0x1c8] sm:$0xff]
        %v1631 = vld [vmem:[%s346 + $0x1d0] sm:$0xff]
        %v1632 = vld [vmem:[%s346 + $0x1d8] sm:$0xff]
        %v1633 = vld [vmem:[%s346 + $0x1e0] sm:$0xff]
        %v1634 = vld [vmem:[%s346 + $0x1e8] sm:$0xff]
        %v1635 = vld [vmem:[%s346 + $0x1f0] sm:$0xff]
        %v1636 = vld [vmem:[%s346 + $0x1f8] sm:$0xff]
        %1637 = vmatpush.msra.mxu0 %v1633
        %1638 = vmatpush.msra.mxu0 %v1629
        %1639 = vmatpush.msra.mxu0 %v1625
        %1640 = vmatpush.msra.mxu0 %v1621
        %1641 = vmatpush.msra.mxu0 %v1617
        %1642 = vmatpush.msra.mxu0 %v1613
        %1643 = vmatpush.msra.mxu0 %v1609
        %1644 = vmatpush.msra.mxu0 %v1605
        %1645 = vmatpush.msra.mxu0 %v1601
        %1646 = vmatpush.msra.mxu0 %v1597
        %1647 = vmatpush.msra.mxu0 %v1593
        %1648 = vmatpush.msra.mxu0 %v1589
        %1649 = vmatpush.msra.mxu0 %v1585
        %1650 = vmatpush.msra.mxu0 %v1581
        %1651 = vmatpush.msra.mxu0 %v1577
        %1652 = vmatpush.msra.mxu0 %v1573
        %1653 = vmatmul.f32.gmra.mxu0 %v1570
        %v1654 = vpop.f32.mrf.mxu0
        %v1655 = vadd.f32 0.0, %v1654
        %1656 = vdwg.mxu0
        %1657 = vmatpush.msra.mxu0 %v1634
        %1658 = vmatpush.msra.mxu0 %v1630
        %1659 = vmatpush.msra.mxu0 %v1626
        %1660 = vmatpush.msra.mxu0 %v1622
        %1661 = vmatpush.msra.mxu0 %v1618
        %1662 = vmatpush.msra.mxu0 %v1614
        %1663 = vmatpush.msra.mxu0 %v1610
        %1664 = vmatpush.msra.mxu0 %v1606
        %1665 = vmatpush.msra.mxu0 %v1602
        %1666 = vmatpush.msra.mxu0 %v1598
        %1667 = vmatpush.msra.mxu0 %v1594
        %1668 = vmatpush.msra.mxu0 %v1590
        %1669 = vmatpush.msra.mxu0 %v1586
        %1670 = vmatpush.msra.mxu0 %v1582
        %1671 = vmatpush.msra.mxu0 %v1578
        %1672 = vmatpush.msra.mxu0 %v1574
        %1673 = vmatmul.f32.gmra.mxu0 %v1570
        %v1674 = vpop.f32.mrf.mxu0
        %v1675 = vadd.f32 0.0, %v1674
        %1676 = vdwg.mxu0
        %1677 = vmatpush.msra.mxu0 %v1635
        %1678 = vmatpush.msra.mxu0 %v1631
        %1679 = vmatpush.msra.mxu0 %v1627
        %1680 = vmatpush.msra.mxu0 %v1623
        %1681 = vmatpush.msra.mxu0 %v1619
        %1682 = vmatpush.msra.mxu0 %v1615
        %1683 = vmatpush.msra.mxu0 %v1611
        %1684 = vmatpush.msra.mxu0 %v1607
        %1685 = vmatpush.msra.mxu0 %v1603
        %1686 = vmatpush.msra.mxu0 %v1599
        %1687 = vmatpush.msra.mxu0 %v1595
        %1688 = vmatpush.msra.mxu0 %v1591
        %1689 = vmatpush.msra.mxu0 %v1587
        %1690 = vmatpush.msra.mxu0 %v1583
        %1691 = vmatpush.msra.mxu0 %v1579
        %1692 = vmatpush.msra.mxu0 %v1575
        %1693 = vmatmul.f32.gmra.mxu0 %v1570
        %v1694 = vpop.f32.mrf.mxu0
        %v1695 = vadd.f32 0.0, %v1694
        %1696 = vdwg.mxu0
        %1697 = vmatpush.msra.mxu0 %v1636
        %1698 = vmatpush.msra.mxu0 %v1632
        %1699 = vmatpush.msra.mxu0 %v1628
        %1700 = vmatpush.msra.mxu0 %v1624
        %1701 = vmatpush.msra.mxu0 %v1620
        %1702 = vmatpush.msra.mxu0 %v1616
        %1703 = vmatpush.msra.mxu0 %v1612
        %1704 = vmatpush.msra.mxu0 %v1608
        %1705 = vmatpush.msra.mxu0 %v1604
        %1706 = vmatpush.msra.mxu0 %v1600
        %1707 = vmatpush.msra.mxu0 %v1596
        %1708 = vmatpush.msra.mxu0 %v1592
        %1709 = vmatpush.msra.mxu0 %v1588
        %1710 = vmatpush.msra.mxu0 %v1584
        %1711 = vmatpush.msra.mxu0 %v1580
        %1712 = vmatpush.msra.mxu0 %v1576
        %1713 = vmatmul.f32.gmra.mxu0 %v1570
        %v1714 = vpop.f32.mrf.mxu0
        %v1715 = vadd.f32 0.0, %v1714
        %1716 = vdwg.mxu0
        %s1717 = smul.u32 4, 4
        %s1718 = smul.addr %s1717, 8
        %s1719 = scalar_lea.vmem [#allocation2], %s1718
        %v1720 = vld [vmem:[%s1719] sm:$0xff]
        %v1721 = vld [vmem:[%s1719 + $0x8] sm:$0xff]
        %v1722 = vld [vmem:[%s1719 + $0x10] sm:$0xff]
        %v1723 = vld [vmem:[%s1719 + $0x18] sm:$0xff]
        %v1724 = vadd.f32 %v1720, %v1655
        %v1725 = vadd.f32 %v1721, %v1675
        %v1726 = vadd.f32 %v1722, %v1695
        %v1727 = vadd.f32 %v1723, %v1715
        %v1728 = vxor.u32 %v1724, 2147483648
        %v1729 = vmul.f32 %v1728, 1.442695
        %v1730 = vpow.pop %v1729
        %v1731 = vadd.f32 %v1730, 1.0
        %v1732 = vrcp.pop %v1731
        %v1733 = vmul.f32 %v1731, %v1732
        %v1734 = vsub.f32 1.0, %v1733
        %v1735 = vmul.f32 %v1732, %v1734
        %v1736 = vadd.f32 %v1732, %v1735
        %vm1737 = vweird.f32 %v1731
        %vm1738 = vweird.f32 %v1732
        %vm1739 = vmor %vm1737, %vm1738
        %v1740 = vsel %vm1739, %v1732, %v1736
        %v1741 = vand.u32 2147483647, %v1731
        %vm1742 = vcmp.eq.f32.partialorder %v1741, 8.507059e+37
        %v1743 = vand.u32 %v1731, 2147483648
        %v1744 = vor.u32 1.1754944e-38, %v1743
        %v1745 = vsel %vm1742, %v1744, %v1740
        %v1746 = vmul.f32 1.0, %v1745
        %v1747 = vxor.u32 %v1725, 2147483648
        %v1748 = vmul.f32 %v1747, 1.442695
        %v1749 = vpow.pop %v1748
        %v1750 = vadd.f32 %v1749, 1.0
        %v1751 = vrcp.pop %v1750
        %v1752 = vmul.f32 %v1750, %v1751
        %v1753 = vsub.f32 1.0, %v1752
        %v1754 = vmul.f32 %v1751, %v1753
        %v1755 = vadd.f32 %v1751, %v1754
        %vm1756 = vweird.f32 %v1750
        %vm1757 = vweird.f32 %v1751
        %vm1758 = vmor %vm1756, %vm1757
        %v1759 = vsel %vm1758, %v1751, %v1755
        %v1760 = vand.u32 2147483647, %v1750
        %vm1761 = vcmp.eq.f32.partialorder %v1760, 8.507059e+37
        %v1762 = vand.u32 %v1750, 2147483648
        %v1763 = vor.u32 1.1754944e-38, %v1762
        %v1764 = vsel %vm1761, %v1763, %v1759
        %v1765 = vmul.f32 1.0, %v1764
        %v1766 = vtanh.pop %v1726
        %v1767 = vxor.u32 %v1727, 2147483648
        %v1768 = vmul.f32 %v1767, 1.442695
        %v1769 = vpow.pop %v1768
        %v1770 = vadd.f32 %v1769, 1.0
        %v1771 = vrcp.pop %v1770
        %v1772 = vmul.f32 %v1770, %v1771
        %v1773 = vsub.f32 1.0, %v1772
        %v1774 = vmul.f32 %v1771, %v1773
        %v1775 = vadd.f32 %v1771, %v1774
        %vm1776 = vweird.f32 %v1770
        %vm1777 = vweird.f32 %v1771
        %vm1778 = vmor %vm1776, %vm1777
        %v1779 = vsel %vm1778, %v1771, %v1775
        %v1780 = vand.u32 2147483647, %v1770
        %vm1781 = vcmp.eq.f32.partialorder %v1780, 8.507059e+37
        %v1782 = vand.u32 %v1770, 2147483648
        %v1783 = vor.u32 1.1754944e-38, %v1782
        %v1784 = vsel %vm1781, %v1783, %v1779
        %v1785 = vmul.f32 1.0, %v1784
        %v1786 = vmul.f32 %v1765, %v1568
        %v1787 = vmul.f32 %v1746, %v1766
        %v1788 = vadd.f32 %v1786, %v1787
        %v1789 = vtanh.pop %v1788
        %v1790 = vmul.f32 %v1785, %v1789
        %s1791 = scalar_lea.vmem [#allocation3], 32
        %1792 = vst [vmem:[%s1791] sm:$0xff] %v1790
        %v1793 = vld [vmem:[%s346] sm:$0xff]
        %v1794 = vld [vmem:[%s346 + $0x8] sm:$0xff]
        %v1795 = vld [vmem:[%s346 + $0x10] sm:$0xff]
        %v1796 = vld [vmem:[%s346 + $0x18] sm:$0xff]
        %v1797 = vld [vmem:[%s346 + $0x20] sm:$0xff]
        %v1798 = vld [vmem:[%s346 + $0x28] sm:$0xff]
        %v1799 = vld [vmem:[%s346 + $0x30] sm:$0xff]
        %v1800 = vld [vmem:[%s346 + $0x38] sm:$0xff]
        %v1801 = vld [vmem:[%s346 + $0x40] sm:$0xff]
        %v1802 = vld [vmem:[%s346 + $0x48] sm:$0xff]
        %v1803 = vld [vmem:[%s346 + $0x50] sm:$0xff]
        %v1804 = vld [vmem:[%s346 + $0x58] sm:$0xff]
        %v1805 = vld [vmem:[%s346 + $0x60] sm:$0xff]
        %v1806 = vld [vmem:[%s346 + $0x68] sm:$0xff]
        %v1807 = vld [vmem:[%s346 + $0x70] sm:$0xff]
        %v1808 = vld [vmem:[%s346 + $0x78] sm:$0xff]
        %v1809 = vld [vmem:[%s346 + $0x80] sm:$0xff]
        %v1810 = vld [vmem:[%s346 + $0x88] sm:$0xff]
        %v1811 = vld [vmem:[%s346 + $0x90] sm:$0xff]
        %v1812 = vld [vmem:[%s346 + $0x98] sm:$0xff]
        %v1813 = vld [vmem:[%s346 + $0xa0] sm:$0xff]
        %v1814 = vld [vmem:[%s346 + $0xa8] sm:$0xff]
        %v1815 = vld [vmem:[%s346 + $0xb0] sm:$0xff]
        %v1816 = vld [vmem:[%s346 + $0xb8] sm:$0xff]
        %v1817 = vld [vmem:[%s346 + $0xc0] sm:$0xff]
        %v1818 = vld [vmem:[%s346 + $0xc8] sm:$0xff]
        %v1819 = vld [vmem:[%s346 + $0xd0] sm:$0xff]
        %v1820 = vld [vmem:[%s346 + $0xd8] sm:$0xff]
        %v1821 = vld [vmem:[%s346 + $0xe0] sm:$0xff]
        %v1822 = vld [vmem:[%s346 + $0xe8] sm:$0xff]
        %v1823 = vld [vmem:[%s346 + $0xf0] sm:$0xff]
        %v1824 = vld [vmem:[%s346 + $0xf8] sm:$0xff]
        %v1825 = vld [vmem:[%s346 + $0x100] sm:$0xff]
        %v1826 = vld [vmem:[%s346 + $0x108] sm:$0xff]
        %v1827 = vld [vmem:[%s346 + $0x110] sm:$0xff]
        %v1828 = vld [vmem:[%s346 + $0x118] sm:$0xff]
        %v1829 = vld [vmem:[%s346 + $0x120] sm:$0xff]
        %v1830 = vld [vmem:[%s346 + $0x128] sm:$0xff]
        %v1831 = vld [vmem:[%s346 + $0x130] sm:$0xff]
        %v1832 = vld [vmem:[%s346 + $0x138] sm:$0xff]
        %v1833 = vld [vmem:[%s346 + $0x140] sm:$0xff]
        %v1834 = vld [vmem:[%s346 + $0x148] sm:$0xff]
        %v1835 = vld [vmem:[%s346 + $0x150] sm:$0xff]
        %v1836 = vld [vmem:[%s346 + $0x158] sm:$0xff]
        %v1837 = vld [vmem:[%s346 + $0x160] sm:$0xff]
        %v1838 = vld [vmem:[%s346 + $0x168] sm:$0xff]
        %v1839 = vld [vmem:[%s346 + $0x170] sm:$0xff]
        %v1840 = vld [vmem:[%s346 + $0x178] sm:$0xff]
        %v1841 = vld [vmem:[%s346 + $0x180] sm:$0xff]
        %v1842 = vld [vmem:[%s346 + $0x188] sm:$0xff]
        %v1843 = vld [vmem:[%s346 + $0x190] sm:$0xff]
        %v1844 = vld [vmem:[%s346 + $0x198] sm:$0xff]
        %v1845 = vld [vmem:[%s346 + $0x1a0] sm:$0xff]
        %v1846 = vld [vmem:[%s346 + $0x1a8] sm:$0xff]
        %v1847 = vld [vmem:[%s346 + $0x1b0] sm:$0xff]
        %v1848 = vld [vmem:[%s346 + $0x1b8] sm:$0xff]
        %v1849 = vld [vmem:[%s346 + $0x1c0] sm:$0xff]
        %v1850 = vld [vmem:[%s346 + $0x1c8] sm:$0xff]
        %v1851 = vld [vmem:[%s346 + $0x1d0] sm:$0xff]
        %v1852 = vld [vmem:[%s346 + $0x1d8] sm:$0xff]
        %v1853 = vld [vmem:[%s346 + $0x1e0] sm:$0xff]
        %v1854 = vld [vmem:[%s346 + $0x1e8] sm:$0xff]
        %v1855 = vld [vmem:[%s346 + $0x1f0] sm:$0xff]
        %v1856 = vld [vmem:[%s346 + $0x1f8] sm:$0xff]
        %1857 = vmatpush.msra.mxu0 %v1853
        %1858 = vmatpush.msra.mxu0 %v1849
        %1859 = vmatpush.msra.mxu0 %v1845
        %1860 = vmatpush.msra.mxu0 %v1841
        %1861 = vmatpush.msra.mxu0 %v1837
        %1862 = vmatpush.msra.mxu0 %v1833
        %1863 = vmatpush.msra.mxu0 %v1829
        %1864 = vmatpush.msra.mxu0 %v1825
        %1865 = vmatpush.msra.mxu0 %v1821
        %1866 = vmatpush.msra.mxu0 %v1817
        %1867 = vmatpush.msra.mxu0 %v1813
        %1868 = vmatpush.msra.mxu0 %v1809
        %1869 = vmatpush.msra.mxu0 %v1805
        %1870 = vmatpush.msra.mxu0 %v1801
        %1871 = vmatpush.msra.mxu0 %v1797
        %1872 = vmatpush.msra.mxu0 %v1793
        %1873 = vmatmul.f32.gmra.mxu0 %v1790
        %v1874 = vpop.f32.mrf.mxu0
        %v1875 = vadd.f32 0.0, %v1874
        %1876 = vdwg.mxu0
        %1877 = vmatpush.msra.mxu0 %v1854
        %1878 = vmatpush.msra.mxu0 %v1850
        %1879 = vmatpush.msra.mxu0 %v1846
        %1880 = vmatpush.msra.mxu0 %v1842
        %1881 = vmatpush.msra.mxu0 %v1838
        %1882 = vmatpush.msra.mxu0 %v1834
        %1883 = vmatpush.msra.mxu0 %v1830
        %1884 = vmatpush.msra.mxu0 %v1826
        %1885 = vmatpush.msra.mxu0 %v1822
        %1886 = vmatpush.msra.mxu0 %v1818
        %1887 = vmatpush.msra.mxu0 %v1814
        %1888 = vmatpush.msra.mxu0 %v1810
        %1889 = vmatpush.msra.mxu0 %v1806
        %1890 = vmatpush.msra.mxu0 %v1802
        %1891 = vmatpush.msra.mxu0 %v1798
        %1892 = vmatpush.msra.mxu0 %v1794
        %1893 = vmatmul.f32.gmra.mxu0 %v1790
        %v1894 = vpop.f32.mrf.mxu0
        %v1895 = vadd.f32 0.0, %v1894
        %1896 = vdwg.mxu0
        %1897 = vmatpush.msra.mxu0 %v1855
        %1898 = vmatpush.msra.mxu0 %v1851
        %1899 = vmatpush.msra.mxu0 %v1847
        %1900 = vmatpush.msra.mxu0 %v1843
        %1901 = vmatpush.msra.mxu0 %v1839
        %1902 = vmatpush.msra.mxu0 %v1835
        %1903 = vmatpush.msra.mxu0 %v1831
        %1904 = vmatpush.msra.mxu0 %v1827
        %1905 = vmatpush.msra.mxu0 %v1823
        %1906 = vmatpush.msra.mxu0 %v1819
        %1907 = vmatpush.msra.mxu0 %v1815
        %1908 = vmatpush.msra.mxu0 %v1811
        %1909 = vmatpush.msra.mxu0 %v1807
        %1910 = vmatpush.msra.mxu0 %v1803
        %1911 = vmatpush.msra.mxu0 %v1799
        %1912 = vmatpush.msra.mxu0 %v1795
        %1913 = vmatmul.f32.gmra.mxu0 %v1790
        %v1914 = vpop.f32.mrf.mxu0
        %v1915 = vadd.f32 0.0, %v1914
        %1916 = vdwg.mxu0
        %1917 = vmatpush.msra.mxu0 %v1856
        %1918 = vmatpush.msra.mxu0 %v1852
        %1919 = vmatpush.msra.mxu0 %v1848
        %1920 = vmatpush.msra.mxu0 %v1844
        %1921 = vmatpush.msra.mxu0 %v1840
        %1922 = vmatpush.msra.mxu0 %v1836
        %1923 = vmatpush.msra.mxu0 %v1832
        %1924 = vmatpush.msra.mxu0 %v1828
        %1925 = vmatpush.msra.mxu0 %v1824
        %1926 = vmatpush.msra.mxu0 %v1820
        %1927 = vmatpush.msra.mxu0 %v1816
        %1928 = vmatpush.msra.mxu0 %v1812
        %1929 = vmatpush.msra.mxu0 %v1808
        %1930 = vmatpush.msra.mxu0 %v1804
        %1931 = vmatpush.msra.mxu0 %v1800
        %1932 = vmatpush.msra.mxu0 %v1796
        %1933 = vmatmul.f32.gmra.mxu0 %v1790
        %v1934 = vpop.f32.mrf.mxu0
        %v1935 = vadd.f32 0.0, %v1934
        %1936 = vdwg.mxu0
        %s1937 = smul.u32 5, 4
        %s1938 = smul.addr %s1937, 8
        %s1939 = scalar_lea.vmem [#allocation2], %s1938
        %v1940 = vld [vmem:[%s1939] sm:$0xff]
        %v1941 = vld [vmem:[%s1939 + $0x8] sm:$0xff]
        %v1942 = vld [vmem:[%s1939 + $0x10] sm:$0xff]
        %v1943 = vld [vmem:[%s1939 + $0x18] sm:$0xff]
        %v1944 = vadd.f32 %v1940, %v1875
        %v1945 = vadd.f32 %v1941, %v1895
        %v1946 = vadd.f32 %v1942, %v1915
        %v1947 = vadd.f32 %v1943, %v1935
        %v1948 = vxor.u32 %v1944, 2147483648
        %v1949 = vmul.f32 %v1948, 1.442695
        %v1950 = vpow.pop %v1949
        %v1951 = vadd.f32 %v1950, 1.0
        %v1952 = vrcp.pop %v1951
        %v1953 = vmul.f32 %v1951, %v1952
        %v1954 = vsub.f32 1.0, %v1953
        %v1955 = vmul.f32 %v1952, %v1954
        %v1956 = vadd.f32 %v1952, %v1955
        %vm1957 = vweird.f32 %v1951
        %vm1958 = vweird.f32 %v1952
        %vm1959 = vmor %vm1957, %vm1958
        %v1960 = vsel %vm1959, %v1952, %v1956
        %v1961 = vand.u32 2147483647, %v1951
        %vm1962 = vcmp.eq.f32.partialorder %v1961, 8.507059e+37
        %v1963 = vand.u32 %v1951, 2147483648
        %v1964 = vor.u32 1.1754944e-38, %v1963
        %v1965 = vsel %vm1962, %v1964, %v1960
        %v1966 = vmul.f32 1.0, %v1965
        %v1967 = vxor.u32 %v1945, 2147483648
        %v1968 = vmul.f32 %v1967, 1.442695
        %v1969 = vpow.pop %v1968
        %v1970 = vadd.f32 %v1969, 1.0
        %v1971 = vrcp.pop %v1970
        %v1972 = vmul.f32 %v1970, %v1971
        %v1973 = vsub.f32 1.0, %v1972
        %v1974 = vmul.f32 %v1971, %v1973
        %v1975 = vadd.f32 %v1971, %v1974
        %vm1976 = vweird.f32 %v1970
        %vm1977 = vweird.f32 %v1971
        %vm1978 = vmor %vm1976, %vm1977
        %v1979 = vsel %vm1978, %v1971, %v1975
        %v1980 = vand.u32 2147483647, %v1970
        %vm1981 = vcmp.eq.f32.partialorder %v1980, 8.507059e+37
        %v1982 = vand.u32 %v1970, 2147483648
        %v1983 = vor.u32 1.1754944e-38, %v1982
        %v1984 = vsel %vm1981, %v1983, %v1979
        %v1985 = vmul.f32 1.0, %v1984
        %v1986 = vtanh.pop %v1946
        %v1987 = vxor.u32 %v1947, 2147483648
        %v1988 = vmul.f32 %v1987, 1.442695
        %v1989 = vpow.pop %v1988
        %v1990 = vadd.f32 %v1989, 1.0
        %v1991 = vrcp.pop %v1990
        %v1992 = vmul.f32 %v1990, %v1991
        %v1993 = vsub.f32 1.0, %v1992
        %v1994 = vmul.f32 %v1991, %v1993
        %v1995 = vadd.f32 %v1991, %v1994
        %vm1996 = vweird.f32 %v1990
        %vm1997 = vweird.f32 %v1991
        %vm1998 = vmor %vm1996, %vm1997
        %v1999 = vsel %vm1998, %v1991, %v1995
        %v2000 = vand.u32 2147483647, %v1990
        %vm2001 = vcmp.eq.f32.partialorder %v2000, 8.507059e+37
        %v2002 = vand.u32 %v1990, 2147483648
        %v2003 = vor.u32 1.1754944e-38, %v2002
        %v2004 = vsel %vm2001, %v2003, %v1999
        %v2005 = vmul.f32 1.0, %v2004
        %v2006 = vmul.f32 %v1985, %v1788
        %v2007 = vmul.f32 %v1966, %v1986
        %v2008 = vadd.f32 %v2006, %v2007
        %v2009 = vtanh.pop %v2008
        %v2010 = vmul.f32 %v2005, %v2009
        %s2011 = scalar_lea.vmem [#allocation3], 40
        %2012 = vst [vmem:[%s2011] sm:$0xff] %v2010
        %v2013 = vld [vmem:[%s346] sm:$0xff]
        %v2014 = vld [vmem:[%s346 + $0x8] sm:$0xff]
        %v2015 = vld [vmem:[%s346 + $0x10] sm:$0xff]
        %v2016 = vld [vmem:[%s346 + $0x18] sm:$0xff]
        %v2017 = vld [vmem:[%s346 + $0x20] sm:$0xff]
        %v2018 = vld [vmem:[%s346 + $0x28] sm:$0xff]
        %v2019 = vld [vmem:[%s346 + $0x30] sm:$0xff]
        %v2020 = vld [vmem:[%s346 + $0x38] sm:$0xff]
        %v2021 = vld [vmem:[%s346 + $0x40] sm:$0xff]
        %v2022 = vld [vmem:[%s346 + $0x48] sm:$0xff]
        %v2023 = vld [vmem:[%s346 + $0x50] sm:$0xff]
        %v2024 = vld [vmem:[%s346 + $0x58] sm:$0xff]
        %v2025 = vld [vmem:[%s346 + $0x60] sm:$0xff]
        %v2026 = vld [vmem:[%s346 + $0x68] sm:$0xff]
        %v2027 = vld [vmem:[%s346 + $0x70] sm:$0xff]
        %v2028 = vld [vmem:[%s346 + $0x78] sm:$0xff]
        %v2029 = vld [vmem:[%s346 + $0x80] sm:$0xff]
        %v2030 = vld [vmem:[%s346 + $0x88] sm:$0xff]
        %v2031 = vld [vmem:[%s346 + $0x90] sm:$0xff]
        %v2032 = vld [vmem:[%s346 + $0x98] sm:$0xff]
        %v2033 = vld [vmem:[%s346 + $0xa0] sm:$0xff]
        %v2034 = vld [vmem:[%s346 + $0xa8] sm:$0xff]
        %v2035 = vld [vmem:[%s346 + $0xb0] sm:$0xff]
        %v2036 = vld [vmem:[%s346 + $0xb8] sm:$0xff]
        %v2037 = vld [vmem:[%s346 + $0xc0] sm:$0xff]
        %v2038 = vld [vmem:[%s346 + $0xc8] sm:$0xff]
        %v2039 = vld [vmem:[%s346 + $0xd0] sm:$0xff]
        %v2040 = vld [vmem:[%s346 + $0xd8] sm:$0xff]
        %v2041 = vld [vmem:[%s346 + $0xe0] sm:$0xff]
        %v2042 = vld [vmem:[%s346 + $0xe8] sm:$0xff]
        %v2043 = vld [vmem:[%s346 + $0xf0] sm:$0xff]
        %v2044 = vld [vmem:[%s346 + $0xf8] sm:$0xff]
        %v2045 = vld [vmem:[%s346 + $0x100] sm:$0xff]
        %v2046 = vld [vmem:[%s346 + $0x108] sm:$0xff]
        %v2047 = vld [vmem:[%s346 + $0x110] sm:$0xff]
        %v2048 = vld [vmem:[%s346 + $0x118] sm:$0xff]
        %v2049 = vld [vmem:[%s346 + $0x120] sm:$0xff]
        %v2050 = vld [vmem:[%s346 + $0x128] sm:$0xff]
        %v2051 = vld [vmem:[%s346 + $0x130] sm:$0xff]
        %v2052 = vld [vmem:[%s346 + $0x138] sm:$0xff]
        %v2053 = vld [vmem:[%s346 + $0x140] sm:$0xff]
        %v2054 = vld [vmem:[%s346 + $0x148] sm:$0xff]
        %v2055 = vld [vmem:[%s346 + $0x150] sm:$0xff]
        %v2056 = vld [vmem:[%s346 + $0x158] sm:$0xff]
        %v2057 = vld [vmem:[%s346 + $0x160] sm:$0xff]
        %v2058 = vld [vmem:[%s346 + $0x168] sm:$0xff]
        %v2059 = vld [vmem:[%s346 + $0x170] sm:$0xff]
        %v2060 = vld [vmem:[%s346 + $0x178] sm:$0xff]
        %v2061 = vld [vmem:[%s346 + $0x180] sm:$0xff]
        %v2062 = vld [vmem:[%s346 + $0x188] sm:$0xff]
        %v2063 = vld [vmem:[%s346 + $0x190] sm:$0xff]
        %v2064 = vld [vmem:[%s346 + $0x198] sm:$0xff]
        %v2065 = vld [vmem:[%s346 + $0x1a0] sm:$0xff]
        %v2066 = vld [vmem:[%s346 + $0x1a8] sm:$0xff]
        %v2067 = vld [vmem:[%s346 + $0x1b0] sm:$0xff]
        %v2068 = vld [vmem:[%s346 + $0x1b8] sm:$0xff]
        %v2069 = vld [vmem:[%s346 + $0x1c0] sm:$0xff]
        %v2070 = vld [vmem:[%s346 + $0x1c8] sm:$0xff]
        %v2071 = vld [vmem:[%s346 + $0x1d0] sm:$0xff]
        %v2072 = vld [vmem:[%s346 + $0x1d8] sm:$0xff]
        %v2073 = vld [vmem:[%s346 + $0x1e0] sm:$0xff]
        %v2074 = vld [vmem:[%s346 + $0x1e8] sm:$0xff]
        %v2075 = vld [vmem:[%s346 + $0x1f0] sm:$0xff]
        %v2076 = vld [vmem:[%s346 + $0x1f8] sm:$0xff]
        %2077 = vmatpush.msra.mxu0 %v2073
        %2078 = vmatpush.msra.mxu0 %v2069
        %2079 = vmatpush.msra.mxu0 %v2065
        %2080 = vmatpush.msra.mxu0 %v2061
        %2081 = vmatpush.msra.mxu0 %v2057
        %2082 = vmatpush.msra.mxu0 %v2053
        %2083 = vmatpush.msra.mxu0 %v2049
        %2084 = vmatpush.msra.mxu0 %v2045
        %2085 = vmatpush.msra.mxu0 %v2041
        %2086 = vmatpush.msra.mxu0 %v2037
        %2087 = vmatpush.msra.mxu0 %v2033
        %2088 = vmatpush.msra.mxu0 %v2029
        %2089 = vmatpush.msra.mxu0 %v2025
        %2090 = vmatpush.msra.mxu0 %v2021
        %2091 = vmatpush.msra.mxu0 %v2017
        %2092 = vmatpush.msra.mxu0 %v2013
        %2093 = vmatmul.f32.gmra.mxu0 %v2010
        %v2094 = vpop.f32.mrf.mxu0
        %v2095 = vadd.f32 0.0, %v2094
        %2096 = vdwg.mxu0
        %2097 = vmatpush.msra.mxu0 %v2074
        %2098 = vmatpush.msra.mxu0 %v2070
        %2099 = vmatpush.msra.mxu0 %v2066
        %2100 = vmatpush.msra.mxu0 %v2062
        %2101 = vmatpush.msra.mxu0 %v2058
        %2102 = vmatpush.msra.mxu0 %v2054
        %2103 = vmatpush.msra.mxu0 %v2050
        %2104 = vmatpush.msra.mxu0 %v2046
        %2105 = vmatpush.msra.mxu0 %v2042
        %2106 = vmatpush.msra.mxu0 %v2038
        %2107 = vmatpush.msra.mxu0 %v2034
        %2108 = vmatpush.msra.mxu0 %v2030
        %2109 = vmatpush.msra.mxu0 %v2026
        %2110 = vmatpush.msra.mxu0 %v2022
        %2111 = vmatpush.msra.mxu0 %v2018
        %2112 = vmatpush.msra.mxu0 %v2014
        %2113 = vmatmul.f32.gmra.mxu0 %v2010
        %v2114 = vpop.f32.mrf.mxu0
        %v2115 = vadd.f32 0.0, %v2114
        %2116 = vdwg.mxu0
        %2117 = vmatpush.msra.mxu0 %v2075
        %2118 = vmatpush.msra.mxu0 %v2071
        %2119 = vmatpush.msra.mxu0 %v2067
        %2120 = vmatpush.msra.mxu0 %v2063
        %2121 = vmatpush.msra.mxu0 %v2059
        %2122 = vmatpush.msra.mxu0 %v2055
        %2123 = vmatpush.msra.mxu0 %v2051
        %2124 = vmatpush.msra.mxu0 %v2047
        %2125 = vmatpush.msra.mxu0 %v2043
        %2126 = vmatpush.msra.mxu0 %v2039
        %2127 = vmatpush.msra.mxu0 %v2035
        %2128 = vmatpush.msra.mxu0 %v2031
        %2129 = vmatpush.msra.mxu0 %v2027
        %2130 = vmatpush.msra.mxu0 %v2023
        %2131 = vmatpush.msra.mxu0 %v2019
        %2132 = vmatpush.msra.mxu0 %v2015
        %2133 = vmatmul.f32.gmra.mxu0 %v2010
        %v2134 = vpop.f32.mrf.mxu0
        %v2135 = vadd.f32 0.0, %v2134
        %2136 = vdwg.mxu0
        %2137 = vmatpush.msra.mxu0 %v2076
        %2138 = vmatpush.msra.mxu0 %v2072
        %2139 = vmatpush.msra.mxu0 %v2068
        %2140 = vmatpush.msra.mxu0 %v2064
        %2141 = vmatpush.msra.mxu0 %v2060
        %2142 = vmatpush.msra.mxu0 %v2056
        %2143 = vmatpush.msra.mxu0 %v2052
        %2144 = vmatpush.msra.mxu0 %v2048
        %2145 = vmatpush.msra.mxu0 %v2044
        %2146 = vmatpush.msra.mxu0 %v2040
        %2147 = vmatpush.msra.mxu0 %v2036
        %2148 = vmatpush.msra.mxu0 %v2032
        %2149 = vmatpush.msra.mxu0 %v2028
        %2150 = vmatpush.msra.mxu0 %v2024
        %2151 = vmatpush.msra.mxu0 %v2020
        %2152 = vmatpush.msra.mxu0 %v2016
        %2153 = vmatmul.f32.gmra.mxu0 %v2010
        %v2154 = vpop.f32.mrf.mxu0
        %v2155 = vadd.f32 0.0, %v2154
        %2156 = vdwg.mxu0
        %s2157 = smul.u32 6, 4
        %s2158 = smul.addr %s2157, 8
        %s2159 = scalar_lea.vmem [#allocation2], %s2158
        %v2160 = vld [vmem:[%s2159] sm:$0xff]
        %v2161 = vld [vmem:[%s2159 + $0x8] sm:$0xff]
        %v2162 = vld [vmem:[%s2159 + $0x10] sm:$0xff]
        %v2163 = vld [vmem:[%s2159 + $0x18] sm:$0xff]
        %v2164 = vadd.f32 %v2160, %v2095
        %v2165 = vadd.f32 %v2161, %v2115
        %v2166 = vadd.f32 %v2162, %v2135
        %v2167 = vadd.f32 %v2163, %v2155
        %v2168 = vxor.u32 %v2164, 2147483648
        %v2169 = vmul.f32 %v2168, 1.442695
        %v2170 = vpow.pop %v2169
        %v2171 = vadd.f32 %v2170, 1.0
        %v2172 = vrcp.pop %v2171
        %v2173 = vmul.f32 %v2171, %v2172
        %v2174 = vsub.f32 1.0, %v2173
        %v2175 = vmul.f32 %v2172, %v2174
        %v2176 = vadd.f32 %v2172, %v2175
        %vm2177 = vweird.f32 %v2171
        %vm2178 = vweird.f32 %v2172
        %vm2179 = vmor %vm2177, %vm2178
        %v2180 = vsel %vm2179, %v2172, %v2176
        %v2181 = vand.u32 2147483647, %v2171
        %vm2182 = vcmp.eq.f32.partialorder %v2181, 8.507059e+37
        %v2183 = vand.u32 %v2171, 2147483648
        %v2184 = vor.u32 1.1754944e-38, %v2183
        %v2185 = vsel %vm2182, %v2184, %v2180
        %v2186 = vmul.f32 1.0, %v2185
        %v2187 = vxor.u32 %v2165, 2147483648
        %v2188 = vmul.f32 %v2187, 1.442695
        %v2189 = vpow.pop %v2188
        %v2190 = vadd.f32 %v2189, 1.0
        %v2191 = vrcp.pop %v2190
        %v2192 = vmul.f32 %v2190, %v2191
        %v2193 = vsub.f32 1.0, %v2192
        %v2194 = vmul.f32 %v2191, %v2193
        %v2195 = vadd.f32 %v2191, %v2194
        %vm2196 = vweird.f32 %v2190
        %vm2197 = vweird.f32 %v2191
        %vm2198 = vmor %vm2196, %vm2197
        %v2199 = vsel %vm2198, %v2191, %v2195
        %v2200 = vand.u32 2147483647, %v2190
        %vm2201 = vcmp.eq.f32.partialorder %v2200, 8.507059e+37
        %v2202 = vand.u32 %v2190, 2147483648
        %v2203 = vor.u32 1.1754944e-38, %v2202
        %v2204 = vsel %vm2201, %v2203, %v2199
        %v2205 = vmul.f32 1.0, %v2204
        %v2206 = vtanh.pop %v2166
        %v2207 = vxor.u32 %v2167, 2147483648
        %v2208 = vmul.f32 %v2207, 1.442695
        %v2209 = vpow.pop %v2208
        %v2210 = vadd.f32 %v2209, 1.0
        %v2211 = vrcp.pop %v2210
        %v2212 = vmul.f32 %v2210, %v2211
        %v2213 = vsub.f32 1.0, %v2212
        %v2214 = vmul.f32 %v2211, %v2213
        %v2215 = vadd.f32 %v2211, %v2214
        %vm2216 = vweird.f32 %v2210
        %vm2217 = vweird.f32 %v2211
        %vm2218 = vmor %vm2216, %vm2217
        %v2219 = vsel %vm2218, %v2211, %v2215
        %v2220 = vand.u32 2147483647, %v2210
        %vm2221 = vcmp.eq.f32.partialorder %v2220, 8.507059e+37
        %v2222 = vand.u32 %v2210, 2147483648
        %v2223 = vor.u32 1.1754944e-38, %v2222
        %v2224 = vsel %vm2221, %v2223, %v2219
        %v2225 = vmul.f32 1.0, %v2224
        %v2226 = vmul.f32 %v2205, %v2008
        %v2227 = vmul.f32 %v2186, %v2206
        %v2228 = vadd.f32 %v2226, %v2227
        %v2229 = vtanh.pop %v2228
        %v2230 = vmul.f32 %v2225, %v2229
        %s2231 = scalar_lea.vmem [#allocation3], 48
        %2232 = vst [vmem:[%s2231] sm:$0xff] %v2230
        %v2233 = vld [vmem:[%s346] sm:$0xff]
        %v2234 = vld [vmem:[%s346 + $0x8] sm:$0xff]
        %v2235 = vld [vmem:[%s346 + $0x10] sm:$0xff]
        %v2236 = vld [vmem:[%s346 + $0x18] sm:$0xff]
        %v2237 = vld [vmem:[%s346 + $0x20] sm:$0xff]
        %v2238 = vld [vmem:[%s346 + $0x28] sm:$0xff]
        %v2239 = vld [vmem:[%s346 + $0x30] sm:$0xff]
        %v2240 = vld [vmem:[%s346 + $0x38] sm:$0xff]
        %v2241 = vld [vmem:[%s346 + $0x40] sm:$0xff]
        %v2242 = vld [vmem:[%s346 + $0x48] sm:$0xff]
        %v2243 = vld [vmem:[%s346 + $0x50] sm:$0xff]
        %v2244 = vld [vmem:[%s346 + $0x58] sm:$0xff]
        %v2245 = vld [vmem:[%s346 + $0x60] sm:$0xff]
        %v2246 = vld [vmem:[%s346 + $0x68] sm:$0xff]
        %v2247 = vld [vmem:[%s346 + $0x70] sm:$0xff]
        %v2248 = vld [vmem:[%s346 + $0x78] sm:$0xff]
        %v2249 = vld [vmem:[%s346 + $0x80] sm:$0xff]
        %v2250 = vld [vmem:[%s346 + $0x88] sm:$0xff]
        %v2251 = vld [vmem:[%s346 + $0x90] sm:$0xff]
        %v2252 = vld [vmem:[%s346 + $0x98] sm:$0xff]
        %v2253 = vld [vmem:[%s346 + $0xa0] sm:$0xff]
        %v2254 = vld [vmem:[%s346 + $0xa8] sm:$0xff]
        %v2255 = vld [vmem:[%s346 + $0xb0] sm:$0xff]
        %v2256 = vld [vmem:[%s346 + $0xb8] sm:$0xff]
        %v2257 = vld [vmem:[%s346 + $0xc0] sm:$0xff]
        %v2258 = vld [vmem:[%s346 + $0xc8] sm:$0xff]
        %v2259 = vld [vmem:[%s346 + $0xd0] sm:$0xff]
        %v2260 = vld [vmem:[%s346 + $0xd8] sm:$0xff]
        %v2261 = vld [vmem:[%s346 + $0xe0] sm:$0xff]
        %v2262 = vld [vmem:[%s346 + $0xe8] sm:$0xff]
        %v2263 = vld [vmem:[%s346 + $0xf0] sm:$0xff]
        %v2264 = vld [vmem:[%s346 + $0xf8] sm:$0xff]
        %v2265 = vld [vmem:[%s346 + $0x100] sm:$0xff]
        %v2266 = vld [vmem:[%s346 + $0x108] sm:$0xff]
        %v2267 = vld [vmem:[%s346 + $0x110] sm:$0xff]
        %v2268 = vld [vmem:[%s346 + $0x118] sm:$0xff]
        %v2269 = vld [vmem:[%s346 + $0x120] sm:$0xff]
        %v2270 = vld [vmem:[%s346 + $0x128] sm:$0xff]
        %v2271 = vld [vmem:[%s346 + $0x130] sm:$0xff]
        %v2272 = vld [vmem:[%s346 + $0x138] sm:$0xff]
        %v2273 = vld [vmem:[%s346 + $0x140] sm:$0xff]
        %v2274 = vld [vmem:[%s346 + $0x148] sm:$0xff]
        %v2275 = vld [vmem:[%s346 + $0x150] sm:$0xff]
        %v2276 = vld [vmem:[%s346 + $0x158] sm:$0xff]
        %v2277 = vld [vmem:[%s346 + $0x160] sm:$0xff]
        %v2278 = vld [vmem:[%s346 + $0x168] sm:$0xff]
        %v2279 = vld [vmem:[%s346 + $0x170] sm:$0xff]
        %v2280 = vld [vmem:[%s346 + $0x178] sm:$0xff]
        %v2281 = vld [vmem:[%s346 + $0x180] sm:$0xff]
        %v2282 = vld [vmem:[%s346 + $0x188] sm:$0xff]
        %v2283 = vld [vmem:[%s346 + $0x190] sm:$0xff]
        %v2284 = vld [vmem:[%s346 + $0x198] sm:$0xff]
        %v2285 = vld [vmem:[%s346 + $0x1a0] sm:$0xff]
        %v2286 = vld [vmem:[%s346 + $0x1a8] sm:$0xff]
        %v2287 = vld [vmem:[%s346 + $0x1b0] sm:$0xff]
        %v2288 = vld [vmem:[%s346 + $0x1b8] sm:$0xff]
        %v2289 = vld [vmem:[%s346 + $0x1c0] sm:$0xff]
        %v2290 = vld [vmem:[%s346 + $0x1c8] sm:$0xff]
        %v2291 = vld [vmem:[%s346 + $0x1d0] sm:$0xff]
        %v2292 = vld [vmem:[%s346 + $0x1d8] sm:$0xff]
        %v2293 = vld [vmem:[%s346 + $0x1e0] sm:$0xff]
        %v2294 = vld [vmem:[%s346 + $0x1e8] sm:$0xff]
        %v2295 = vld [vmem:[%s346 + $0x1f0] sm:$0xff]
        %v2296 = vld [vmem:[%s346 + $0x1f8] sm:$0xff]
        %2297 = vmatpush.msra.mxu0 %v2293
        %2298 = vmatpush.msra.mxu0 %v2289
        %2299 = vmatpush.msra.mxu0 %v2285
        %2300 = vmatpush.msra.mxu0 %v2281
        %2301 = vmatpush.msra.mxu0 %v2277
        %2302 = vmatpush.msra.mxu0 %v2273
        %2303 = vmatpush.msra.mxu0 %v2269
        %2304 = vmatpush.msra.mxu0 %v2265
        %2305 = vmatpush.msra.mxu0 %v2261
        %2306 = vmatpush.msra.mxu0 %v2257
        %2307 = vmatpush.msra.mxu0 %v2253
        %2308 = vmatpush.msra.mxu0 %v2249
        %2309 = vmatpush.msra.mxu0 %v2245
        %2310 = vmatpush.msra.mxu0 %v2241
        %2311 = vmatpush.msra.mxu0 %v2237
        %2312 = vmatpush.msra.mxu0 %v2233
        %2313 = vmatmul.f32.gmra.mxu0 %v2230
        %v2314 = vpop.f32.mrf.mxu0
        %v2315 = vadd.f32 0.0, %v2314
        %2316 = vdwg.mxu0
        %2317 = vmatpush.msra.mxu0 %v2294
        %2318 = vmatpush.msra.mxu0 %v2290
        %2319 = vmatpush.msra.mxu0 %v2286
        %2320 = vmatpush.msra.mxu0 %v2282
        %2321 = vmatpush.msra.mxu0 %v2278
        %2322 = vmatpush.msra.mxu0 %v2274
        %2323 = vmatpush.msra.mxu0 %v2270
        %2324 = vmatpush.msra.mxu0 %v2266
        %2325 = vmatpush.msra.mxu0 %v2262
        %2326 = vmatpush.msra.mxu0 %v2258
        %2327 = vmatpush.msra.mxu0 %v2254
        %2328 = vmatpush.msra.mxu0 %v2250
        %2329 = vmatpush.msra.mxu0 %v2246
        %2330 = vmatpush.msra.mxu0 %v2242
        %2331 = vmatpush.msra.mxu0 %v2238
        %2332 = vmatpush.msra.mxu0 %v2234
        %2333 = vmatmul.f32.gmra.mxu0 %v2230
        %v2334 = vpop.f32.mrf.mxu0
        %v2335 = vadd.f32 0.0, %v2334
        %2336 = vdwg.mxu0
        %2337 = vmatpush.msra.mxu0 %v2295
        %2338 = vmatpush.msra.mxu0 %v2291
        %2339 = vmatpush.msra.mxu0 %v2287
        %2340 = vmatpush.msra.mxu0 %v2283
        %2341 = vmatpush.msra.mxu0 %v2279
        %2342 = vmatpush.msra.mxu0 %v2275
        %2343 = vmatpush.msra.mxu0 %v2271
        %2344 = vmatpush.msra.mxu0 %v2267
        %2345 = vmatpush.msra.mxu0 %v2263
        %2346 = vmatpush.msra.mxu0 %v2259
        %2347 = vmatpush.msra.mxu0 %v2255
        %2348 = vmatpush.msra.mxu0 %v2251
        %2349 = vmatpush.msra.mxu0 %v2247
        %2350 = vmatpush.msra.mxu0 %v2243
        %2351 = vmatpush.msra.mxu0 %v2239
        %2352 = vmatpush.msra.mxu0 %v2235
        %2353 = vmatmul.f32.gmra.mxu0 %v2230
        %v2354 = vpop.f32.mrf.mxu0
        %v2355 = vadd.f32 0.0, %v2354
        %2356 = vdwg.mxu0
        %2357 = vmatpush.msra.mxu0 %v2296
        %2358 = vmatpush.msra.mxu0 %v2292
        %2359 = vmatpush.msra.mxu0 %v2288
        %2360 = vmatpush.msra.mxu0 %v2284
        %2361 = vmatpush.msra.mxu0 %v2280
        %2362 = vmatpush.msra.mxu0 %v2276
        %2363 = vmatpush.msra.mxu0 %v2272
        %2364 = vmatpush.msra.mxu0 %v2268
        %2365 = vmatpush.msra.mxu0 %v2264
        %2366 = vmatpush.msra.mxu0 %v2260
        %2367 = vmatpush.msra.mxu0 %v2256
        %2368 = vmatpush.msra.mxu0 %v2252
        %2369 = vmatpush.msra.mxu0 %v2248
        %2370 = vmatpush.msra.mxu0 %v2244
        %2371 = vmatpush.msra.mxu0 %v2240
        %2372 = vmatpush.msra.mxu0 %v2236
        %2373 = vmatmul.f32.gmra.mxu0 %v2230
        %v2374 = vpop.f32.mrf.mxu0
        %v2375 = vadd.f32 0.0, %v2374
        %2376 = vdwg.mxu0
        %s2377 = smul.u32 7, 4
        %s2378 = smul.addr %s2377, 8
        %s2379 = scalar_lea.vmem [#allocation2], %s2378
        %v2380 = vld [vmem:[%s2379] sm:$0xff]
        %v2381 = vld [vmem:[%s2379 + $0x8] sm:$0xff]
        %v2382 = vld [vmem:[%s2379 + $0x10] sm:$0xff]
        %v2383 = vld [vmem:[%s2379 + $0x18] sm:$0xff]
        %v2384 = vadd.f32 %v2380, %v2315
        %v2385 = vadd.f32 %v2381, %v2335
        %v2386 = vadd.f32 %v2382, %v2355
        %v2387 = vadd.f32 %v2383, %v2375
        %v2388 = vxor.u32 %v2384, 2147483648
        %v2389 = vmul.f32 %v2388, 1.442695
        %v2390 = vpow.pop %v2389
        %v2391 = vadd.f32 %v2390, 1.0
        %v2392 = vrcp.pop %v2391
        %v2393 = vmul.f32 %v2391, %v2392
        %v2394 = vsub.f32 1.0, %v2393
        %v2395 = vmul.f32 %v2392, %v2394
        %v2396 = vadd.f32 %v2392, %v2395
        %vm2397 = vweird.f32 %v2391
        %vm2398 = vweird.f32 %v2392
        %vm2399 = vmor %vm2397, %vm2398
        %v2400 = vsel %vm2399, %v2392, %v2396
        %v2401 = vand.u32 2147483647, %v2391
        %vm2402 = vcmp.eq.f32.partialorder %v2401, 8.507059e+37
        %v2403 = vand.u32 %v2391, 2147483648
        %v2404 = vor.u32 1.1754944e-38, %v2403
        %v2405 = vsel %vm2402, %v2404, %v2400
        %v2406 = vmul.f32 1.0, %v2405
        %v2407 = vxor.u32 %v2385, 2147483648
        %v2408 = vmul.f32 %v2407, 1.442695
        %v2409 = vpow.pop %v2408
        %v2410 = vadd.f32 %v2409, 1.0
        %v2411 = vrcp.pop %v2410
        %v2412 = vmul.f32 %v2410, %v2411
        %v2413 = vsub.f32 1.0, %v2412
        %v2414 = vmul.f32 %v2411, %v2413
        %v2415 = vadd.f32 %v2411, %v2414
        %vm2416 = vweird.f32 %v2410
        %vm2417 = vweird.f32 %v2411
        %vm2418 = vmor %vm2416, %vm2417
        %v2419 = vsel %vm2418, %v2411, %v2415
        %v2420 = vand.u32 2147483647, %v2410
        %vm2421 = vcmp.eq.f32.partialorder %v2420, 8.507059e+37
        %v2422 = vand.u32 %v2410, 2147483648
        %v2423 = vor.u32 1.1754944e-38, %v2422
        %v2424 = vsel %vm2421, %v2423, %v2419
        %v2425 = vmul.f32 1.0, %v2424
        %v2426 = vtanh.pop %v2386
        %v2427 = vxor.u32 %v2387, 2147483648
        %v2428 = vmul.f32 %v2427, 1.442695
        %v2429 = vpow.pop %v2428
        %v2430 = vadd.f32 %v2429, 1.0
        %v2431 = vrcp.pop %v2430
        %v2432 = vmul.f32 %v2430, %v2431
        %v2433 = vsub.f32 1.0, %v2432
        %v2434 = vmul.f32 %v2431, %v2433
        %v2435 = vadd.f32 %v2431, %v2434
        %vm2436 = vweird.f32 %v2430
        %vm2437 = vweird.f32 %v2431
        %vm2438 = vmor %vm2436, %vm2437
        %v2439 = vsel %vm2438, %v2431, %v2435
        %v2440 = vand.u32 2147483647, %v2430
        %vm2441 = vcmp.eq.f32.partialorder %v2440, 8.507059e+37
        %v2442 = vand.u32 %v2430, 2147483648
        %v2443 = vor.u32 1.1754944e-38, %v2442
        %v2444 = vsel %vm2441, %v2443, %v2439
        %v2445 = vmul.f32 1.0, %v2444
        %v2446 = vmul.f32 %v2425, %v2228
        %v2447 = vmul.f32 %v2406, %v2426
        %v2448 = vadd.f32 %v2446, %v2447
        %v2449 = vtanh.pop %v2448
        %v2450 = vmul.f32 %v2445, %v2449
        %s2451 = scalar_lea.vmem [#allocation3], 56
        %2452 = vst [vmem:[%s2451] sm:$0xff] %v2450
        %p2453 = scmp.eq.s32.totalorder %s30, 1
        // Predicated region
        $region69: #{tpu_custom_call.1} parent=43 // pred_check
          %p2454 = pneg %p2453
        $region70: #{tpu_custom_call.1} parent=43 // pred_check_branch
          %2456 = sbr.rel (%p2454) target = $region72
        $region71: #{tpu_custom_call.1} parent=43 // pred_region
          %v2457 = vld [vmem:[#allocation3] sm:$0xff]
          %v2458 = vld [vmem:[#allocation3 + $0x8] sm:$0xff]
          %v2459 = vld [vmem:[#allocation3 + $0x10] sm:$0xff]
          %v2460 = vld [vmem:[#allocation3 + $0x18] sm:$0xff]
          %v2461 = vld [vmem:[#allocation3 + $0x20] sm:$0xff]
          %v2462 = vld [vmem:[#allocation3 + $0x28] sm:$0xff]
          %v2463 = vld [vmem:[#allocation3 + $0x30] sm:$0xff]
          %v2464 = vld [vmem:[#allocation3 + $0x38] sm:$0xff]
          %v2465 = vld [vmem:[#allocation12] sm:$0xff]
          %v2466 = vld [vmem:[#allocation12 + $0x8] sm:$0xff]
          %v2467 = vld [vmem:[#allocation12 + $0x10] sm:$0xff]
          %v2468 = vld [vmem:[#allocation12 + $0x18] sm:$0xff]
          %v2469 = vld [vmem:[#allocation12 + $0x20] sm:$0xff]
          %v2470 = vld [vmem:[#allocation12 + $0x28] sm:$0xff]
          %v2471 = vld [vmem:[#allocation12 + $0x30] sm:$0xff]
          %v2472 = vld [vmem:[#allocation12 + $0x38] sm:$0xff]
          %v2473 = vld [vmem:[#allocation12 + $0x40] sm:$0xff]
          %v2474 = vld [vmem:[#allocation12 + $0x48] sm:$0xff]
          %v2475 = vld [vmem:[#allocation12 + $0x50] sm:$0xff]
          %v2476 = vld [vmem:[#allocation12 + $0x58] sm:$0xff]
          %v2477 = vld [vmem:[#allocation12 + $0x60] sm:$0xff]
          %v2478 = vld [vmem:[#allocation12 + $0x68] sm:$0xff]
          %v2479 = vld [vmem:[#allocation12 + $0x70] sm:$0xff]
          %v2480 = vld [vmem:[#allocation12 + $0x78] sm:$0xff]
          %v2481 = vld [vmem:[%s5] sm:$0x1]
          %v2483 = vperm.slane %v2481, 0
          %2485 = vmatpush.msra.mxu0 %v2480
          %2486 = vmatpush.msra.mxu0 %v2479
          %2487 = vmatpush.msra.mxu0 %v2478
          %2488 = vmatpush.msra.mxu0 %v2477
          %2489 = vmatpush.msra.mxu0 %v2476
          %2490 = vmatpush.msra.mxu0 %v2475
          %2491 = vmatpush.msra.mxu0 %v2474
          %2492 = vmatpush.msra.mxu0 %v2473
          %2493 = vmatpush.msra.mxu0 %v2472
          %2494 = vmatpush.msra.mxu0 %v2471
          %2495 = vmatpush.msra.mxu0 %v2470
          %2496 = vmatpush.msra.mxu0 %v2469
          %2497 = vmatpush.msra.mxu0 %v2468
          %2498 = vmatpush.msra.mxu0 %v2467
          %2499 = vmatpush.msra.mxu0 %v2466
          %2500 = vmatpush.msra.mxu0 %v2465
          %2501 = vmatmul.f32.gmra.mxu0 %v2457
          %v2502 = vpop.f32.mrf.mxu0
          %v2503 = vadd.f32 %v2483, %v2502
          %2504 = vmatmul.f32.gmra.mxu0 %v2458
          %v2505 = vpop.f32.mrf.mxu0
          %v2506 = vadd.f32 %v2483, %v2505
          %2507 = vmatmul.f32.gmra.mxu0 %v2459
          %v2508 = vpop.f32.mrf.mxu0
          %v2509 = vadd.f32 %v2483, %v2508
          %2510 = vmatmul.f32.gmra.mxu0 %v2460
          %v2511 = vpop.f32.mrf.mxu0
          %v2512 = vadd.f32 %v2483, %v2511
          %2513 = vmatmul.f32.gmra.mxu0 %v2461
          %v2514 = vpop.f32.mrf.mxu0
          %v2515 = vadd.f32 %v2483, %v2514
          %2516 = vmatmul.f32.gmra.mxu0 %v2462
          %v2517 = vpop.f32.mrf.mxu0
          %v2518 = vadd.f32 %v2483, %v2517
          %2519 = vmatmul.f32.gmra.mxu0 %v2463
          %v2520 = vpop.f32.mrf.mxu0
          %v2521 = vadd.f32 %v2483, %v2520
          %2522 = vmatmul.f32.gmra.mxu0 %v2464
          %v2523 = vpop.f32.mrf.mxu0
          %v2524 = vadd.f32 %v2483, %v2523
          %2525 = vdwg.mxu0
          %v2526 = vmax.f32 %v2503, 0.0
          %v2527 = vmax.f32 %v2506, 0.0
          %v2528 = vmax.f32 %v2509, 0.0
          %v2529 = vmax.f32 %v2512, 0.0
          %v2530 = vmax.f32 %v2515, 0.0
          %v2531 = vmax.f32 %v2518, 0.0
          %v2532 = vmax.f32 %v2521, 0.0
          %v2533 = vmax.f32 %v2524, 0.0
          %2534 = vst [vmem:[#allocation13] sm:$0xff] %v2526
          %2535 = vst [vmem:[#allocation13 + $0x8] sm:$0xff] %v2527
          %2536 = vst [vmem:[#allocation13 + $0x10] sm:$0xff] %v2528
          %2537 = vst [vmem:[#allocation13 + $0x18] sm:$0xff] %v2529
          %2538 = vst [vmem:[#allocation13 + $0x20] sm:$0xff] %v2530
          %2539 = vst [vmem:[#allocation13 + $0x28] sm:$0xff] %v2531
          %2540 = vst [vmem:[#allocation13 + $0x30] sm:$0xff] %v2532
          %2541 = vst [vmem:[#allocation13 + $0x38] sm:$0xff] %v2533
        $region72: #{tpu_custom_call.1} parent=43 // pred_fallthru
          _
        // Predicated region
        $region73: #{tpu_custom_call.1} parent=43 // pred_check
          %p2542 = pneg %p201
        $region74: #{tpu_custom_call.1} parent=43 // pred_check_branch
          %2544 = sbr.rel (%p2542) target = $region76
        $region75: #{tpu_custom_call.1} parent=43 // pred_region
          %2546 = vsyncadd [#allocation6], 0
          %s2547 = smul.addr %s29, 8
          %s2548 = smul.addr %s2547, 8
          %s2549 = scalar_lea.hbm %s6, %s2548
          %s2550 = sshll.u32 [#allocation13], 4
          %s2551 = int_to_ptr.vmem [resolvable:$true] %s2550
          %s2552 = sshll.u32 %s2549, 4
          %s2553 = int_to_ptr.hbm [resolvable:$true] %s2552
          %2558 = dma.vmem_to_hbm [thread:$0]  %s2551, 1024, %s2553, [#allocation6], 128, 128, 8
        $region76: #{tpu_custom_call.1} parent=43 // pred_fallthru
          _
        // Predicated region
        $region77: #{tpu_custom_call.1} parent=43 // pred_check
          %p2559 = pneg %p201
        $region78: #{tpu_custom_call.1} parent=43 // pred_check_branch
          %2561 = sbr.rel (%p2559) target = $region80
        $region79: #{tpu_custom_call.1} parent=43 // pred_region
          %2563 = dma.done [#allocation6], 1024
        $region80: #{tpu_custom_call.1} parent=43 // pred_fallthru
          _
      $region44: #{tpu_custom_call.1} parent=5 // pred_fallthru
        _
      %p2564 = scmp.le.s32.totalorder 2, %s20
      // Predicated region
      $region81: #{tpu_custom_call.1} parent=5 // pred_check
        %p2565 = pneg %p2564
      $region82: #{tpu_custom_call.1} parent=5 // pred_check_branch
        %2567 = sbr.rel (%p2565) target = $region84
      $region83: #{tpu_custom_call.1} parent=5 // pred_region
        %s2568 = ssub.s32 %s20, 2
      $region84: #{tpu_custom_call.1} parent=5 // pred_fallthru
        _
    $region6: #{tpu_custom_call.1} parent=1 // loop_footer
      %s24 = sadd.s32 1, %s20
    $region7: #{tpu_custom_call.1} parent=1 // loop_footer_branch
      %19 = sbr.rel target = $region3
    $region8: #{tpu_custom_call.1} parent=1 // loop_exit
      _
    %2569 = vsyncpa [#allocation5], 1
    %s2570 = scalar_lea.sflag [#allocation5], 1
    %2571 = vsyncpa %s2570, 1
    %2572 = vsyncpa [#allocation8], 1
    %s2573 = scalar_lea.sflag [#allocation8], 1
    %2574 = vsyncpa %s2573, 1
    %2575 = vsyncpa [#allocation11], 1
    %s2576 = scalar_lea.sflag [#allocation11], 1
    %2577 = vsyncpa %s2576, 1
    %2578 = vsyncpa [#allocation6], 1
    %s2579 = scalar_lea.sflag [#allocation6], 1
    %2580 = vsyncpa %s2579, 1

</llo_original>
